<compile_context>
chip_gen: v7x
topology: tpu7x:2x2x1
jax: 0.10.0
libtpu: 0.0.40
codegen_flags: <defaults>
</compile_context>

<pallas_src>
import jax
import jax.numpy as jnp
from jax import lax
from jax.experimental import pallas as pl
from jax.experimental.pallas import tpu as pltpu


# ----------------------------------------------------------------------------
# Fused encoder + decoder kernel (one pallas_call, grid=(1,))
# ----------------------------------------------------------------------------
def _seq2seq_kernel(tf_ref,                       # SMEM (trg_len,) int32 (scalar prefetch)
                    src_ref,                      # (S, Bp, E)  bf16
                    trg_ref,                      # (T, Bp, E)  bf16
                    enc_w_ref, enc_b_ref,         # (E+H, 4H) bf16, (1, 4H) f32
                    dec_w_ref, dec_b_ref,         # (E+H, 4H) bf16, (1, 4H) f32
                    fcw_ref, fcb_ref,             # (H, Vp) bf16, (1, Vp) f32 (pad lanes -1e30)
                    emb_ref,                      # (V, E) bf16  decoder embedding table
                    out_ref,                      # (T-1, Bp, Vp) f32 logits
                    xh_s, c_s):                   # VMEM scratch: (Bp, E+H) bf16, (Bp, H) f32
    Bp, EH = xh_s.shape
    H = c_s.shape[1]
    E = EH - H
    S = src_ref.shape[0]
    T = trg_ref.shape[0]
    V = emb_ref.shape[0]
    Vp = out_ref.shape[-1]

    # --- constants hoisted out of the time loops ---
    enc_b = jnp.broadcast_to(enc_b_ref[...], (Bp, 4 * H))
    dec_b = jnp.broadcast_to(dec_b_ref[...], (Bp, 4 * H))
    fcb = jnp.broadcast_to(fcb_ref[...], (Bp, Vp))
    lane_iota = lax.broadcasted_iota(jnp.int32, (Bp, Vp), 1)
    row_iota = lax.broadcasted_iota(jnp.int32, (Bp, V), 1)

    # --- initial state: h = c = 0 (x slot is filled every step) ---
    xh_s[...] = jnp.zeros_like(xh_s)
    c_s[...] = jnp.zeros_like(c_s)

    def lstm_step(w_ref, bias):
        """Fused LSTM cell.  Fused-weight gate layout is (i, f, o | g) so
        sigmoid covers a contiguous 3H block and tanh only the trailing H."""
        gates = jnp.dot(xh_s[...], w_ref[...],
                        preferred_element_type=jnp.float32) + bias      # (Bp, 4H) f32
        sig = jax.nn.sigmoid(gates[:, :3 * H])
        i = sig[:, 0 * H:1 * H]
        f = sig[:, 1 * H:2 * H]
        o = sig[:, 2 * H:3 * H]
        g = jnp.tanh(gates[:, 3 * H:])
        c_new = f * c_s[...] + i * g
        h_new = o * jnp.tanh(c_new)
        c_s[...] = c_new
        xh_s[:, pl.ds(E, H)] = h_new.astype(jnp.bfloat16)   # h carried in place
        return h_new

    # ---------------- encoder: whole source sequence ----------------
    def enc_body(t, carry):
        xh_s[:, pl.ds(0, E)] = src_ref[t]
        lstm_step(enc_w_ref, enc_b)
        return carry

    lax.fori_loop(0, S, enc_body, 0, unroll=True)

    # ---------------- decoder: greedy / teacher-forced decode ----------------
    xh_s[:, pl.ds(0, E)] = trg_ref[0]                       # input = emb(trg[0])

    def dec_body(s, carry):
        h_new = lstm_step(dec_w_ref, dec_b)

        # lane-dense vocab projection (Vp multiple of 128 -> unmasked stores)
        logits = jnp.dot(h_new.astype(jnp.bfloat16), fcw_ref[...],
                         preferred_element_type=jnp.float32) + fcb
        out_ref[s] = logits                                  # output for t = s + 1

        tf = tf_ref[s + 1]                                   # coin of iteration t = s+1

        @pl.when(tf == 0)
        def _():
            # greedy top-1 (padded lanes carry bias -1e30, never win; first-index tie-break)
            mx = jnp.max(logits, axis=1, keepdims=True)
            top1 = jnp.min(jnp.where(logits == mx, lane_iota, Vp),
                           axis=1, keepdims=True)            # (Bp, 1)
            # embed greedy token via one-hot bf16 matmul (no in-kernel gather)
            onehot = (row_iota == top1).astype(jnp.bfloat16)
            greedy_emb = jnp.dot(onehot, emb_ref[...],
                                 preferred_element_type=jnp.float32)
            xh_s[:, pl.ds(0, E)] = greedy_emb.astype(jnp.bfloat16)

        @pl.when(tf != 0)
        def _():
            xh_s[:, pl.ds(0, E)] = trg_ref[s + 1]            # teacher forcing

        return carry

    lax.fori_loop(0, T - 1, dec_body, 0, unroll=True)


def seq2seq_run(tf_flags, src_emb, trg_emb, params):
    """src_emb: (S, Bp, E) bf16, trg_emb: (T, Bp, E) bf16 -> logits (T-1, Bp, Vp) f32."""
    S, Bp, E = src_emb.shape
    T = trg_emb.shape[0]
    H = params["enc_w"].shape[1] // 4
    Vp = params["fc_w"].shape[1]
    V = params["dec_emb"].shape[0]

    grid_spec = pltpu.PrefetchScalarGridSpec(
        num_scalar_prefetch=1,
        grid=(1,),
        in_specs=[
            pl.BlockSpec((S, Bp, E), lambda i, tf: (0, 0, 0)),          # src_emb (resident)
            pl.BlockSpec((T, Bp, E), lambda i, tf: (0, 0, 0)),          # trg_emb (resident)
            pl.BlockSpec((E + H, 4 * H), lambda i, tf: (0, 0)),         # enc fused W
            pl.BlockSpec((1, 4 * H), lambda i, tf: (0, 0)),             # enc bias
            pl.BlockSpec((E + H, 4 * H), lambda i, tf: (0, 0)),         # dec fused W
            pl.BlockSpec((1, 4 * H), lambda i, tf: (0, 0)),             # dec bias
            pl.BlockSpec((H, Vp), lambda i, tf: (0, 0)),                # fc_w (padded)
            pl.BlockSpec((1, Vp), lambda i, tf: (0, 0)),                # fc_b (padded)
            pl.BlockSpec((V, E), lambda i, tf: (0, 0)),                 # dec embedding
        ],
        out_specs=pl.BlockSpec((T - 1, Bp, Vp), lambda i, tf: (0, 0, 0)),
        scratch_shapes=[pltpu.VMEM((Bp, E + H), jnp.bfloat16),          # [x | h] carry
                        pltpu.VMEM((Bp, H), jnp.float32)],              # c carry
    )
    return pl.pallas_call(
        _seq2seq_kernel,
        out_shape=jax.ShapeDtypeStruct((T - 1, Bp, Vp), jnp.float32),
        grid_spec=grid_spec,
        compiler_params=pltpu.CompilerParams(
            dimension_semantics=("arbitrary",)),
    )(tf_flags, src_emb, trg_emb,
      params["enc_w"], params["enc_b"],
      params["dec_w"], params["dec_b"],
      params["fc_w"], params["fc_b"],
      params["dec_emb"])


# ----------------------------------------------------------------------------
# Parameters (deterministic, synthetic; fused / padded / bf16 layouts)
# ----------------------------------------------------------------------------
def make_params(key, src_vocab, trg_vocab, emb_dim, hid_dim, lane=128):
    ks = jax.random.split(key, 8)
    s = 0.1
    rnd = lambda k, shape: (s * jax.random.normal(k, shape)).astype(jnp.float32)

    E, H = emb_dim, hid_dim
    Vp = ((trg_vocab + lane - 1) // lane) * lane

    fc_w = rnd(ks[6], (H, trg_vocab))
    fc_b = rnd(ks[7], (1, trg_vocab))
    # lane-pad vocab projection; padded bias lanes = -1e30 so argmax ignores them
    fc_w_p = jnp.zeros((H, Vp), jnp.float32).at[:, :trg_vocab].set(fc_w)
    fc_b_p = jnp.full((1, Vp), -1e30, jnp.float32).at[:, :trg_vocab].set(fc_b)

    return {
        # embedding tables in bf16 (matmul operands are bf16 anyway)
        "enc_emb": rnd(ks[0], (src_vocab, E)).astype(jnp.bfloat16),
        "dec_emb": rnd(ks[1], (trg_vocab, E)).astype(jnp.bfloat16),
        # fused [W_ih; W_hh], gate layout (i, f, o, g); bias_ih + bias_hh fused
        "enc_w": rnd(ks[2], (E + H, 4 * H)).astype(jnp.bfloat16),
        "enc_b": rnd(ks[3], (1, 4 * H)),
        "dec_w": rnd(ks[4], (E + H, 4 * H)).astype(jnp.bfloat16),
        "dec_b": rnd(ks[5], (1, 4 * H)),
        "fc_w": fc_w_p.astype(jnp.bfloat16),
        "fc_b": fc_b_p,
    }


# ----------------------------------------------------------------------------
# Seq2Seq forward (mirrors the PyTorch module), jitted end-to-end
# ----------------------------------------------------------------------------
@jax.jit
def seq2seq_forward(params, src, trg, teacher_forcing_ratio, tf_key):
    trg_len, batch = trg.shape
    trg_vocab = params["dec_emb"].shape[0]

    # embedding lookups (glue, exactly like nn.Embedding in the reference)
    src_emb = jnp.take(params["enc_emb"], src, axis=0)          # (S, B, E) bf16
    trg_emb = jnp.take(params["dec_emb"], trg, axis=0)          # (T, B, E) bf16

    # pad batch (sublane dim) to a multiple of 8 so every vreg/tile is full
    Bp = max(8, ((batch + 7) // 8) * 8)
    pad = Bp - batch
    src_emb = jnp.pad(src_emb, ((0, 0), (0, pad), (0, 0)))
    trg_emb = jnp.pad(trg_emb, ((0, 0), (0, pad), (0, 0)))

    # precompute all teacher-forcing coins -> no per-step device->host sync
    # TODO(synk): uses JAX PRNG, so token trajectories won't bit-match torch.rand.
    coins = jax.random.uniform(tf_key, (trg_len,))
    tf_flags = (coins < teacher_forcing_ratio).astype(jnp.int32)

    # one fused Pallas call: encoder loop + decoder loop, state never leaves VMEM
    logits_p = seq2seq_run(tf_flags, src_emb, trg_emb, params)  # (T-1, Bp, Vp)

    logits = logits_p[:, :batch, :trg_vocab]                    # drop batch/vocab pad
    outputs = jnp.concatenate(
        [jnp.zeros((1, batch, trg_vocab), jnp.float32), logits], axis=0)
    return outputs                                              # (trg_len, B, V)


# ----------------------------------------------------------------------------
# Main
# ----------------------------------------------------------------------------
if __name__ == "__main__":
    SRC_VOCAB = 20
    TRG_VOCAB = 16
    EMB_DIM = 32
    HID_DIM = 32
    SRC_LEN = 6
    TRG_LEN = 8
    BATCH = 4

    key = jax.random.PRNGKey(0)
    k_par, k_src, k_trg = jax.random.split(key, 3)

    params = make_params(k_par, SRC_VOCAB, TRG_VOCAB, EMB_DIM, HID_DIM)

    src = jax.random.randint(k_src, (SRC_LEN, BATCH), 0, SRC_VOCAB, dtype=jnp.int32)
    trg = jax.random.randint(k_trg, (TRG_LEN, BATCH), 0, TRG_VOCAB, dtype=jnp.int32)

    outputs = seq2seq_forward(params, src, trg, 0.5, jax.random.PRNGKey(1))
    outputs = jax.block_until_ready(outputs)

    assert outputs.shape == (TRG_LEN, BATCH, TRG_VOCAB)
    assert bool(jnp.all(outputs[0] == 0.0))
    assert bool(jnp.all(jnp.isfinite(outputs)))

    print("KERNEL_OK")
</pallas_src>

<mosaic_0001>
module attributes {stable_mosaic.version = 11 : i64} {
  func.func @_seq2seq_kernel(%arg0: i32, %arg1: memref<8xi32, #tpu.memory_space<smem>>, %arg2: memref<6x8x32xbf16, #tpu.memory_space<vmem>>, %arg3: memref<8x8x32xbf16, #tpu.memory_space<vmem>>, %arg4: memref<64x128xbf16, #tpu.memory_space<vmem>>, %arg5: memref<1x128xf32, #tpu.memory_space<vmem>>, %arg6: memref<64x128xbf16, #tpu.memory_space<vmem>>, %arg7: memref<1x128xf32, #tpu.memory_space<vmem>>, %arg8: memref<32x128xbf16, #tpu.memory_space<vmem>>, %arg9: memref<1x128xf32, #tpu.memory_space<vmem>>, %arg10: memref<16x32xbf16, #tpu.memory_space<vmem>>, %arg11: memref<7x8x128xf32, #tpu.memory_space<vmem>>, %arg12: memref<8x64xbf16, #tpu.memory_space<vmem>>, %arg13: memref<8x32xf32, #tpu.memory_space<vmem>>) attributes {dimension_semantics = [#tpu.dimension_semantics<arbitrary>], iteration_bounds = array<i64: 1>, scalar_prefetch = 1 : i64, scratch_operands = 2 : i64, tpu.core_type = #tpu.core_type<tc>, window_params = [{pipeline_mode = #tpu.pipeline_mode<synchronous>, transform_indices = @transform_0, window_bounds = array<i64: 6, 8, 32>}, {pipeline_mode = #tpu.pipeline_mode<synchronous>, transform_indices = @transform_1, window_bounds = array<i64: 8, 8, 32>}, {pipeline_mode = #tpu.pipeline_mode<synchronous>, transform_indices = @transform_2, window_bounds = array<i64: 64, 128>}, {pipeline_mode = #tpu.pipeline_mode<synchronous>, transform_indices = @transform_3, window_bounds = array<i64: 1, 128>}, {pipeline_mode = #tpu.pipeline_mode<synchronous>, transform_indices = @transform_4, window_bounds = array<i64: 64, 128>}, {pipeline_mode = #tpu.pipeline_mode<synchronous>, transform_indices = @transform_5, window_bounds = array<i64: 1, 128>}, {pipeline_mode = #tpu.pipeline_mode<synchronous>, transform_indices = @transform_6, window_bounds = array<i64: 32, 128>}, {pipeline_mode = #tpu.pipeline_mode<synchronous>, transform_indices = @transform_7, window_bounds = array<i64: 1, 128>}, {pipeline_mode = #tpu.pipeline_mode<synchronous>, transform_indices = @transform_8, window_bounds = array<i64: 16, 32>}, {pipeline_mode = #tpu.pipeline_mode<synchronous>, transform_indices = @transform_9, window_bounds = array<i64: 7, 8, 128>}]} {
    %c0 = arith.constant 0 : index
    %c0_0 = arith.constant 0 : index
    %0 = vector.load %arg5[%c0, %c0_0] : memref<1x128xf32, #tpu.memory_space<vmem>>, vector<1x128xf32>
    %1 = vector.shape_cast %0 : vector<1x128xf32> to vector<1x128xf32>
    %2 = vector.broadcast %1 : vector<1x128xf32> to vector<8x128xf32>
    %c0_1 = arith.constant 0 : index
    %c0_2 = arith.constant 0 : index
    %3 = vector.load %arg7[%c0_1, %c0_2] : memref<1x128xf32, #tpu.memory_space<vmem>>, vector<1x128xf32>
    %4 = vector.shape_cast %3 : vector<1x128xf32> to vector<1x128xf32>
    %5 = vector.broadcast %4 : vector<1x128xf32> to vector<8x128xf32>
    %c0_3 = arith.constant 0 : index
    %c0_4 = arith.constant 0 : index
    %6 = vector.load %arg9[%c0_3, %c0_4] : memref<1x128xf32, #tpu.memory_space<vmem>>, vector<1x128xf32>
    %7 = vector.shape_cast %6 : vector<1x128xf32> to vector<1x128xf32>
    %8 = vector.broadcast %7 : vector<1x128xf32> to vector<8x128xf32>
    %9 = tpu.iota {dimensions = array<i32: 1>} : vector<8x128xi32>
    %10 = tpu.iota {dimensions = array<i32: 1>} : vector<8x16xi32>
    %cst = arith.constant 0.000000e+00 : bf16
    %11 = vector.broadcast %cst : bf16 to vector<8x64xbf16>
    %c0_5 = arith.constant 0 : index
    %c0_6 = arith.constant 0 : index
    %12 = vector.load %arg12[%c0_5, %c0_6] : memref<8x64xbf16, #tpu.memory_space<vmem>>, vector<8x64xbf16>
    tpu.vector_store %arg12[%c0_5, %c0_6], %11 {strides = array<i32>} : memref<8x64xbf16, #tpu.memory_space<vmem>>, vector<8x64xbf16>,
    %cst_7 = arith.constant 0.000000e+00 : f32
    %13 = vector.broadcast %cst_7 : f32 to vector<8x32xf32>
    %c0_8 = arith.constant 0 : index
    %c0_9 = arith.constant 0 : index
    %14 = vector.load %arg13[%c0_8, %c0_9] : memref<8x32xf32, #tpu.memory_space<vmem>>, vector<8x32xf32>
    tpu.vector_store %arg13[%c0_8, %c0_9], %13 {strides = array<i32>} : memref<8x32xf32, #tpu.memory_space<vmem>>, vector<8x32xf32>,
    %c0_i32 = arith.constant 0 : i32
    %15 = arith.index_cast %c0_i32 : i32 to index
    %c0_10 = arith.constant 0 : index
    %c0_11 = arith.constant 0 : index
    %16 = vector.load %arg2[%15, %c0_10, %c0_11] : memref<6x8x32xbf16, #tpu.memory_space<vmem>>, vector<1x8x32xbf16>
    %17 = vector.shape_cast %16 : vector<1x8x32xbf16> to vector<8x32xbf16>
    %c0_12 = arith.constant 0 : index
    %c0_13 = arith.constant 0 : index
    %18 = vector.load %arg12[%c0_12, %c0_13] : memref<8x64xbf16, #tpu.memory_space<vmem>>, vector<8x32xbf16>
    tpu.vector_store %arg12[%c0_12, %c0_13], %17 {strides = array<i32>} : memref<8x64xbf16, #tpu.memory_space<vmem>>, vector<8x32xbf16>,
    %c0_14 = arith.constant 0 : index
    %c0_15 = arith.constant 0 : index
    %19 = vector.load %arg12[%c0_14, %c0_15] : memref<8x64xbf16, #tpu.memory_space<vmem>>, vector<8x64xbf16>
    %c0_16 = arith.constant 0 : index
    %c0_17 = arith.constant 0 : index
    %20 = vector.load %arg4[%c0_16, %c0_17] : memref<64x128xbf16, #tpu.memory_space<vmem>>, vector<64x128xbf16>
    %cst_18 = arith.constant dense<0.000000e+00> : vector<8x128xf32>
    %21 = tpu.matmul %19, %20, %cst_18 {dimension_numbers = #tpu.dot_dimension_numbers<[1], [0], [0], [1], [0, 0, 1, 1], [], []>} : vector<8x64xbf16>, vector<64x128xbf16>, vector<8x128xf32> -> vector<8x128xf32>
    %22 = arith.addf %21, %2 : vector<8x128xf32>
    %23 = vector.extract_strided_slice %22 {offsets = [0, 0], sizes = [8, 96], strides = [1, 1]} : vector<8x128xf32> to vector<8x96xf32>
    %24 = arith.negf %23 : vector<8x96xf32>
    %25 = math.exp %24 : vector<8x96xf32>
    %cst_19 = arith.constant 1.000000e+00 : f32
    %26 = vector.broadcast %cst_19 : f32 to vector<8x96xf32>
    %27 = arith.addf %26, %25 : vector<8x96xf32>
    %28 = arith.divf %26, %27 : vector<8x96xf32>
    %29 = vector.extract_strided_slice %28 {offsets = [0, 0], sizes = [8, 32], strides = [1, 1]} : vector<8x96xf32> to vector<8x32xf32>
    %30 = vector.extract_strided_slice %28 {offsets = [0, 32], sizes = [8, 32], strides = [1, 1]} : vector<8x96xf32> to vector<8x32xf32>
    %31 = vector.extract_strided_slice %28 {offsets = [0, 64], sizes = [8, 32], strides = [1, 1]} : vector<8x96xf32> to vector<8x32xf32>
    %32 = vector.extract_strided_slice %22 {offsets = [0, 96], sizes = [8, 32], strides = [1, 1]} : vector<8x128xf32> to vector<8x32xf32>
    %33 = math.tanh %32 : vector<8x32xf32>
    %c0_20 = arith.constant 0 : index
    %c0_21 = arith.constant 0 : index
    %34 = vector.load %arg13[%c0_20, %c0_21] : memref<8x32xf32, #tpu.memory_space<vmem>>, vector<8x32xf32>
    %35 = arith.mulf %30, %34 : vector<8x32xf32>
    %36 = arith.mulf %29, %33 : vector<8x32xf32>
    %37 = arith.addf %35, %36 : vector<8x32xf32>
    %38 = math.tanh %37 : vector<8x32xf32>
    %39 = arith.mulf %31, %38 : vector<8x32xf32>
    %c0_22 = arith.constant 0 : index
    %c0_23 = arith.constant 0 : index
    %40 = vector.load %arg13[%c0_22, %c0_23] : memref<8x32xf32, #tpu.memory_space<vmem>>, vector<8x32xf32>
    tpu.vector_store %arg13[%c0_22, %c0_23], %37 {strides = array<i32>} : memref<8x32xf32, #tpu.memory_space<vmem>>, vector<8x32xf32>,
    %41 = arith.truncf %39 : vector<8x32xf32> to vector<8x32xbf16>
    %c0_24 = arith.constant 0 : index
    %c32 = arith.constant 32 : index
    %42 = vector.load %arg12[%c0_24, %c32] : memref<8x64xbf16, #tpu.memory_space<vmem>>, vector<8x32xbf16>
    tpu.vector_store %arg12[%c0_24, %c32], %41 {strides = array<i32>} : memref<8x64xbf16, #tpu.memory_space<vmem>>, vector<8x32xbf16>,
    %c1_i32 = arith.constant 1 : i32
    %43 = arith.index_cast %c1_i32 : i32 to index
    %c0_25 = arith.constant 0 : index
    %c0_26 = arith.constant 0 : index
    %44 = vector.load %arg2[%43, %c0_25, %c0_26] : memref<6x8x32xbf16, #tpu.memory_space<vmem>>, vector<1x8x32xbf16>
    %45 = vector.shape_cast %44 : vector<1x8x32xbf16> to vector<8x32xbf16>
    %c0_27 = arith.constant 0 : index
    %c0_28 = arith.constant 0 : index
    %46 = vector.load %arg12[%c0_27, %c0_28] : memref<8x64xbf16, #tpu.memory_space<vmem>>, vector<8x32xbf16>
    tpu.vector_store %arg12[%c0_27, %c0_28], %45 {strides = array<i32>} : memref<8x64xbf16, #tpu.memory_space<vmem>>, vector<8x32xbf16>,
    %c0_29 = arith.constant 0 : index
    %c0_30 = arith.constant 0 : index
    %47 = vector.load %arg12[%c0_29, %c0_30] : memref<8x64xbf16, #tpu.memory_space<vmem>>, vector<8x64xbf16>
    %c0_31 = arith.constant 0 : index
    %c0_32 = arith.constant 0 : index
    %48 = vector.load %arg4[%c0_31, %c0_32] : memref<64x128xbf16, #tpu.memory_space<vmem>>, vector<64x128xbf16>
    %cst_33 = arith.constant dense<0.000000e+00> : vector<8x128xf32>
    %49 = tpu.matmul %47, %48, %cst_33 {dimension_numbers = #tpu.dot_dimension_numbers<[1], [0], [0], [1], [0, 0, 1, 1], [], []>} : vector<8x64xbf16>, vector<64x128xbf16>, vector<8x128xf32> -> vector<8x128xf32>
    %50 = arith.addf %49, %2 : vector<8x128xf32>
    %51 = vector.extract_strided_slice %50 {offsets = [0, 0], sizes = [8, 96], strides = [1, 1]} : vector<8x128xf32> to vector<8x96xf32>
    %52 = arith.negf %51 : vector<8x96xf32>
    %53 = math.exp %52 : vector<8x96xf32>
    %cst_34 = arith.constant 1.000000e+00 : f32
    %54 = vector.broadcast %cst_34 : f32 to vector<8x96xf32>
    %55 = arith.addf %54, %53 : vector<8x96xf32>
    %56 = arith.divf %54, %55 : vector<8x96xf32>
    %57 = vector.extract_strided_slice %56 {offsets = [0, 0], sizes = [8, 32], strides = [1, 1]} : vector<8x96xf32> to vector<8x32xf32>
    %58 = vector.extract_strided_slice %56 {offsets = [0, 32], sizes = [8, 32], strides = [1, 1]} : vector<8x96xf32> to vector<8x32xf32>
    %59 = vector.extract_strided_slice %56 {offsets = [0, 64], sizes = [8, 32], strides = [1, 1]} : vector<8x96xf32> to vector<8x32xf32>
    %60 = vector.extract_strided_slice %50 {offsets = [0, 96], sizes = [8, 32], strides = [1, 1]} : vector<8x128xf32> to vector<8x32xf32>
    %61 = math.tanh %60 : vector<8x32xf32>
    %c0_35 = arith.constant 0 : index
    %c0_36 = arith.constant 0 : index
    %62 = vector.load %arg13[%c0_35, %c0_36] : memref<8x32xf32, #tpu.memory_space<vmem>>, vector<8x32xf32>
    %63 = arith.mulf %58, %62 : vector<8x32xf32>
    %64 = arith.mulf %57, %61 : vector<8x32xf32>
    %65 = arith.addf %63, %64 : vector<8x32xf32>
    %66 = math.tanh %65 : vector<8x32xf32>
    %67 = arith.mulf %59, %66 : vector<8x32xf32>
    %c0_37 = arith.constant 0 : index
    %c0_38 = arith.constant 0 : index
    %68 = vector.load %arg13[%c0_37, %c0_38] : memref<8x32xf32, #tpu.memory_space<vmem>>, vector<8x32xf32>
    tpu.vector_store %arg13[%c0_37, %c0_38], %65 {strides = array<i32>} : memref<8x32xf32, #tpu.memory_space<vmem>>, vector<8x32xf32>,
    %69 = arith.truncf %67 : vector<8x32xf32> to vector<8x32xbf16>
    %c0_39 = arith.constant 0 : index
    %c32_40 = arith.constant 32 : index
    %70 = vector.load %arg12[%c0_39, %c32_40] : memref<8x64xbf16, #tpu.memory_space<vmem>>, vector<8x32xbf16>
    tpu.vector_store %arg12[%c0_39, %c32_40], %69 {strides = array<i32>} : memref<8x64xbf16, #tpu.memory_space<vmem>>, vector<8x32xbf16>,
    %c2_i32 = arith.constant 2 : i32
    %71 = arith.index_cast %c2_i32 : i32 to index
    %c0_41 = arith.constant 0 : index
    %c0_42 = arith.constant 0 : index
    %72 = vector.load %arg2[%71, %c0_41, %c0_42] : memref<6x8x32xbf16, #tpu.memory_space<vmem>>, vector<1x8x32xbf16>
    %73 = vector.shape_cast %72 : vector<1x8x32xbf16> to vector<8x32xbf16>
    %c0_43 = arith.constant 0 : index
    %c0_44 = arith.constant 0 : index
    %74 = vector.load %arg12[%c0_43, %c0_44] : memref<8x64xbf16, #tpu.memory_space<vmem>>, vector<8x32xbf16>
    tpu.vector_store %arg12[%c0_43, %c0_44], %73 {strides = array<i32>} : memref<8x64xbf16, #tpu.memory_space<vmem>>, vector<8x32xbf16>,
    %c0_45 = arith.constant 0 : index
    %c0_46 = arith.constant 0 : index
    %75 = vector.load %arg12[%c0_45, %c0_46] : memref<8x64xbf16, #tpu.memory_space<vmem>>, vector<8x64xbf16>
    %c0_47 = arith.constant 0 : index
    %c0_48 = arith.constant 0 : index
    %76 = vector.load %arg4[%c0_47, %c0_48] : memref<64x128xbf16, #tpu.memory_space<vmem>>, vector<64x128xbf16>
    %cst_49 = arith.constant dense<0.000000e+00> : vector<8x128xf32>
    %77 = tpu.matmul %75, %76, %cst_49 {dimension_numbers = #tpu.dot_dimension_numbers<[1], [0], [0], [1], [0, 0, 1, 1], [], []>} : vector<8x64xbf16>, vector<64x128xbf16>, vector<8x128xf32> -> vector<8x128xf32>
    %78 = arith.addf %77, %2 : vector<8x128xf32>
    %79 = vector.extract_strided_slice %78 {offsets = [0, 0], sizes = [8, 96], strides = [1, 1]} : vector<8x128xf32> to vector<8x96xf32>
    %80 = arith.negf %79 : vector<8x96xf32>
    %81 = math.exp %80 : vector<8x96xf32>
    %cst_50 = arith.constant 1.000000e+00 : f32
    %82 = vector.broadcast %cst_50 : f32 to vector<8x96xf32>
    %83 = arith.addf %82, %81 : vector<8x96xf32>
    %84 = arith.divf %82, %83 : vector<8x96xf32>
    %85 = vector.extract_strided_slice %84 {offsets = [0, 0], sizes = [8, 32], strides = [1, 1]} : vector<8x96xf32> to vector<8x32xf32>
    %86 = vector.extract_strided_slice %84 {offsets = [0, 32], sizes = [8, 32], strides = [1, 1]} : vector<8x96xf32> to vector<8x32xf32>
    %87 = vector.extract_strided_slice %84 {offsets = [0, 64], sizes = [8, 32], strides = [1, 1]} : vector<8x96xf32> to vector<8x32xf32>
    %88 = vector.extract_strided_slice %78 {offsets = [0, 96], sizes = [8, 32], strides = [1, 1]} : vector<8x128xf32> to vector<8x32xf32>
    %89 = math.tanh %88 : vector<8x32xf32>
    %c0_51 = arith.constant 0 : index
    %c0_52 = arith.constant 0 : index
    %90 = vector.load %arg13[%c0_51, %c0_52] : memref<8x32xf32, #tpu.memory_space<vmem>>, vector<8x32xf32>
    %91 = arith.mulf %86, %90 : vector<8x32xf32>
    %92 = arith.mulf %85, %89 : vector<8x32xf32>
    %93 = arith.addf %91, %92 : vector<8x32xf32>
    %94 = math.tanh %93 : vector<8x32xf32>
    %95 = arith.mulf %87, %94 : vector<8x32xf32>
    %c0_53 = arith.constant 0 : index
    %c0_54 = arith.constant 0 : index
    %96 = vector.load %arg13[%c0_53, %c0_54] : memref<8x32xf32, #tpu.memory_space<vmem>>, vector<8x32xf32>
    tpu.vector_store %arg13[%c0_53, %c0_54], %93 {strides = array<i32>} : memref<8x32xf32, #tpu.memory_space<vmem>>, vector<8x32xf32>,
    %97 = arith.truncf %95 : vector<8x32xf32> to vector<8x32xbf16>
    %c0_55 = arith.constant 0 : index
    %c32_56 = arith.constant 32 : index
    %98 = vector.load %arg12[%c0_55, %c32_56] : memref<8x64xbf16, #tpu.memory_space<vmem>>, vector<8x32xbf16>
    tpu.vector_store %arg12[%c0_55, %c32_56], %97 {strides = array<i32>} : memref<8x64xbf16, #tpu.memory_space<vmem>>, vector<8x32xbf16>,
    %c3_i32 = arith.constant 3 : i32
    %99 = arith.index_cast %c3_i32 : i32 to index
    %c0_57 = arith.constant 0 : index
    %c0_58 = arith.constant 0 : index
    %100 = vector.load %arg2[%99, %c0_57, %c0_58] : memref<6x8x32xbf16, #tpu.memory_space<vmem>>, vector<1x8x32xbf16>
    %101 = vector.shape_cast %100 : vector<1x8x32xbf16> to vector<8x32xbf16>
    %c0_59 = arith.constant 0 : index
    %c0_60 = arith.constant 0 : index
    %102 = vector.load %arg12[%c0_59, %c0_60] : memref<8x64xbf16, #tpu.memory_space<vmem>>, vector<8x32xbf16>
    tpu.vector_store %arg12[%c0_59, %c0_60], %101 {strides = array<i32>} : memref<8x64xbf16, #tpu.memory_space<vmem>>, vector<8x32xbf16>,
    %c0_61 = arith.constant 0 : index
    %c0_62 = arith.constant 0 : index
    %103 = vector.load %arg12[%c0_61, %c0_62] : memref<8x64xbf16, #tpu.memory_space<vmem>>, vector<8x64xbf16>
    %c0_63 = arith.constant 0 : index
    %c0_64 = arith.constant 0 : index
    %104 = vector.load %arg4[%c0_63, %c0_64] : memref<64x128xbf16, #tpu.memory_space<vmem>>, vector<64x128xbf16>
    %cst_65 = arith.constant dense<0.000000e+00> : vector<8x128xf32>
    %105 = tpu.matmul %103, %104, %cst_65 {dimension_numbers = #tpu.dot_dimension_numbers<[1], [0], [0], [1], [0, 0, 1, 1], [], []>} : vector<8x64xbf16>, vector<64x128xbf16>, vector<8x128xf32> -> vector<8x128xf32>
    %106 = arith.addf %105, %2 : vector<8x128xf32>
    %107 = vector.extract_strided_slice %106 {offsets = [0, 0], sizes = [8, 96], strides = [1, 1]} : vector<8x128xf32> to vector<8x96xf32>
    %108 = arith.negf %107 : vector<8x96xf32>
    %109 = math.exp %108 : vector<8x96xf32>
    %cst_66 = arith.constant 1.000000e+00 : f32
    %110 = vector.broadcast %cst_66 : f32 to vector<8x96xf32>
    %111 = arith.addf %110, %109 : vector<8x96xf32>
    %112 = arith.divf %110, %111 : vector<8x96xf32>
    %113 = vector.extract_strided_slice %112 {offsets = [0, 0], sizes = [8, 32], strides = [1, 1]} : vector<8x96xf32> to vector<8x32xf32>
    %114 = vector.extract_strided_slice %112 {offsets = [0, 32], sizes = [8, 32], strides = [1, 1]} : vector<8x96xf32> to vector<8x32xf32>
    %115 = vector.extract_strided_slice %112 {offsets = [0, 64], sizes = [8, 32], strides = [1, 1]} : vector<8x96xf32> to vector<8x32xf32>
    %116 = vector.extract_strided_slice %106 {offsets = [0, 96], sizes = [8, 32], strides = [1, 1]} : vector<8x128xf32> to vector<8x32xf32>
    %117 = math.tanh %116 : vector<8x32xf32>
    %c0_67 = arith.constant 0 : index
    %c0_68 = arith.constant 0 : index
    %118 = vector.load %arg13[%c0_67, %c0_68] : memref<8x32xf32, #tpu.memory_space<vmem>>, vector<8x32xf32>
    %119 = arith.mulf %114, %118 : vector<8x32xf32>
    %120 = arith.mulf %113, %117 : vector<8x32xf32>
    %121 = arith.addf %119, %120 : vector<8x32xf32>
    %122 = math.tanh %121 : vector<8x32xf32>
    %123 = arith.mulf %115, %122 : vector<8x32xf32>
    %c0_69 = arith.constant 0 : index
    %c0_70 = arith.constant 0 : index
    %124 = vector.load %arg13[%c0_69, %c0_70] : memref<8x32xf32, #tpu.memory_space<vmem>>, vector<8x32xf32>
    tpu.vector_store %arg13[%c0_69, %c0_70], %121 {strides = array<i32>} : memref<8x32xf32, #tpu.memory_space<vmem>>, vector<8x32xf32>,
    %125 = arith.truncf %123 : vector<8x32xf32> to vector<8x32xbf16>
    %c0_71 = arith.constant 0 : index
    %c32_72 = arith.constant 32 : index
    %126 = vector.load %arg12[%c0_71, %c32_72] : memref<8x64xbf16, #tpu.memory_space<vmem>>, vector<8x32xbf16>
    tpu.vector_store %arg12[%c0_71, %c32_72], %125 {strides = array<i32>} : memref<8x64xbf16, #tpu.memory_space<vmem>>, vector<8x32xbf16>,
    %c4_i32 = arith.constant 4 : i32
    %127 = arith.index_cast %c4_i32 : i32 to index
    %c0_73 = arith.constant 0 : index
    %c0_74 = arith.constant 0 : index
    %128 = vector.load %arg2[%127, %c0_73, %c0_74] : memref<6x8x32xbf16, #tpu.memory_space<vmem>>, vector<1x8x32xbf16>
    %129 = vector.shape_cast %128 : vector<1x8x32xbf16> to vector<8x32xbf16>
    %c0_75 = arith.constant 0 : index
    %c0_76 = arith.constant 0 : index
    %130 = vector.load %arg12[%c0_75, %c0_76] : memref<8x64xbf16, #tpu.memory_space<vmem>>, vector<8x32xbf16>
    tpu.vector_store %arg12[%c0_75, %c0_76], %129 {strides = array<i32>} : memref<8x64xbf16, #tpu.memory_space<vmem>>, vector<8x32xbf16>,
    %c0_77 = arith.constant 0 : index
    %c0_78 = arith.constant 0 : index
    %131 = vector.load %arg12[%c0_77, %c0_78] : memref<8x64xbf16, #tpu.memory_space<vmem>>, vector<8x64xbf16>
    %c0_79 = arith.constant 0 : index
    %c0_80 = arith.constant 0 : index
    %132 = vector.load %arg4[%c0_79, %c0_80] : memref<64x128xbf16, #tpu.memory_space<vmem>>, vector<64x128xbf16>
    %cst_81 = arith.constant dense<0.000000e+00> : vector<8x128xf32>
    %133 = tpu.matmul %131, %132, %cst_81 {dimension_numbers = #tpu.dot_dimension_numbers<[1], [0], [0], [1], [0, 0, 1, 1], [], []>} : vector<8x64xbf16>, vector<64x128xbf16>, vector<8x128xf32> -> vector<8x128xf32>
    %134 = arith.addf %133, %2 : vector<8x128xf32>
    %135 = vector.extract_strided_slice %134 {offsets = [0, 0], sizes = [8, 96], strides = [1, 1]} : vector<8x128xf32> to vector<8x96xf32>
    %136 = arith.negf %135 : vector<8x96xf32>
    %137 = math.exp %136 : vector<8x96xf32>
    %cst_82 = arith.constant 1.000000e+00 : f32
    %138 = vector.broadcast %cst_82 : f32 to vector<8x96xf32>
    %139 = arith.addf %138, %137 : vector<8x96xf32>
    %140 = arith.divf %138, %139 : vector<8x96xf32>
    %141 = vector.extract_strided_slice %140 {offsets = [0, 0], sizes = [8, 32], strides = [1, 1]} : vector<8x96xf32> to vector<8x32xf32>
    %142 = vector.extract_strided_slice %140 {offsets = [0, 32], sizes = [8, 32], strides = [1, 1]} : vector<8x96xf32> to vector<8x32xf32>
    %143 = vector.extract_strided_slice %140 {offsets = [0, 64], sizes = [8, 32], strides = [1, 1]} : vector<8x96xf32> to vector<8x32xf32>
    %144 = vector.extract_strided_slice %134 {offsets = [0, 96], sizes = [8, 32], strides = [1, 1]} : vector<8x128xf32> to vector<8x32xf32>
    %145 = math.tanh %144 : vector<8x32xf32>
    %c0_83 = arith.constant 0 : index
    %c0_84 = arith.constant 0 : index
    %146 = vector.load %arg13[%c0_83, %c0_84] : memref<8x32xf32, #tpu.memory_space<vmem>>, vector<8x32xf32>
    %147 = arith.mulf %142, %146 : vector<8x32xf32>
    %148 = arith.mulf %141, %145 : vector<8x32xf32>
    %149 = arith.addf %147, %148 : vector<8x32xf32>
    %150 = math.tanh %149 : vector<8x32xf32>
    %151 = arith.mulf %143, %150 : vector<8x32xf32>
    %c0_85 = arith.constant 0 : index
    %c0_86 = arith.constant 0 : index
    %152 = vector.load %arg13[%c0_85, %c0_86] : memref<8x32xf32, #tpu.memory_space<vmem>>, vector<8x32xf32>
    tpu.vector_store %arg13[%c0_85, %c0_86], %149 {strides = array<i32>} : memref<8x32xf32, #tpu.memory_space<vmem>>, vector<8x32xf32>,
    %153 = arith.truncf %151 : vector<8x32xf32> to vector<8x32xbf16>
    %c0_87 = arith.constant 0 : index
    %c32_88 = arith.constant 32 : index
    %154 = vector.load %arg12[%c0_87, %c32_88] : memref<8x64xbf16, #tpu.memory_space<vmem>>, vector<8x32xbf16>
    tpu.vector_store %arg12[%c0_87, %c32_88], %153 {strides = array<i32>} : memref<8x64xbf16, #tpu.memory_space<vmem>>, vector<8x32xbf16>,
    %c5_i32 = arith.constant 5 : i32
    %155 = arith.index_cast %c5_i32 : i32 to index
    %c0_89 = arith.constant 0 : index
    %c0_90 = arith.constant 0 : index
    %156 = vector.load %arg2[%155, %c0_89, %c0_90] : memref<6x8x32xbf16, #tpu.memory_space<vmem>>, vector<1x8x32xbf16>
    %157 = vector.shape_cast %156 : vector<1x8x32xbf16> to vector<8x32xbf16>
    %c0_91 = arith.constant 0 : index
    %c0_92 = arith.constant 0 : index
    %158 = vector.load %arg12[%c0_91, %c0_92] : memref<8x64xbf16, #tpu.memory_space<vmem>>, vector<8x32xbf16>
    tpu.vector_store %arg12[%c0_91, %c0_92], %157 {strides = array<i32>} : memref<8x64xbf16, #tpu.memory_space<vmem>>, vector<8x32xbf16>,
    %c0_93 = arith.constant 0 : index
    %c0_94 = arith.constant 0 : index
    %159 = vector.load %arg12[%c0_93, %c0_94] : memref<8x64xbf16, #tpu.memory_space<vmem>>, vector<8x64xbf16>
    %c0_95 = arith.constant 0 : index
    %c0_96 = arith.constant 0 : index
    %160 = vector.load %arg4[%c0_95, %c0_96] : memref<64x128xbf16, #tpu.memory_space<vmem>>, vector<64x128xbf16>
    %cst_97 = arith.constant dense<0.000000e+00> : vector<8x128xf32>
    %161 = tpu.matmul %159, %160, %cst_97 {dimension_numbers = #tpu.dot_dimension_numbers<[1], [0], [0], [1], [0, 0, 1, 1], [], []>} : vector<8x64xbf16>, vector<64x128xbf16>, vector<8x128xf32> -> vector<8x128xf32>
    %162 = arith.addf %161, %2 : vector<8x128xf32>
    %163 = vector.extract_strided_slice %162 {offsets = [0, 0], sizes = [8, 96], strides = [1, 1]} : vector<8x128xf32> to vector<8x96xf32>
    %164 = arith.negf %163 : vector<8x96xf32>
    %165 = math.exp %164 : vector<8x96xf32>
    %cst_98 = arith.constant 1.000000e+00 : f32
    %166 = vector.broadcast %cst_98 : f32 to vector<8x96xf32>
    %167 = arith.addf %166, %165 : vector<8x96xf32>
    %168 = arith.divf %166, %167 : vector<8x96xf32>
    %169 = vector.extract_strided_slice %168 {offsets = [0, 0], sizes = [8, 32], strides = [1, 1]} : vector<8x96xf32> to vector<8x32xf32>
    %170 = vector.extract_strided_slice %168 {offsets = [0, 32], sizes = [8, 32], strides = [1, 1]} : vector<8x96xf32> to vector<8x32xf32>
    %171 = vector.extract_strided_slice %168 {offsets = [0, 64], sizes = [8, 32], strides = [1, 1]} : vector<8x96xf32> to vector<8x32xf32>
    %172 = vector.extract_strided_slice %162 {offsets = [0, 96], sizes = [8, 32], strides = [1, 1]} : vector<8x128xf32> to vector<8x32xf32>
    %173 = math.tanh %172 : vector<8x32xf32>
    %c0_99 = arith.constant 0 : index
    %c0_100 = arith.constant 0 : index
    %174 = vector.load %arg13[%c0_99, %c0_100] : memref<8x32xf32, #tpu.memory_space<vmem>>, vector<8x32xf32>
    %175 = arith.mulf %170, %174 : vector<8x32xf32>
    %176 = arith.mulf %169, %173 : vector<8x32xf32>
    %177 = arith.addf %175, %176 : vector<8x32xf32>
    %178 = math.tanh %177 : vector<8x32xf32>
    %179 = arith.mulf %171, %178 : vector<8x32xf32>
    %c0_101 = arith.constant 0 : index
    %c0_102 = arith.constant 0 : index
    %180 = vector.load %arg13[%c0_101, %c0_102] : memref<8x32xf32, #tpu.memory_space<vmem>>, vector<8x32xf32>
    tpu.vector_store %arg13[%c0_101, %c0_102], %177 {strides = array<i32>} : memref<8x32xf32, #tpu.memory_space<vmem>>, vector<8x32xf32>,
    %181 = arith.truncf %179 : vector<8x32xf32> to vector<8x32xbf16>
    %c0_103 = arith.constant 0 : index
    %c32_104 = arith.constant 32 : index
    %182 = vector.load %arg12[%c0_103, %c32_104] : memref<8x64xbf16, #tpu.memory_space<vmem>>, vector<8x32xbf16>
    tpu.vector_store %arg12[%c0_103, %c32_104], %181 {strides = array<i32>} : memref<8x64xbf16, #tpu.memory_space<vmem>>, vector<8x32xbf16>,
    %c6_i32 = arith.constant 6 : i32
    %c0_105 = arith.constant 0 : index
    %c0_106 = arith.constant 0 : index
    %c0_107 = arith.constant 0 : index
    %183 = vector.load %arg3[%c0_105, %c0_106, %c0_107] : memref<8x8x32xbf16, #tpu.memory_space<vmem>>, vector<1x8x32xbf16>
    %184 = vector.shape_cast %183 : vector<1x8x32xbf16> to vector<8x32xbf16>
    %c0_108 = arith.constant 0 : index
    %c0_109 = arith.constant 0 : index
    %185 = vector.load %arg12[%c0_108, %c0_109] : memref<8x64xbf16, #tpu.memory_space<vmem>>, vector<8x32xbf16>
    tpu.vector_store %arg12[%c0_108, %c0_109], %184 {strides = array<i32>} : memref<8x64xbf16, #tpu.memory_space<vmem>>, vector<8x32xbf16>,
    %c0_i32_110 = arith.constant 0 : i32
    %c0_111 = arith.constant 0 : index
    %c0_112 = arith.constant 0 : index
    %186 = vector.load %arg12[%c0_111, %c0_112] : memref<8x64xbf16, #tpu.memory_space<vmem>>, vector<8x64xbf16>
    %c0_113 = arith.constant 0 : index
    %c0_114 = arith.constant 0 : index
    %187 = vector.load %arg6[%c0_113, %c0_114] : memref<64x128xbf16, #tpu.memory_space<vmem>>, vector<64x128xbf16>
    %cst_115 = arith.constant dense<0.000000e+00> : vector<8x128xf32>
    %188 = tpu.matmul %186, %187, %cst_115 {dimension_numbers = #tpu.dot_dimension_numbers<[1], [0], [0], [1], [0, 0, 1, 1], [], []>} : vector<8x64xbf16>, vector<64x128xbf16>, vector<8x128xf32> -> vector<8x128xf32>
    %189 = arith.addf %188, %5 : vector<8x128xf32>
    %190 = vector.extract_strided_slice %189 {offsets = [0, 0], sizes = [8, 96], strides = [1, 1]} : vector<8x128xf32> to vector<8x96xf32>
    %191 = arith.negf %190 : vector<8x96xf32>
    %192 = math.exp %191 : vector<8x96xf32>
    %cst_116 = arith.constant 1.000000e+00 : f32
    %193 = vector.broadcast %cst_116 : f32 to vector<8x96xf32>
    %194 = arith.addf %193, %192 : vector<8x96xf32>
    %195 = arith.divf %193, %194 : vector<8x96xf32>
    %196 = vector.extract_strided_slice %195 {offsets = [0, 0], sizes = [8, 32], strides = [1, 1]} : vector<8x96xf32> to vector<8x32xf32>
    %197 = vector.extract_strided_slice %195 {offsets = [0, 32], sizes = [8, 32], strides = [1, 1]} : vector<8x96xf32> to vector<8x32xf32>
    %198 = vector.extract_strided_slice %195 {offsets = [0, 64], sizes = [8, 32], strides = [1, 1]} : vector<8x96xf32> to vector<8x32xf32>
    %199 = vector.extract_strided_slice %189 {offsets = [0, 96], sizes = [8, 32], strides = [1, 1]} : vector<8x128xf32> to vector<8x32xf32>
    %200 = math.tanh %199 : vector<8x32xf32>
    %c0_117 = arith.constant 0 : index
    %c0_118 = arith.constant 0 : index
    %201 = vector.load %arg13[%c0_117, %c0_118] : memref<8x32xf32, #tpu.memory_space<vmem>>, vector<8x32xf32>
    %202 = arith.mulf %197, %201 : vector<8x32xf32>
    %203 = arith.mulf %196, %200 : vector<8x32xf32>
    %204 = arith.addf %202, %203 : vector<8x32xf32>
    %205 = math.tanh %204 : vector<8x32xf32>
    %206 = arith.mulf %198, %205 : vector<8x32xf32>
    %c0_119 = arith.constant 0 : index
    %c0_120 = arith.constant 0 : index
    %207 = vector.load %arg13[%c0_119, %c0_120] : memref<8x32xf32, #tpu.memory_space<vmem>>, vector<8x32xf32>
    tpu.vector_store %arg13[%c0_119, %c0_120], %204 {strides = array<i32>} : memref<8x32xf32, #tpu.memory_space<vmem>>, vector<8x32xf32>,
    %208 = arith.truncf %206 : vector<8x32xf32> to vector<8x32xbf16>
    %c0_121 = arith.constant 0 : index
    %c32_122 = arith.constant 32 : index
    %209 = vector.load %arg12[%c0_121, %c32_122] : memref<8x64xbf16, #tpu.memory_space<vmem>>, vector<8x32xbf16>
    tpu.vector_store %arg12[%c0_121, %c32_122], %208 {strides = array<i32>} : memref<8x64xbf16, #tpu.memory_space<vmem>>, vector<8x32xbf16>,
    %210 = arith.truncf %206 : vector<8x32xf32> to vector<8x32xbf16>
    %c0_123 = arith.constant 0 : index
    %c0_124 = arith.constant 0 : index
    %211 = vector.load %arg8[%c0_123, %c0_124] : memref<32x128xbf16, #tpu.memory_space<vmem>>, vector<32x128xbf16>
    %cst_125 = arith.constant dense<0.000000e+00> : vector<8x128xf32>
    %212 = tpu.matmul %210, %211, %cst_125 {dimension_numbers = #tpu.dot_dimension_numbers<[1], [0], [0], [1], [0, 0, 1, 1], [], []>} : vector<8x32xbf16>, vector<32x128xbf16>, vector<8x128xf32> -> vector<8x128xf32>
    %213 = arith.addf %212, %8 : vector<8x128xf32>
    %214 = arith.index_cast %c0_i32_110 : i32 to index
    %c0_126 = arith.constant 0 : index
    %c0_127 = arith.constant 0 : index
    %215 = vector.load %arg11[%214, %c0_126, %c0_127] : memref<7x8x128xf32, #tpu.memory_space<vmem>>, vector<1x8x128xf32>
    %216 = vector.shape_cast %215 : vector<1x8x128xf32> to vector<8x128xf32>
    %217 = vector.shape_cast %213 : vector<8x128xf32> to vector<1x8x128xf32>
    tpu.vector_store %arg11[%214, %c0_126, %c0_127], %217 {strides = array<i32>} : memref<7x8x128xf32, #tpu.memory_space<vmem>>, vector<1x8x128xf32>,
    %c1_i32_128 = arith.constant 1 : i32
    %218 = arith.addi %c0_i32_110, %c1_i32_128 : i32
    %219 = arith.index_cast %218 : i32 to index
    %220 = memref.load %arg1[%219] : memref<8xi32, #tpu.memory_space<smem>>
    %c0_i32_129 = arith.constant 0 : i32
    %221 = arith.cmpi eq, %220, %c0_i32_129 : i32
    %222 = arith.extui %221 : i1 to i32
    %c0_i32_130 = arith.constant 0 : i32
    %223 = arith.cmpi ne, %222, %c0_i32_130 : i32
    scf.if %223 {
      %cst_271 = arith.constant dense<0xFF800000> : vector<8xf32>
      %473 = vector.multi_reduction <maximumf>, %213, %cst_271 [1] : vector<8x128xf32> to vector<8xf32>
      %474 = vector.shape_cast %473 : vector<8xf32> to vector<8x1xf32>
      %475 = vector.broadcast %474 : vector<8x1xf32> to vector<8x128xf32>
      %476 = arith.cmpf oeq, %213, %475 : vector<8x128xf32>
      %c128_i32 = arith.constant 128 : i32
      %477 = vector.broadcast %c128_i32 : i32 to vector<8x128xi32>
      %478 = arith.select %476, %9, %477 : vector<8x128xi1>, vector<8x128xi32>
      %cst_272 = arith.constant dense<2147483647> : vector<8xi32>
      %479 = vector.multi_reduction <minsi>, %478, %cst_272 [1] : vector<8x128xi32> to vector<8xi32>
      %480 = vector.shape_cast %479 : vector<8xi32> to vector<8x1xi32>
      %481 = vector.broadcast %480 : vector<8x1xi32> to vector<8x16xi32>
      %482 = arith.cmpi eq, %10, %481 : vector<8x16xi32>
      %483 = arith.extui %482 : vector<8x16xi1> to vector<8x16xi32>
      %484 = arith.sitofp %483 : vector<8x16xi32> to vector<8x16xf32>
      %485 = arith.truncf %484 : vector<8x16xf32> to vector<8x16xbf16>
      %c0_273 = arith.constant 0 : index
      %c0_274 = arith.constant 0 : index
      %486 = vector.load %arg10[%c0_273, %c0_274] : memref<16x32xbf16, #tpu.memory_space<vmem>>, vector<16x32xbf16>
      %cst_275 = arith.constant dense<0.000000e+00> : vector<8x32xf32>
      %487 = tpu.matmul %485, %486, %cst_275 {dimension_numbers = #tpu.dot_dimension_numbers<[1], [0], [0], [1], [0, 0, 1, 1], [], []>} : vector<8x16xbf16>, vector<16x32xbf16>, vector<8x32xf32> -> vector<8x32xf32>
      %488 = arith.truncf %487 : vector<8x32xf32> to vector<8x32xbf16>
      %c0_276 = arith.constant 0 : index
      %c0_277 = arith.constant 0 : index
      %489 = vector.load %arg12[%c0_276, %c0_277] : memref<8x64xbf16, #tpu.memory_space<vmem>>, vector<8x32xbf16>
      tpu.vector_store %arg12[%c0_276, %c0_277], %488 {strides = array<i32>} : memref<8x64xbf16, #tpu.memory_space<vmem>>, vector<8x32xbf16>,
    } else {
    }
    %c0_i32_131 = arith.constant 0 : i32
    %224 = arith.cmpi ne, %220, %c0_i32_131 : i32
    %225 = arith.extui %224 : i1 to i32
    %c0_i32_132 = arith.constant 0 : i32
    %226 = arith.cmpi ne, %225, %c0_i32_132 : i32
    scf.if %226 {
      %c1_i32_271 = arith.constant 1 : i32
      %473 = arith.addi %c0_i32_110, %c1_i32_271 : i32
      %474 = arith.index_cast %473 : i32 to index
      %c0_272 = arith.constant 0 : index
      %c0_273 = arith.constant 0 : index
      %475 = vector.load %arg3[%474, %c0_272, %c0_273] : memref<8x8x32xbf16, #tpu.memory_space<vmem>>, vector<1x8x32xbf16>
      %476 = vector.shape_cast %475 : vector<1x8x32xbf16> to vector<8x32xbf16>
      %c0_274 = arith.constant 0 : index
      %c0_275 = arith.constant 0 : index
      %477 = vector.load %arg12[%c0_274, %c0_275] : memref<8x64xbf16, #tpu.memory_space<vmem>>, vector<8x32xbf16>
      tpu.vector_store %arg12[%c0_274, %c0_275], %476 {strides = array<i32>} : memref<8x64xbf16, #tpu.memory_space<vmem>>, vector<8x32xbf16>,
    } else {
    }
    %c1_i32_133 = arith.constant 1 : i32
    %c0_134 = arith.constant 0 : index
    %c0_135 = arith.constant 0 : index
    %227 = vector.load %arg12[%c0_134, %c0_135] : memref<8x64xbf16, #tpu.memory_space<vmem>>, vector<8x64xbf16>
    %c0_136 = arith.constant 0 : index
    %c0_137 = arith.constant 0 : index
    %228 = vector.load %arg6[%c0_136, %c0_137] : memref<64x128xbf16, #tpu.memory_space<vmem>>, vector<64x128xbf16>
    %cst_138 = arith.constant dense<0.000000e+00> : vector<8x128xf32>
    %229 = tpu.matmul %227, %228, %cst_138 {dimension_numbers = #tpu.dot_dimension_numbers<[1], [0], [0], [1], [0, 0, 1, 1], [], []>} : vector<8x64xbf16>, vector<64x128xbf16>, vector<8x128xf32> -> vector<8x128xf32>
    %230 = arith.addf %229, %5 : vector<8x128xf32>
    %231 = vector.extract_strided_slice %230 {offsets = [0, 0], sizes = [8, 96], strides = [1, 1]} : vector<8x128xf32> to vector<8x96xf32>
    %232 = arith.negf %231 : vector<8x96xf32>
    %233 = math.exp %232 : vector<8x96xf32>
    %cst_139 = arith.constant 1.000000e+00 : f32
    %234 = vector.broadcast %cst_139 : f32 to vector<8x96xf32>
    %235 = arith.addf %234, %233 : vector<8x96xf32>
    %236 = arith.divf %234, %235 : vector<8x96xf32>
    %237 = vector.extract_strided_slice %236 {offsets = [0, 0], sizes = [8, 32], strides = [1, 1]} : vector<8x96xf32> to vector<8x32xf32>
    %238 = vector.extract_strided_slice %236 {offsets = [0, 32], sizes = [8, 32], strides = [1, 1]} : vector<8x96xf32> to vector<8x32xf32>
    %239 = vector.extract_strided_slice %236 {offsets = [0, 64], sizes = [8, 32], strides = [1, 1]} : vector<8x96xf32> to vector<8x32xf32>
    %240 = vector.extract_strided_slice %230 {offsets = [0, 96], sizes = [8, 32], strides = [1, 1]} : vector<8x128xf32> to vector<8x32xf32>
    %241 = math.tanh %240 : vector<8x32xf32>
    %c0_140 = arith.constant 0 : index
    %c0_141 = arith.constant 0 : index
    %242 = vector.load %arg13[%c0_140, %c0_141] : memref<8x32xf32, #tpu.memory_space<vmem>>, vector<8x32xf32>
    %243 = arith.mulf %238, %242 : vector<8x32xf32>
    %244 = arith.mulf %237, %241 : vector<8x32xf32>
    %245 = arith.addf %243, %244 : vector<8x32xf32>
    %246 = math.tanh %245 : vector<8x32xf32>
    %247 = arith.mulf %239, %246 : vector<8x32xf32>
    %c0_142 = arith.constant 0 : index
    %c0_143 = arith.constant 0 : index
    %248 = vector.load %arg13[%c0_142, %c0_143] : memref<8x32xf32, #tpu.memory_space<vmem>>, vector<8x32xf32>
    tpu.vector_store %arg13[%c0_142, %c0_143], %245 {strides = array<i32>} : memref<8x32xf32, #tpu.memory_space<vmem>>, vector<8x32xf32>,
    %249 = arith.truncf %247 : vector<8x32xf32> to vector<8x32xbf16>
    %c0_144 = arith.constant 0 : index
    %c32_145 = arith.constant 32 : index
    %250 = vector.load %arg12[%c0_144, %c32_145] : memref<8x64xbf16, #tpu.memory_space<vmem>>, vector<8x32xbf16>
    tpu.vector_store %arg12[%c0_144, %c32_145], %249 {strides = array<i32>} : memref<8x64xbf16, #tpu.memory_space<vmem>>, vector<8x32xbf16>,
    %251 = arith.truncf %247 : vector<8x32xf32> to vector<8x32xbf16>
    %c0_146 = arith.constant 0 : index
    %c0_147 = arith.constant 0 : index
    %252 = vector.load %arg8[%c0_146, %c0_147] : memref<32x128xbf16, #tpu.memory_space<vmem>>, vector<32x128xbf16>
    %cst_148 = arith.constant dense<0.000000e+00> : vector<8x128xf32>
    %253 = tpu.matmul %251, %252, %cst_148 {dimension_numbers = #tpu.dot_dimension_numbers<[1], [0], [0], [1], [0, 0, 1, 1], [], []>} : vector<8x32xbf16>, vector<32x128xbf16>, vector<8x128xf32> -> vector<8x128xf32>
    %254 = arith.addf %253, %8 : vector<8x128xf32>
    %255 = arith.index_cast %c1_i32_133 : i32 to index
    %c0_149 = arith.constant 0 : index
    %c0_150 = arith.constant 0 : index
    %256 = vector.load %arg11[%255, %c0_149, %c0_150] : memref<7x8x128xf32, #tpu.memory_space<vmem>>, vector<1x8x128xf32>
    %257 = vector.shape_cast %256 : vector<1x8x128xf32> to vector<8x128xf32>
    %258 = vector.shape_cast %254 : vector<8x128xf32> to vector<1x8x128xf32>
    tpu.vector_store %arg11[%255, %c0_149, %c0_150], %258 {strides = array<i32>} : memref<7x8x128xf32, #tpu.memory_space<vmem>>, vector<1x8x128xf32>,
    %c1_i32_151 = arith.constant 1 : i32
    %259 = arith.addi %c1_i32_133, %c1_i32_151 : i32
    %260 = arith.index_cast %259 : i32 to index
    %261 = memref.load %arg1[%260] : memref<8xi32, #tpu.memory_space<smem>>
    %c0_i32_152 = arith.constant 0 : i32
    %262 = arith.cmpi eq, %261, %c0_i32_152 : i32
    %263 = arith.extui %262 : i1 to i32
    %c0_i32_153 = arith.constant 0 : i32
    %264 = arith.cmpi ne, %263, %c0_i32_153 : i32
    scf.if %264 {
      %cst_271 = arith.constant dense<0xFF800000> : vector<8xf32>
      %473 = vector.multi_reduction <maximumf>, %254, %cst_271 [1] : vector<8x128xf32> to vector<8xf32>
      %474 = vector.shape_cast %473 : vector<8xf32> to vector<8x1xf32>
      %475 = vector.broadcast %474 : vector<8x1xf32> to vector<8x128xf32>
      %476 = arith.cmpf oeq, %254, %475 : vector<8x128xf32>
      %c128_i32 = arith.constant 128 : i32
      %477 = vector.broadcast %c128_i32 : i32 to vector<8x128xi32>
      %478 = arith.select %476, %9, %477 : vector<8x128xi1>, vector<8x128xi32>
      %cst_272 = arith.constant dense<2147483647> : vector<8xi32>
      %479 = vector.multi_reduction <minsi>, %478, %cst_272 [1] : vector<8x128xi32> to vector<8xi32>
      %480 = vector.shape_cast %479 : vector<8xi32> to vector<8x1xi32>
      %481 = vector.broadcast %480 : vector<8x1xi32> to vector<8x16xi32>
      %482 = arith.cmpi eq, %10, %481 : vector<8x16xi32>
      %483 = arith.extui %482 : vector<8x16xi1> to vector<8x16xi32>
      %484 = arith.sitofp %483 : vector<8x16xi32> to vector<8x16xf32>
      %485 = arith.truncf %484 : vector<8x16xf32> to vector<8x16xbf16>
      %c0_273 = arith.constant 0 : index
      %c0_274 = arith.constant 0 : index
      %486 = vector.load %arg10[%c0_273, %c0_274] : memref<16x32xbf16, #tpu.memory_space<vmem>>, vector<16x32xbf16>
      %cst_275 = arith.constant dense<0.000000e+00> : vector<8x32xf32>
      %487 = tpu.matmul %485, %486, %cst_275 {dimension_numbers = #tpu.dot_dimension_numbers<[1], [0], [0], [1], [0, 0, 1, 1], [], []>} : vector<8x16xbf16>, vector<16x32xbf16>, vector<8x32xf32> -> vector<8x32xf32>
      %488 = arith.truncf %487 : vector<8x32xf32> to vector<8x32xbf16>
      %c0_276 = arith.constant 0 : index
      %c0_277 = arith.constant 0 : index
      %489 = vector.load %arg12[%c0_276, %c0_277] : memref<8x64xbf16, #tpu.memory_space<vmem>>, vector<8x32xbf16>
      tpu.vector_store %arg12[%c0_276, %c0_277], %488 {strides = array<i32>} : memref<8x64xbf16, #tpu.memory_space<vmem>>, vector<8x32xbf16>,
    } else {
    }
    %c0_i32_154 = arith.constant 0 : i32
    %265 = arith.cmpi ne, %261, %c0_i32_154 : i32
    %266 = arith.extui %265 : i1 to i32
    %c0_i32_155 = arith.constant 0 : i32
    %267 = arith.cmpi ne, %266, %c0_i32_155 : i32
    scf.if %267 {
      %c1_i32_271 = arith.constant 1 : i32
      %473 = arith.addi %c1_i32_133, %c1_i32_271 : i32
      %474 = arith.index_cast %473 : i32 to index
      %c0_272 = arith.constant 0 : index
      %c0_273 = arith.constant 0 : index
      %475 = vector.load %arg3[%474, %c0_272, %c0_273] : memref<8x8x32xbf16, #tpu.memory_space<vmem>>, vector<1x8x32xbf16>
      %476 = vector.shape_cast %475 : vector<1x8x32xbf16> to vector<8x32xbf16>
      %c0_274 = arith.constant 0 : index
      %c0_275 = arith.constant 0 : index
      %477 = vector.load %arg12[%c0_274, %c0_275] : memref<8x64xbf16, #tpu.memory_space<vmem>>, vector<8x32xbf16>
      tpu.vector_store %arg12[%c0_274, %c0_275], %476 {strides = array<i32>} : memref<8x64xbf16, #tpu.memory_space<vmem>>, vector<8x32xbf16>,
    } else {
    }
    %c2_i32_156 = arith.constant 2 : i32
    %c0_157 = arith.constant 0 : index
    %c0_158 = arith.constant 0 : index
    %268 = vector.load %arg12[%c0_157, %c0_158] : memref<8x64xbf16, #tpu.memory_space<vmem>>, vector<8x64xbf16>
    %c0_159 = arith.constant 0 : index
    %c0_160 = arith.constant 0 : index
    %269 = vector.load %arg6[%c0_159, %c0_160] : memref<64x128xbf16, #tpu.memory_space<vmem>>, vector<64x128xbf16>
    %cst_161 = arith.constant dense<0.000000e+00> : vector<8x128xf32>
    %270 = tpu.matmul %268, %269, %cst_161 {dimension_numbers = #tpu.dot_dimension_numbers<[1], [0], [0], [1], [0, 0, 1, 1], [], []>} : vector<8x64xbf16>, vector<64x128xbf16>, vector<8x128xf32> -> vector<8x128xf32>
    %271 = arith.addf %270, %5 : vector<8x128xf32>
    %272 = vector.extract_strided_slice %271 {offsets = [0, 0], sizes = [8, 96], strides = [1, 1]} : vector<8x128xf32> to vector<8x96xf32>
    %273 = arith.negf %272 : vector<8x96xf32>
    %274 = math.exp %273 : vector<8x96xf32>
    %cst_162 = arith.constant 1.000000e+00 : f32
    %275 = vector.broadcast %cst_162 : f32 to vector<8x96xf32>
    %276 = arith.addf %275, %274 : vector<8x96xf32>
    %277 = arith.divf %275, %276 : vector<8x96xf32>
    %278 = vector.extract_strided_slice %277 {offsets = [0, 0], sizes = [8, 32], strides = [1, 1]} : vector<8x96xf32> to vector<8x32xf32>
    %279 = vector.extract_strided_slice %277 {offsets = [0, 32], sizes = [8, 32], strides = [1, 1]} : vector<8x96xf32> to vector<8x32xf32>
    %280 = vector.extract_strided_slice %277 {offsets = [0, 64], sizes = [8, 32], strides = [1, 1]} : vector<8x96xf32> to vector<8x32xf32>
    %281 = vector.extract_strided_slice %271 {offsets = [0, 96], sizes = [8, 32], strides = [1, 1]} : vector<8x128xf32> to vector<8x32xf32>
    %282 = math.tanh %281 : vector<8x32xf32>
    %c0_163 = arith.constant 0 : index
    %c0_164 = arith.constant 0 : index
    %283 = vector.load %arg13[%c0_163, %c0_164] : memref<8x32xf32, #tpu.memory_space<vmem>>, vector<8x32xf32>
    %284 = arith.mulf %279, %283 : vector<8x32xf32>
    %285 = arith.mulf %278, %282 : vector<8x32xf32>
    %286 = arith.addf %284, %285 : vector<8x32xf32>
    %287 = math.tanh %286 : vector<8x32xf32>
    %288 = arith.mulf %280, %287 : vector<8x32xf32>
    %c0_165 = arith.constant 0 : index
    %c0_166 = arith.constant 0 : index
    %289 = vector.load %arg13[%c0_165, %c0_166] : memref<8x32xf32, #tpu.memory_space<vmem>>, vector<8x32xf32>
    tpu.vector_store %arg13[%c0_165, %c0_166], %286 {strides = array<i32>} : memref<8x32xf32, #tpu.memory_space<vmem>>, vector<8x32xf32>,
    %290 = arith.truncf %288 : vector<8x32xf32> to vector<8x32xbf16>
    %c0_167 = arith.constant 0 : index
    %c32_168 = arith.constant 32 : index
    %291 = vector.load %arg12[%c0_167, %c32_168] : memref<8x64xbf16, #tpu.memory_space<vmem>>, vector<8x32xbf16>
    tpu.vector_store %arg12[%c0_167, %c32_168], %290 {strides = array<i32>} : memref<8x64xbf16, #tpu.memory_space<vmem>>, vector<8x32xbf16>,
    %292 = arith.truncf %288 : vector<8x32xf32> to vector<8x32xbf16>
    %c0_169 = arith.constant 0 : index
    %c0_170 = arith.constant 0 : index
    %293 = vector.load %arg8[%c0_169, %c0_170] : memref<32x128xbf16, #tpu.memory_space<vmem>>, vector<32x128xbf16>
    %cst_171 = arith.constant dense<0.000000e+00> : vector<8x128xf32>
    %294 = tpu.matmul %292, %293, %cst_171 {dimension_numbers = #tpu.dot_dimension_numbers<[1], [0], [0], [1], [0, 0, 1, 1], [], []>} : vector<8x32xbf16>, vector<32x128xbf16>, vector<8x128xf32> -> vector<8x128xf32>
    %295 = arith.addf %294, %8 : vector<8x128xf32>
    %296 = arith.index_cast %c2_i32_156 : i32 to index
    %c0_172 = arith.constant 0 : index
    %c0_173 = arith.constant 0 : index
    %297 = vector.load %arg11[%296, %c0_172, %c0_173] : memref<7x8x128xf32, #tpu.memory_space<vmem>>, vector<1x8x128xf32>
    %298 = vector.shape_cast %297 : vector<1x8x128xf32> to vector<8x128xf32>
    %299 = vector.shape_cast %295 : vector<8x128xf32> to vector<1x8x128xf32>
    tpu.vector_store %arg11[%296, %c0_172, %c0_173], %299 {strides = array<i32>} : memref<7x8x128xf32, #tpu.memory_space<vmem>>, vector<1x8x128xf32>,
    %c1_i32_174 = arith.constant 1 : i32
    %300 = arith.addi %c2_i32_156, %c1_i32_174 : i32
    %301 = arith.index_cast %300 : i32 to index
    %302 = memref.load %arg1[%301] : memref<8xi32, #tpu.memory_space<smem>>
    %c0_i32_175 = arith.constant 0 : i32
    %303 = arith.cmpi eq, %302, %c0_i32_175 : i32
    %304 = arith.extui %303 : i1 to i32
    %c0_i32_176 = arith.constant 0 : i32
    %305 = arith.cmpi ne, %304, %c0_i32_176 : i32
    scf.if %305 {
      %cst_271 = arith.constant dense<0xFF800000> : vector<8xf32>
      %473 = vector.multi_reduction <maximumf>, %295, %cst_271 [1] : vector<8x128xf32> to vector<8xf32>
      %474 = vector.shape_cast %473 : vector<8xf32> to vector<8x1xf32>
      %475 = vector.broadcast %474 : vector<8x1xf32> to vector<8x128xf32>
      %476 = arith.cmpf oeq, %295, %475 : vector<8x128xf32>
      %c128_i32 = arith.constant 128 : i32
      %477 = vector.broadcast %c128_i32 : i32 to vector<8x128xi32>
      %478 = arith.select %476, %9, %477 : vector<8x128xi1>, vector<8x128xi32>
      %cst_272 = arith.constant dense<2147483647> : vector<8xi32>
      %479 = vector.multi_reduction <minsi>, %478, %cst_272 [1] : vector<8x128xi32> to vector<8xi32>
      %480 = vector.shape_cast %479 : vector<8xi32> to vector<8x1xi32>
      %481 = vector.broadcast %480 : vector<8x1xi32> to vector<8x16xi32>
      %482 = arith.cmpi eq, %10, %481 : vector<8x16xi32>
      %483 = arith.extui %482 : vector<8x16xi1> to vector<8x16xi32>
      %484 = arith.sitofp %483 : vector<8x16xi32> to vector<8x16xf32>
      %485 = arith.truncf %484 : vector<8x16xf32> to vector<8x16xbf16>
      %c0_273 = arith.constant 0 : index
      %c0_274 = arith.constant 0 : index
      %486 = vector.load %arg10[%c0_273, %c0_274] : memref<16x32xbf16, #tpu.memory_space<vmem>>, vector<16x32xbf16>
      %cst_275 = arith.constant dense<0.000000e+00> : vector<8x32xf32>
      %487 = tpu.matmul %485, %486, %cst_275 {dimension_numbers = #tpu.dot_dimension_numbers<[1], [0], [0], [1], [0, 0, 1, 1], [], []>} : vector<8x16xbf16>, vector<16x32xbf16>, vector<8x32xf32> -> vector<8x32xf32>
      %488 = arith.truncf %487 : vector<8x32xf32> to vector<8x32xbf16>
      %c0_276 = arith.constant 0 : index
      %c0_277 = arith.constant 0 : index
      %489 = vector.load %arg12[%c0_276, %c0_277] : memref<8x64xbf16, #tpu.memory_space<vmem>>, vector<8x32xbf16>
      tpu.vector_store %arg12[%c0_276, %c0_277], %488 {strides = array<i32>} : memref<8x64xbf16, #tpu.memory_space<vmem>>, vector<8x32xbf16>,
    } else {
    }
    %c0_i32_177 = arith.constant 0 : i32
    %306 = arith.cmpi ne, %302, %c0_i32_177 : i32
    %307 = arith.extui %306 : i1 to i32
    %c0_i32_178 = arith.constant 0 : i32
    %308 = arith.cmpi ne, %307, %c0_i32_178 : i32
    scf.if %308 {
      %c1_i32_271 = arith.constant 1 : i32
      %473 = arith.addi %c2_i32_156, %c1_i32_271 : i32
      %474 = arith.index_cast %473 : i32 to index
      %c0_272 = arith.constant 0 : index
      %c0_273 = arith.constant 0 : index
      %475 = vector.load %arg3[%474, %c0_272, %c0_273] : memref<8x8x32xbf16, #tpu.memory_space<vmem>>, vector<1x8x32xbf16>
      %476 = vector.shape_cast %475 : vector<1x8x32xbf16> to vector<8x32xbf16>
      %c0_274 = arith.constant 0 : index
      %c0_275 = arith.constant 0 : index
      %477 = vector.load %arg12[%c0_274, %c0_275] : memref<8x64xbf16, #tpu.memory_space<vmem>>, vector<8x32xbf16>
      tpu.vector_store %arg12[%c0_274, %c0_275], %476 {strides = array<i32>} : memref<8x64xbf16, #tpu.memory_space<vmem>>, vector<8x32xbf16>,
    } else {
    }
    %c3_i32_179 = arith.constant 3 : i32
    %c0_180 = arith.constant 0 : index
    %c0_181 = arith.constant 0 : index
    %309 = vector.load %arg12[%c0_180, %c0_181] : memref<8x64xbf16, #tpu.memory_space<vmem>>, vector<8x64xbf16>
    %c0_182 = arith.constant 0 : index
    %c0_183 = arith.constant 0 : index
    %310 = vector.load %arg6[%c0_182, %c0_183] : memref<64x128xbf16, #tpu.memory_space<vmem>>, vector<64x128xbf16>
    %cst_184 = arith.constant dense<0.000000e+00> : vector<8x128xf32>
    %311 = tpu.matmul %309, %310, %cst_184 {dimension_numbers = #tpu.dot_dimension_numbers<[1], [0], [0], [1], [0, 0, 1, 1], [], []>} : vector<8x64xbf16>, vector<64x128xbf16>, vector<8x128xf32> -> vector<8x128xf32>
    %312 = arith.addf %311, %5 : vector<8x128xf32>
    %313 = vector.extract_strided_slice %312 {offsets = [0, 0], sizes = [8, 96], strides = [1, 1]} : vector<8x128xf32> to vector<8x96xf32>
    %314 = arith.negf %313 : vector<8x96xf32>
    %315 = math.exp %314 : vector<8x96xf32>
    %cst_185 = arith.constant 1.000000e+00 : f32
    %316 = vector.broadcast %cst_185 : f32 to vector<8x96xf32>
    %317 = arith.addf %316, %315 : vector<8x96xf32>
    %318 = arith.divf %316, %317 : vector<8x96xf32>
    %319 = vector.extract_strided_slice %318 {offsets = [0, 0], sizes = [8, 32], strides = [1, 1]} : vector<8x96xf32> to vector<8x32xf32>
    %320 = vector.extract_strided_slice %318 {offsets = [0, 32], sizes = [8, 32], strides = [1, 1]} : vector<8x96xf32> to vector<8x32xf32>
    %321 = vector.extract_strided_slice %318 {offsets = [0, 64], sizes = [8, 32], strides = [1, 1]} : vector<8x96xf32> to vector<8x32xf32>
    %322 = vector.extract_strided_slice %312 {offsets = [0, 96], sizes = [8, 32], strides = [1, 1]} : vector<8x128xf32> to vector<8x32xf32>
    %323 = math.tanh %322 : vector<8x32xf32>
    %c0_186 = arith.constant 0 : index
    %c0_187 = arith.constant 0 : index
    %324 = vector.load %arg13[%c0_186, %c0_187] : memref<8x32xf32, #tpu.memory_space<vmem>>, vector<8x32xf32>
    %325 = arith.mulf %320, %324 : vector<8x32xf32>
    %326 = arith.mulf %319, %323 : vector<8x32xf32>
    %327 = arith.addf %325, %326 : vector<8x32xf32>
    %328 = math.tanh %327 : vector<8x32xf32>
    %329 = arith.mulf %321, %328 : vector<8x32xf32>
    %c0_188 = arith.constant 0 : index
    %c0_189 = arith.constant 0 : index
    %330 = vector.load %arg13[%c0_188, %c0_189] : memref<8x32xf32, #tpu.memory_space<vmem>>, vector<8x32xf32>
    tpu.vector_store %arg13[%c0_188, %c0_189], %327 {strides = array<i32>} : memref<8x32xf32, #tpu.memory_space<vmem>>, vector<8x32xf32>,
    %331 = arith.truncf %329 : vector<8x32xf32> to vector<8x32xbf16>
    %c0_190 = arith.constant 0 : index
    %c32_191 = arith.constant 32 : index
    %332 = vector.load %arg12[%c0_190, %c32_191] : memref<8x64xbf16, #tpu.memory_space<vmem>>, vector<8x32xbf16>
    tpu.vector_store %arg12[%c0_190, %c32_191], %331 {strides = array<i32>} : memref<8x64xbf16, #tpu.memory_space<vmem>>, vector<8x32xbf16>,
    %333 = arith.truncf %329 : vector<8x32xf32> to vector<8x32xbf16>
    %c0_192 = arith.constant 0 : index
    %c0_193 = arith.constant 0 : index
    %334 = vector.load %arg8[%c0_192, %c0_193] : memref<32x128xbf16, #tpu.memory_space<vmem>>, vector<32x128xbf16>
    %cst_194 = arith.constant dense<0.000000e+00> : vector<8x128xf32>
    %335 = tpu.matmul %333, %334, %cst_194 {dimension_numbers = #tpu.dot_dimension_numbers<[1], [0], [0], [1], [0, 0, 1, 1], [], []>} : vector<8x32xbf16>, vector<32x128xbf16>, vector<8x128xf32> -> vector<8x128xf32>
    %336 = arith.addf %335, %8 : vector<8x128xf32>
    %337 = arith.index_cast %c3_i32_179 : i32 to index
    %c0_195 = arith.constant 0 : index
    %c0_196 = arith.constant 0 : index
    %338 = vector.load %arg11[%337, %c0_195, %c0_196] : memref<7x8x128xf32, #tpu.memory_space<vmem>>, vector<1x8x128xf32>
    %339 = vector.shape_cast %338 : vector<1x8x128xf32> to vector<8x128xf32>
    %340 = vector.shape_cast %336 : vector<8x128xf32> to vector<1x8x128xf32>
    tpu.vector_store %arg11[%337, %c0_195, %c0_196], %340 {strides = array<i32>} : memref<7x8x128xf32, #tpu.memory_space<vmem>>, vector<1x8x128xf32>,
    %c1_i32_197 = arith.constant 1 : i32
    %341 = arith.addi %c3_i32_179, %c1_i32_197 : i32
    %342 = arith.index_cast %341 : i32 to index
    %343 = memref.load %arg1[%342] : memref<8xi32, #tpu.memory_space<smem>>
    %c0_i32_198 = arith.constant 0 : i32
    %344 = arith.cmpi eq, %343, %c0_i32_198 : i32
    %345 = arith.extui %344 : i1 to i32
    %c0_i32_199 = arith.constant 0 : i32
    %346 = arith.cmpi ne, %345, %c0_i32_199 : i32
    scf.if %346 {
      %cst_271 = arith.constant dense<0xFF800000> : vector<8xf32>
      %473 = vector.multi_reduction <maximumf>, %336, %cst_271 [1] : vector<8x128xf32> to vector<8xf32>
      %474 = vector.shape_cast %473 : vector<8xf32> to vector<8x1xf32>
      %475 = vector.broadcast %474 : vector<8x1xf32> to vector<8x128xf32>
      %476 = arith.cmpf oeq, %336, %475 : vector<8x128xf32>
      %c128_i32 = arith.constant 128 : i32
      %477 = vector.broadcast %c128_i32 : i32 to vector<8x128xi32>
      %478 = arith.select %476, %9, %477 : vector<8x128xi1>, vector<8x128xi32>
      %cst_272 = arith.constant dense<2147483647> : vector<8xi32>
      %479 = vector.multi_reduction <minsi>, %478, %cst_272 [1] : vector<8x128xi32> to vector<8xi32>
      %480 = vector.shape_cast %479 : vector<8xi32> to vector<8x1xi32>
      %481 = vector.broadcast %480 : vector<8x1xi32> to vector<8x16xi32>
      %482 = arith.cmpi eq, %10, %481 : vector<8x16xi32>
      %483 = arith.extui %482 : vector<8x16xi1> to vector<8x16xi32>
      %484 = arith.sitofp %483 : vector<8x16xi32> to vector<8x16xf32>
      %485 = arith.truncf %484 : vector<8x16xf32> to vector<8x16xbf16>
      %c0_273 = arith.constant 0 : index
      %c0_274 = arith.constant 0 : index
      %486 = vector.load %arg10[%c0_273, %c0_274] : memref<16x32xbf16, #tpu.memory_space<vmem>>, vector<16x32xbf16>
      %cst_275 = arith.constant dense<0.000000e+00> : vector<8x32xf32>
      %487 = tpu.matmul %485, %486, %cst_275 {dimension_numbers = #tpu.dot_dimension_numbers<[1], [0], [0], [1], [0, 0, 1, 1], [], []>} : vector<8x16xbf16>, vector<16x32xbf16>, vector<8x32xf32> -> vector<8x32xf32>
      %488 = arith.truncf %487 : vector<8x32xf32> to vector<8x32xbf16>
      %c0_276 = arith.constant 0 : index
      %c0_277 = arith.constant 0 : index
      %489 = vector.load %arg12[%c0_276, %c0_277] : memref<8x64xbf16, #tpu.memory_space<vmem>>, vector<8x32xbf16>
      tpu.vector_store %arg12[%c0_276, %c0_277], %488 {strides = array<i32>} : memref<8x64xbf16, #tpu.memory_space<vmem>>, vector<8x32xbf16>,
    } else {
    }
    %c0_i32_200 = arith.constant 0 : i32
    %347 = arith.cmpi ne, %343, %c0_i32_200 : i32
    %348 = arith.extui %347 : i1 to i32
    %c0_i32_201 = arith.constant 0 : i32
    %349 = arith.cmpi ne, %348, %c0_i32_201 : i32
    scf.if %349 {
      %c1_i32_271 = arith.constant 1 : i32
      %473 = arith.addi %c3_i32_179, %c1_i32_271 : i32
      %474 = arith.index_cast %473 : i32 to index
      %c0_272 = arith.constant 0 : index
      %c0_273 = arith.constant 0 : index
      %475 = vector.load %arg3[%474, %c0_272, %c0_273] : memref<8x8x32xbf16, #tpu.memory_space<vmem>>, vector<1x8x32xbf16>
      %476 = vector.shape_cast %475 : vector<1x8x32xbf16> to vector<8x32xbf16>
      %c0_274 = arith.constant 0 : index
      %c0_275 = arith.constant 0 : index
      %477 = vector.load %arg12[%c0_274, %c0_275] : memref<8x64xbf16, #tpu.memory_space<vmem>>, vector<8x32xbf16>
      tpu.vector_store %arg12[%c0_274, %c0_275], %476 {strides = array<i32>} : memref<8x64xbf16, #tpu.memory_space<vmem>>, vector<8x32xbf16>,
    } else {
    }
    %c4_i32_202 = arith.constant 4 : i32
    %c0_203 = arith.constant 0 : index
    %c0_204 = arith.constant 0 : index
    %350 = vector.load %arg12[%c0_203, %c0_204] : memref<8x64xbf16, #tpu.memory_space<vmem>>, vector<8x64xbf16>
    %c0_205 = arith.constant 0 : index
    %c0_206 = arith.constant 0 : index
    %351 = vector.load %arg6[%c0_205, %c0_206] : memref<64x128xbf16, #tpu.memory_space<vmem>>, vector<64x128xbf16>
    %cst_207 = arith.constant dense<0.000000e+00> : vector<8x128xf32>
    %352 = tpu.matmul %350, %351, %cst_207 {dimension_numbers = #tpu.dot_dimension_numbers<[1], [0], [0], [1], [0, 0, 1, 1], [], []>} : vector<8x64xbf16>, vector<64x128xbf16>, vector<8x128xf32> -> vector<8x128xf32>
    %353 = arith.addf %352, %5 : vector<8x128xf32>
    %354 = vector.extract_strided_slice %353 {offsets = [0, 0], sizes = [8, 96], strides = [1, 1]} : vector<8x128xf32> to vector<8x96xf32>
    %355 = arith.negf %354 : vector<8x96xf32>
    %356 = math.exp %355 : vector<8x96xf32>
    %cst_208 = arith.constant 1.000000e+00 : f32
    %357 = vector.broadcast %cst_208 : f32 to vector<8x96xf32>
    %358 = arith.addf %357, %356 : vector<8x96xf32>
    %359 = arith.divf %357, %358 : vector<8x96xf32>
    %360 = vector.extract_strided_slice %359 {offsets = [0, 0], sizes = [8, 32], strides = [1, 1]} : vector<8x96xf32> to vector<8x32xf32>
    %361 = vector.extract_strided_slice %359 {offsets = [0, 32], sizes = [8, 32], strides = [1, 1]} : vector<8x96xf32> to vector<8x32xf32>
    %362 = vector.extract_strided_slice %359 {offsets = [0, 64], sizes = [8, 32], strides = [1, 1]} : vector<8x96xf32> to vector<8x32xf32>
    %363 = vector.extract_strided_slice %353 {offsets = [0, 96], sizes = [8, 32], strides = [1, 1]} : vector<8x128xf32> to vector<8x32xf32>
    %364 = math.tanh %363 : vector<8x32xf32>
    %c0_209 = arith.constant 0 : index
    %c0_210 = arith.constant 0 : index
    %365 = vector.load %arg13[%c0_209, %c0_210] : memref<8x32xf32, #tpu.memory_space<vmem>>, vector<8x32xf32>
    %366 = arith.mulf %361, %365 : vector<8x32xf32>
    %367 = arith.mulf %360, %364 : vector<8x32xf32>
    %368 = arith.addf %366, %367 : vector<8x32xf32>
    %369 = math.tanh %368 : vector<8x32xf32>
    %370 = arith.mulf %362, %369 : vector<8x32xf32>
    %c0_211 = arith.constant 0 : index
    %c0_212 = arith.constant 0 : index
    %371 = vector.load %arg13[%c0_211, %c0_212] : memref<8x32xf32, #tpu.memory_space<vmem>>, vector<8x32xf32>
    tpu.vector_store %arg13[%c0_211, %c0_212], %368 {strides = array<i32>} : memref<8x32xf32, #tpu.memory_space<vmem>>, vector<8x32xf32>,
    %372 = arith.truncf %370 : vector<8x32xf32> to vector<8x32xbf16>
    %c0_213 = arith.constant 0 : index
    %c32_214 = arith.constant 32 : index
    %373 = vector.load %arg12[%c0_213, %c32_214] : memref<8x64xbf16, #tpu.memory_space<vmem>>, vector<8x32xbf16>
    tpu.vector_store %arg12[%c0_213, %c32_214], %372 {strides = array<i32>} : memref<8x64xbf16, #tpu.memory_space<vmem>>, vector<8x32xbf16>,
    %374 = arith.truncf %370 : vector<8x32xf32> to vector<8x32xbf16>
    %c0_215 = arith.constant 0 : index
    %c0_216 = arith.constant 0 : index
    %375 = vector.load %arg8[%c0_215, %c0_216] : memref<32x128xbf16, #tpu.memory_space<vmem>>, vector<32x128xbf16>
    %cst_217 = arith.constant dense<0.000000e+00> : vector<8x128xf32>
    %376 = tpu.matmul %374, %375, %cst_217 {dimension_numbers = #tpu.dot_dimension_numbers<[1], [0], [0], [1], [0, 0, 1, 1], [], []>} : vector<8x32xbf16>, vector<32x128xbf16>, vector<8x128xf32> -> vector<8x128xf32>
    %377 = arith.addf %376, %8 : vector<8x128xf32>
    %378 = arith.index_cast %c4_i32_202 : i32 to index
    %c0_218 = arith.constant 0 : index
    %c0_219 = arith.constant 0 : index
    %379 = vector.load %arg11[%378, %c0_218, %c0_219] : memref<7x8x128xf32, #tpu.memory_space<vmem>>, vector<1x8x128xf32>
    %380 = vector.shape_cast %379 : vector<1x8x128xf32> to vector<8x128xf32>
    %381 = vector.shape_cast %377 : vector<8x128xf32> to vector<1x8x128xf32>
    tpu.vector_store %arg11[%378, %c0_218, %c0_219], %381 {strides = array<i32>} : memref<7x8x128xf32, #tpu.memory_space<vmem>>, vector<1x8x128xf32>,
    %c1_i32_220 = arith.constant 1 : i32
    %382 = arith.addi %c4_i32_202, %c1_i32_220 : i32
    %383 = arith.index_cast %382 : i32 to index
    %384 = memref.load %arg1[%383] : memref<8xi32, #tpu.memory_space<smem>>
    %c0_i32_221 = arith.constant 0 : i32
    %385 = arith.cmpi eq, %384, %c0_i32_221 : i32
    %386 = arith.extui %385 : i1 to i32
    %c0_i32_222 = arith.constant 0 : i32
    %387 = arith.cmpi ne, %386, %c0_i32_222 : i32
    scf.if %387 {
      %cst_271 = arith.constant dense<0xFF800000> : vector<8xf32>
      %473 = vector.multi_reduction <maximumf>, %377, %cst_271 [1] : vector<8x128xf32> to vector<8xf32>
      %474 = vector.shape_cast %473 : vector<8xf32> to vector<8x1xf32>
      %475 = vector.broadcast %474 : vector<8x1xf32> to vector<8x128xf32>
      %476 = arith.cmpf oeq, %377, %475 : vector<8x128xf32>
      %c128_i32 = arith.constant 128 : i32
      %477 = vector.broadcast %c128_i32 : i32 to vector<8x128xi32>
      %478 = arith.select %476, %9, %477 : vector<8x128xi1>, vector<8x128xi32>
      %cst_272 = arith.constant dense<2147483647> : vector<8xi32>
      %479 = vector.multi_reduction <minsi>, %478, %cst_272 [1] : vector<8x128xi32> to vector<8xi32>
      %480 = vector.shape_cast %479 : vector<8xi32> to vector<8x1xi32>
      %481 = vector.broadcast %480 : vector<8x1xi32> to vector<8x16xi32>
      %482 = arith.cmpi eq, %10, %481 : vector<8x16xi32>
      %483 = arith.extui %482 : vector<8x16xi1> to vector<8x16xi32>
      %484 = arith.sitofp %483 : vector<8x16xi32> to vector<8x16xf32>
      %485 = arith.truncf %484 : vector<8x16xf32> to vector<8x16xbf16>
      %c0_273 = arith.constant 0 : index
      %c0_274 = arith.constant 0 : index
      %486 = vector.load %arg10[%c0_273, %c0_274] : memref<16x32xbf16, #tpu.memory_space<vmem>>, vector<16x32xbf16>
      %cst_275 = arith.constant dense<0.000000e+00> : vector<8x32xf32>
      %487 = tpu.matmul %485, %486, %cst_275 {dimension_numbers = #tpu.dot_dimension_numbers<[1], [0], [0], [1], [0, 0, 1, 1], [], []>} : vector<8x16xbf16>, vector<16x32xbf16>, vector<8x32xf32> -> vector<8x32xf32>
      %488 = arith.truncf %487 : vector<8x32xf32> to vector<8x32xbf16>
      %c0_276 = arith.constant 0 : index
      %c0_277 = arith.constant 0 : index
      %489 = vector.load %arg12[%c0_276, %c0_277] : memref<8x64xbf16, #tpu.memory_space<vmem>>, vector<8x32xbf16>
      tpu.vector_store %arg12[%c0_276, %c0_277], %488 {strides = array<i32>} : memref<8x64xbf16, #tpu.memory_space<vmem>>, vector<8x32xbf16>,
    } else {
    }
    %c0_i32_223 = arith.constant 0 : i32
    %388 = arith.cmpi ne, %384, %c0_i32_223 : i32
    %389 = arith.extui %388 : i1 to i32
    %c0_i32_224 = arith.constant 0 : i32
    %390 = arith.cmpi ne, %389, %c0_i32_224 : i32
    scf.if %390 {
      %c1_i32_271 = arith.constant 1 : i32
      %473 = arith.addi %c4_i32_202, %c1_i32_271 : i32
      %474 = arith.index_cast %473 : i32 to index
      %c0_272 = arith.constant 0 : index
      %c0_273 = arith.constant 0 : index
      %475 = vector.load %arg3[%474, %c0_272, %c0_273] : memref<8x8x32xbf16, #tpu.memory_space<vmem>>, vector<1x8x32xbf16>
      %476 = vector.shape_cast %475 : vector<1x8x32xbf16> to vector<8x32xbf16>
      %c0_274 = arith.constant 0 : index
      %c0_275 = arith.constant 0 : index
      %477 = vector.load %arg12[%c0_274, %c0_275] : memref<8x64xbf16, #tpu.memory_space<vmem>>, vector<8x32xbf16>
      tpu.vector_store %arg12[%c0_274, %c0_275], %476 {strides = array<i32>} : memref<8x64xbf16, #tpu.memory_space<vmem>>, vector<8x32xbf16>,
    } else {
    }
    %c5_i32_225 = arith.constant 5 : i32
    %c0_226 = arith.constant 0 : index
    %c0_227 = arith.constant 0 : index
    %391 = vector.load %arg12[%c0_226, %c0_227] : memref<8x64xbf16, #tpu.memory_space<vmem>>, vector<8x64xbf16>
    %c0_228 = arith.constant 0 : index
    %c0_229 = arith.constant 0 : index
    %392 = vector.load %arg6[%c0_228, %c0_229] : memref<64x128xbf16, #tpu.memory_space<vmem>>, vector<64x128xbf16>
    %cst_230 = arith.constant dense<0.000000e+00> : vector<8x128xf32>
    %393 = tpu.matmul %391, %392, %cst_230 {dimension_numbers = #tpu.dot_dimension_numbers<[1], [0], [0], [1], [0, 0, 1, 1], [], []>} : vector<8x64xbf16>, vector<64x128xbf16>, vector<8x128xf32> -> vector<8x128xf32>
    %394 = arith.addf %393, %5 : vector<8x128xf32>
    %395 = vector.extract_strided_slice %394 {offsets = [0, 0], sizes = [8, 96], strides = [1, 1]} : vector<8x128xf32> to vector<8x96xf32>
    %396 = arith.negf %395 : vector<8x96xf32>
    %397 = math.exp %396 : vector<8x96xf32>
    %cst_231 = arith.constant 1.000000e+00 : f32
    %398 = vector.broadcast %cst_231 : f32 to vector<8x96xf32>
    %399 = arith.addf %398, %397 : vector<8x96xf32>
    %400 = arith.divf %398, %399 : vector<8x96xf32>
    %401 = vector.extract_strided_slice %400 {offsets = [0, 0], sizes = [8, 32], strides = [1, 1]} : vector<8x96xf32> to vector<8x32xf32>
    %402 = vector.extract_strided_slice %400 {offsets = [0, 32], sizes = [8, 32], strides = [1, 1]} : vector<8x96xf32> to vector<8x32xf32>
    %403 = vector.extract_strided_slice %400 {offsets = [0, 64], sizes = [8, 32], strides = [1, 1]} : vector<8x96xf32> to vector<8x32xf32>
    %404 = vector.extract_strided_slice %394 {offsets = [0, 96], sizes = [8, 32], strides = [1, 1]} : vector<8x128xf32> to vector<8x32xf32>
    %405 = math.tanh %404 : vector<8x32xf32>
    %c0_232 = arith.constant 0 : index
    %c0_233 = arith.constant 0 : index
    %406 = vector.load %arg13[%c0_232, %c0_233] : memref<8x32xf32, #tpu.memory_space<vmem>>, vector<8x32xf32>
    %407 = arith.mulf %402, %406 : vector<8x32xf32>
    %408 = arith.mulf %401, %405 : vector<8x32xf32>
    %409 = arith.addf %407, %408 : vector<8x32xf32>
    %410 = math.tanh %409 : vector<8x32xf32>
    %411 = arith.mulf %403, %410 : vector<8x32xf32>
    %c0_234 = arith.constant 0 : index
    %c0_235 = arith.constant 0 : index
    %412 = vector.load %arg13[%c0_234, %c0_235] : memref<8x32xf32, #tpu.memory_space<vmem>>, vector<8x32xf32>
    tpu.vector_store %arg13[%c0_234, %c0_235], %409 {strides = array<i32>} : memref<8x32xf32, #tpu.memory_space<vmem>>, vector<8x32xf32>,
    %413 = arith.truncf %411 : vector<8x32xf32> to vector<8x32xbf16>
    %c0_236 = arith.constant 0 : index
    %c32_237 = arith.constant 32 : index
    %414 = vector.load %arg12[%c0_236, %c32_237] : memref<8x64xbf16, #tpu.memory_space<vmem>>, vector<8x32xbf16>
    tpu.vector_store %arg12[%c0_236, %c32_237], %413 {strides = array<i32>} : memref<8x64xbf16, #tpu.memory_space<vmem>>, vector<8x32xbf16>,
    %415 = arith.truncf %411 : vector<8x32xf32> to vector<8x32xbf16>
    %c0_238 = arith.constant 0 : index
    %c0_239 = arith.constant 0 : index
    %416 = vector.load %arg8[%c0_238, %c0_239] : memref<32x128xbf16, #tpu.memory_space<vmem>>, vector<32x128xbf16>
    %cst_240 = arith.constant dense<0.000000e+00> : vector<8x128xf32>
    %417 = tpu.matmul %415, %416, %cst_240 {dimension_numbers = #tpu.dot_dimension_numbers<[1], [0], [0], [1], [0, 0, 1, 1], [], []>} : vector<8x32xbf16>, vector<32x128xbf16>, vector<8x128xf32> -> vector<8x128xf32>
    %418 = arith.addf %417, %8 : vector<8x128xf32>
    %419 = arith.index_cast %c5_i32_225 : i32 to index
    %c0_241 = arith.constant 0 : index
    %c0_242 = arith.constant 0 : index
    %420 = vector.load %arg11[%419, %c0_241, %c0_242] : memref<7x8x128xf32, #tpu.memory_space<vmem>>, vector<1x8x128xf32>
    %421 = vector.shape_cast %420 : vector<1x8x128xf32> to vector<8x128xf32>
    %422 = vector.shape_cast %418 : vector<8x128xf32> to vector<1x8x128xf32>
    tpu.vector_store %arg11[%419, %c0_241, %c0_242], %422 {strides = array<i32>} : memref<7x8x128xf32, #tpu.memory_space<vmem>>, vector<1x8x128xf32>,
    %c1_i32_243 = arith.constant 1 : i32
    %423 = arith.addi %c5_i32_225, %c1_i32_243 : i32
    %424 = arith.index_cast %423 : i32 to index
    %425 = memref.load %arg1[%424] : memref<8xi32, #tpu.memory_space<smem>>
    %c0_i32_244 = arith.constant 0 : i32
    %426 = arith.cmpi eq, %425, %c0_i32_244 : i32
    %427 = arith.extui %426 : i1 to i32
    %c0_i32_245 = arith.constant 0 : i32
    %428 = arith.cmpi ne, %427, %c0_i32_245 : i32
    scf.if %428 {
      %cst_271 = arith.constant dense<0xFF800000> : vector<8xf32>
      %473 = vector.multi_reduction <maximumf>, %418, %cst_271 [1] : vector<8x128xf32> to vector<8xf32>
      %474 = vector.shape_cast %473 : vector<8xf32> to vector<8x1xf32>
      %475 = vector.broadcast %474 : vector<8x1xf32> to vector<8x128xf32>
      %476 = arith.cmpf oeq, %418, %475 : vector<8x128xf32>
      %c128_i32 = arith.constant 128 : i32
      %477 = vector.broadcast %c128_i32 : i32 to vector<8x128xi32>
      %478 = arith.select %476, %9, %477 : vector<8x128xi1>, vector<8x128xi32>
      %cst_272 = arith.constant dense<2147483647> : vector<8xi32>
      %479 = vector.multi_reduction <minsi>, %478, %cst_272 [1] : vector<8x128xi32> to vector<8xi32>
      %480 = vector.shape_cast %479 : vector<8xi32> to vector<8x1xi32>
      %481 = vector.broadcast %480 : vector<8x1xi32> to vector<8x16xi32>
      %482 = arith.cmpi eq, %10, %481 : vector<8x16xi32>
      %483 = arith.extui %482 : vector<8x16xi1> to vector<8x16xi32>
      %484 = arith.sitofp %483 : vector<8x16xi32> to vector<8x16xf32>
      %485 = arith.truncf %484 : vector<8x16xf32> to vector<8x16xbf16>
      %c0_273 = arith.constant 0 : index
      %c0_274 = arith.constant 0 : index
      %486 = vector.load %arg10[%c0_273, %c0_274] : memref<16x32xbf16, #tpu.memory_space<vmem>>, vector<16x32xbf16>
      %cst_275 = arith.constant dense<0.000000e+00> : vector<8x32xf32>
      %487 = tpu.matmul %485, %486, %cst_275 {dimension_numbers = #tpu.dot_dimension_numbers<[1], [0], [0], [1], [0, 0, 1, 1], [], []>} : vector<8x16xbf16>, vector<16x32xbf16>, vector<8x32xf32> -> vector<8x32xf32>
      %488 = arith.truncf %487 : vector<8x32xf32> to vector<8x32xbf16>
      %c0_276 = arith.constant 0 : index
      %c0_277 = arith.constant 0 : index
      %489 = vector.load %arg12[%c0_276, %c0_277] : memref<8x64xbf16, #tpu.memory_space<vmem>>, vector<8x32xbf16>
      tpu.vector_store %arg12[%c0_276, %c0_277], %488 {strides = array<i32>} : memref<8x64xbf16, #tpu.memory_space<vmem>>, vector<8x32xbf16>,
    } else {
    }
    %c0_i32_246 = arith.constant 0 : i32
    %429 = arith.cmpi ne, %425, %c0_i32_246 : i32
    %430 = arith.extui %429 : i1 to i32
    %c0_i32_247 = arith.constant 0 : i32
    %431 = arith.cmpi ne, %430, %c0_i32_247 : i32
    scf.if %431 {
      %c1_i32_271 = arith.constant 1 : i32
      %473 = arith.addi %c5_i32_225, %c1_i32_271 : i32
      %474 = arith.index_cast %473 : i32 to index
      %c0_272 = arith.constant 0 : index
      %c0_273 = arith.constant 0 : index
      %475 = vector.load %arg3[%474, %c0_272, %c0_273] : memref<8x8x32xbf16, #tpu.memory_space<vmem>>, vector<1x8x32xbf16>
      %476 = vector.shape_cast %475 : vector<1x8x32xbf16> to vector<8x32xbf16>
      %c0_274 = arith.constant 0 : index
      %c0_275 = arith.constant 0 : index
      %477 = vector.load %arg12[%c0_274, %c0_275] : memref<8x64xbf16, #tpu.memory_space<vmem>>, vector<8x32xbf16>
      tpu.vector_store %arg12[%c0_274, %c0_275], %476 {strides = array<i32>} : memref<8x64xbf16, #tpu.memory_space<vmem>>, vector<8x32xbf16>,
    } else {
    }
    %c6_i32_248 = arith.constant 6 : i32
    %c0_249 = arith.constant 0 : index
    %c0_250 = arith.constant 0 : index
    %432 = vector.load %arg12[%c0_249, %c0_250] : memref<8x64xbf16, #tpu.memory_space<vmem>>, vector<8x64xbf16>
    %c0_251 = arith.constant 0 : index
    %c0_252 = arith.constant 0 : index
    %433 = vector.load %arg6[%c0_251, %c0_252] : memref<64x128xbf16, #tpu.memory_space<vmem>>, vector<64x128xbf16>
    %cst_253 = arith.constant dense<0.000000e+00> : vector<8x128xf32>
    %434 = tpu.matmul %432, %433, %cst_253 {dimension_numbers = #tpu.dot_dimension_numbers<[1], [0], [0], [1], [0, 0, 1, 1], [], []>} : vector<8x64xbf16>, vector<64x128xbf16>, vector<8x128xf32> -> vector<8x128xf32>
    %435 = arith.addf %434, %5 : vector<8x128xf32>
    %436 = vector.extract_strided_slice %435 {offsets = [0, 0], sizes = [8, 96], strides = [1, 1]} : vector<8x128xf32> to vector<8x96xf32>
    %437 = arith.negf %436 : vector<8x96xf32>
    %438 = math.exp %437 : vector<8x96xf32>
    %cst_254 = arith.constant 1.000000e+00 : f32
    %439 = vector.broadcast %cst_254 : f32 to vector<8x96xf32>
    %440 = arith.addf %439, %438 : vector<8x96xf32>
    %441 = arith.divf %439, %440 : vector<8x96xf32>
    %442 = vector.extract_strided_slice %441 {offsets = [0, 0], sizes = [8, 32], strides = [1, 1]} : vector<8x96xf32> to vector<8x32xf32>
    %443 = vector.extract_strided_slice %441 {offsets = [0, 32], sizes = [8, 32], strides = [1, 1]} : vector<8x96xf32> to vector<8x32xf32>
    %444 = vector.extract_strided_slice %441 {offsets = [0, 64], sizes = [8, 32], strides = [1, 1]} : vector<8x96xf32> to vector<8x32xf32>
    %445 = vector.extract_strided_slice %435 {offsets = [0, 96], sizes = [8, 32], strides = [1, 1]} : vector<8x128xf32> to vector<8x32xf32>
    %446 = math.tanh %445 : vector<8x32xf32>
    %c0_255 = arith.constant 0 : index
    %c0_256 = arith.constant 0 : index
    %447 = vector.load %arg13[%c0_255, %c0_256] : memref<8x32xf32, #tpu.memory_space<vmem>>, vector<8x32xf32>
    %448 = arith.mulf %443, %447 : vector<8x32xf32>
    %449 = arith.mulf %442, %446 : vector<8x32xf32>
    %450 = arith.addf %448, %449 : vector<8x32xf32>
    %451 = math.tanh %450 : vector<8x32xf32>
    %452 = arith.mulf %444, %451 : vector<8x32xf32>
    %c0_257 = arith.constant 0 : index
    %c0_258 = arith.constant 0 : index
    %453 = vector.load %arg13[%c0_257, %c0_258] : memref<8x32xf32, #tpu.memory_space<vmem>>, vector<8x32xf32>
    tpu.vector_store %arg13[%c0_257, %c0_258], %450 {strides = array<i32>} : memref<8x32xf32, #tpu.memory_space<vmem>>, vector<8x32xf32>,
    %454 = arith.truncf %452 : vector<8x32xf32> to vector<8x32xbf16>
    %c0_259 = arith.constant 0 : index
    %c32_260 = arith.constant 32 : index
    %455 = vector.load %arg12[%c0_259, %c32_260] : memref<8x64xbf16, #tpu.memory_space<vmem>>, vector<8x32xbf16>
    tpu.vector_store %arg12[%c0_259, %c32_260], %454 {strides = array<i32>} : memref<8x64xbf16, #tpu.memory_space<vmem>>, vector<8x32xbf16>,
    %456 = arith.truncf %452 : vector<8x32xf32> to vector<8x32xbf16>
    %c0_261 = arith.constant 0 : index
    %c0_262 = arith.constant 0 : index
    %457 = vector.load %arg8[%c0_261, %c0_262] : memref<32x128xbf16, #tpu.memory_space<vmem>>, vector<32x128xbf16>
    %cst_263 = arith.constant dense<0.000000e+00> : vector<8x128xf32>
    %458 = tpu.matmul %456, %457, %cst_263 {dimension_numbers = #tpu.dot_dimension_numbers<[1], [0], [0], [1], [0, 0, 1, 1], [], []>} : vector<8x32xbf16>, vector<32x128xbf16>, vector<8x128xf32> -> vector<8x128xf32>
    %459 = arith.addf %458, %8 : vector<8x128xf32>
    %460 = arith.index_cast %c6_i32_248 : i32 to index
    %c0_264 = arith.constant 0 : index
    %c0_265 = arith.constant 0 : index
    %461 = vector.load %arg11[%460, %c0_264, %c0_265] : memref<7x8x128xf32, #tpu.memory_space<vmem>>, vector<1x8x128xf32>
    %462 = vector.shape_cast %461 : vector<1x8x128xf32> to vector<8x128xf32>
    %463 = vector.shape_cast %459 : vector<8x128xf32> to vector<1x8x128xf32>
    tpu.vector_store %arg11[%460, %c0_264, %c0_265], %463 {strides = array<i32>} : memref<7x8x128xf32, #tpu.memory_space<vmem>>, vector<1x8x128xf32>,
    %c1_i32_266 = arith.constant 1 : i32
    %464 = arith.addi %c6_i32_248, %c1_i32_266 : i32
    %465 = arith.index_cast %464 : i32 to index
    %466 = memref.load %arg1[%465] : memref<8xi32, #tpu.memory_space<smem>>
    %c0_i32_267 = arith.constant 0 : i32
    %467 = arith.cmpi eq, %466, %c0_i32_267 : i32
    %468 = arith.extui %467 : i1 to i32
    %c0_i32_268 = arith.constant 0 : i32
    %469 = arith.cmpi ne, %468, %c0_i32_268 : i32
    scf.if %469 {
      %cst_271 = arith.constant dense<0xFF800000> : vector<8xf32>
      %473 = vector.multi_reduction <maximumf>, %459, %cst_271 [1] : vector<8x128xf32> to vector<8xf32>
      %474 = vector.shape_cast %473 : vector<8xf32> to vector<8x1xf32>
      %475 = vector.broadcast %474 : vector<8x1xf32> to vector<8x128xf32>
      %476 = arith.cmpf oeq, %459, %475 : vector<8x128xf32>
      %c128_i32 = arith.constant 128 : i32
      %477 = vector.broadcast %c128_i32 : i32 to vector<8x128xi32>
      %478 = arith.select %476, %9, %477 : vector<8x128xi1>, vector<8x128xi32>
      %cst_272 = arith.constant dense<2147483647> : vector<8xi32>
      %479 = vector.multi_reduction <minsi>, %478, %cst_272 [1] : vector<8x128xi32> to vector<8xi32>
      %480 = vector.shape_cast %479 : vector<8xi32> to vector<8x1xi32>
      %481 = vector.broadcast %480 : vector<8x1xi32> to vector<8x16xi32>
      %482 = arith.cmpi eq, %10, %481 : vector<8x16xi32>
      %483 = arith.extui %482 : vector<8x16xi1> to vector<8x16xi32>
      %484 = arith.sitofp %483 : vector<8x16xi32> to vector<8x16xf32>
      %485 = arith.truncf %484 : vector<8x16xf32> to vector<8x16xbf16>
      %c0_273 = arith.constant 0 : index
      %c0_274 = arith.constant 0 : index
      %486 = vector.load %arg10[%c0_273, %c0_274] : memref<16x32xbf16, #tpu.memory_space<vmem>>, vector<16x32xbf16>
      %cst_275 = arith.constant dense<0.000000e+00> : vector<8x32xf32>
      %487 = tpu.matmul %485, %486, %cst_275 {dimension_numbers = #tpu.dot_dimension_numbers<[1], [0], [0], [1], [0, 0, 1, 1], [], []>} : vector<8x16xbf16>, vector<16x32xbf16>, vector<8x32xf32> -> vector<8x32xf32>
      %488 = arith.truncf %487 : vector<8x32xf32> to vector<8x32xbf16>
      %c0_276 = arith.constant 0 : index
      %c0_277 = arith.constant 0 : index
      %489 = vector.load %arg12[%c0_276, %c0_277] : memref<8x64xbf16, #tpu.memory_space<vmem>>, vector<8x32xbf16>
      tpu.vector_store %arg12[%c0_276, %c0_277], %488 {strides = array<i32>} : memref<8x64xbf16, #tpu.memory_space<vmem>>, vector<8x32xbf16>,
    } else {
    }
    %c0_i32_269 = arith.constant 0 : i32
    %470 = arith.cmpi ne, %466, %c0_i32_269 : i32
    %471 = arith.extui %470 : i1 to i32
    %c0_i32_270 = arith.constant 0 : i32
    %472 = arith.cmpi ne, %471, %c0_i32_270 : i32
    scf.if %472 {
      %c1_i32_271 = arith.constant 1 : i32
      %473 = arith.addi %c6_i32_248, %c1_i32_271 : i32
      %474 = arith.index_cast %473 : i32 to index
      %c0_272 = arith.constant 0 : index
      %c0_273 = arith.constant 0 : index
      %475 = vector.load %arg3[%474, %c0_272, %c0_273] : memref<8x8x32xbf16, #tpu.memory_space<vmem>>, vector<1x8x32xbf16>
      %476 = vector.shape_cast %475 : vector<1x8x32xbf16> to vector<8x32xbf16>
      %c0_274 = arith.constant 0 : index
      %c0_275 = arith.constant 0 : index
      %477 = vector.load %arg12[%c0_274, %c0_275] : memref<8x64xbf16, #tpu.memory_space<vmem>>, vector<8x32xbf16>
      tpu.vector_store %arg12[%c0_274, %c0_275], %476 {strides = array<i32>} : memref<8x64xbf16, #tpu.memory_space<vmem>>, vector<8x32xbf16>,
    } else {
    }
    %c7_i32 = arith.constant 7 : i32
    return
  }
  func.func @transform_0(%arg0: i32, %arg1: memref<8xi32, #tpu.memory_space<smem>>) -> (i32, i32, i32) {
    %c0_i32 = arith.constant 0 : i32
    %c0_i32_0 = arith.constant 0 : i32
    %c0_i32_1 = arith.constant 0 : i32
    %c0_i32_2 = arith.constant 0 : i32
    return %c0_i32, %c0_i32_0, %c0_i32_1 : i32, i32, i32
  }
  func.func @transform_1(%arg0: i32, %arg1: memref<8xi32, #tpu.memory_space<smem>>) -> (i32, i32, i32) {
    %c0_i32 = arith.constant 0 : i32
    %c0_i32_0 = arith.constant 0 : i32
    %c0_i32_1 = arith.constant 0 : i32
    %c0_i32_2 = arith.constant 0 : i32
    return %c0_i32, %c0_i32_0, %c0_i32_1 : i32, i32, i32
  }
  func.func @transform_2(%arg0: i32, %arg1: memref<8xi32, #tpu.memory_space<smem>>) -> (i32, i32) {
    %c0_i32 = arith.constant 0 : i32
    %c0_i32_0 = arith.constant 0 : i32
    %c0_i32_1 = arith.constant 0 : i32
    return %c0_i32, %c0_i32_0 : i32, i32
  }
  func.func @transform_3(%arg0: i32, %arg1: memref<8xi32, #tpu.memory_space<smem>>) -> (i32, i32) {
    %c0_i32 = arith.constant 0 : i32
    %c0_i32_0 = arith.constant 0 : i32
    %c0_i32_1 = arith.constant 0 : i32
    return %c0_i32, %c0_i32_0 : i32, i32
  }
  func.func @transform_4(%arg0: i32, %arg1: memref<8xi32, #tpu.memory_space<smem>>) -> (i32, i32) {
    %c0_i32 = arith.constant 0 : i32
    %c0_i32_0 = arith.constant 0 : i32
    %c0_i32_1 = arith.constant 0 : i32
    return %c0_i32, %c0_i32_0 : i32, i32
  }
  func.func @transform_5(%arg0: i32, %arg1: memref<8xi32, #tpu.memory_space<smem>>) -> (i32, i32) {
    %c0_i32 = arith.constant 0 : i32
    %c0_i32_0 = arith.constant 0 : i32
    %c0_i32_1 = arith.constant 0 : i32
    return %c0_i32, %c0_i32_0 : i32, i32
  }
  func.func @transform_6(%arg0: i32, %arg1: memref<8xi32, #tpu.memory_space<smem>>) -> (i32, i32) {
    %c0_i32 = arith.constant 0 : i32
    %c0_i32_0 = arith.constant 0 : i32
    %c0_i32_1 = arith.constant 0 : i32
    return %c0_i32, %c0_i32_0 : i32, i32
  }
  func.func @transform_7(%arg0: i32, %arg1: memref<8xi32, #tpu.memory_space<smem>>) -> (i32, i32) {
    %c0_i32 = arith.constant 0 : i32
    %c0_i32_0 = arith.constant 0 : i32
    %c0_i32_1 = arith.constant 0 : i32
    return %c0_i32, %c0_i32_0 : i32, i32
  }
  func.func @transform_8(%arg0: i32, %arg1: memref<8xi32, #tpu.memory_space<smem>>) -> (i32, i32) {
    %c0_i32 = arith.constant 0 : i32
    %c0_i32_0 = arith.constant 0 : i32
    %c0_i32_1 = arith.constant 0 : i32
    return %c0_i32, %c0_i32_0 : i32, i32
  }
  func.func @transform_9(%arg0: i32, %arg1: memref<8xi32, #tpu.memory_space<smem>>) -> (i32, i32, i32) {
    %c0_i32 = arith.constant 0 : i32
    %c0_i32_0 = arith.constant 0 : i32
    %c0_i32_1 = arith.constant 0 : i32
    %c0_i32_2 = arith.constant 0 : i32
    return %c0_i32, %c0_i32_0, %c0_i32_1 : i32, i32, i32
  }
}

</mosaic_0001>

<llo_original>
// kernel: seq2seq_forward.1
$region0: #{seq2seq_forward.1}
  #allocation0 [shape = 'u32[]', space=smem, size = 0x4, offset = 0x4, fixed_abs, tag = 'smem constant byte address 0x4 - core index']
  #allocation1 [shape = 'u32[144,128]{1,0:T(1,128)}', space=vmem, size = 0x12000, scoped, tag = 'internal scratch']
  #allocation2 [shape = 'bf16[8,64]{1,0:T(8,128)(2,1)}', space=vmem, size = 0x800, scoped, tag = 'scratch operand']
  #allocation3 [shape = 'f32[8,32]{1,0:T(8,128)}', space=vmem, size = 0x1000, scoped, tag = 'scratch operand']
  #allocation4 [shape = 's32[1]{0}', space=sflag, size = 0x4, scoped, tag = 'scoped memory for seq2seq_forward.1']
  #allocation5 [shape = 'u8[512]{0}', space=smem, size = 0x200, scoped, tag = 'prefetched SMEM operand 0']
  %s0 = inlined_call_operand.vmem [shape: s32[8], index: 0, kind: input, shape index: {}]
  %s1 = inlined_call_operand.vmem [shape: bf16[6,8,32], index: 1, kind: input, shape index: {}]
  %s2 = inlined_call_operand.vmem [shape: bf16[8,8,32], index: 2, kind: input, shape index: {}]
  %s3 = inlined_call_operand.vmem [shape: bf16[64,128], index: 3, kind: input, shape index: {}]
  %s4 = inlined_call_operand.vmem [shape: f32[1,128], index: 4, kind: input, shape index: {}]
  %s5 = inlined_call_operand.vmem [shape: bf16[64,128], index: 5, kind: input, shape index: {}]
  %s6 = inlined_call_operand.vmem [shape: f32[1,128], index: 6, kind: input, shape index: {}]
  %s7 = inlined_call_operand.vmem [shape: bf16[32,128], index: 7, kind: input, shape index: {}]
  %s8 = inlined_call_operand.vmem [shape: f32[1,128], index: 8, kind: input, shape index: {}]
  %s9 = inlined_call_operand.vmem [shape: bf16[16,32], index: 9, kind: input, shape index: {}]
  %s10 = inlined_call_operand.vmem [shape: f32[7,8,128], index: 10, kind: output, shape index: {}]
  %s11 = sld [smem:[#allocation0]]
  $region102: #{seq2seq_forward.1} parent=0
    _
  %s13 = ssub.s32 1, %s11
  %s14 = scalar_select 0, %s13, %s11
  %s15 = sshll.u32 %s0, 4
  %s16 = int_to_ptr.vmem [resolvable:$true] %s15
  %18 = dma.vmem_to_smem %s16, 16, [#allocation5], [#allocation4]
  %19 = dma.done [#allocation4], 16
  %20 = sfence
  // Predicated region
  $region2: #{seq2seq_forward.1} parent=0 // pred_check
    _
  $region3: #{seq2seq_forward.1} parent=0 // pred_check_branch
    %22 = sbr.rel (0) target = $region5
  $region4: #{seq2seq_forward.1} parent=0 // pred_region
    _
  $region5: #{seq2seq_forward.1} parent=0 // pred_fallthru
    _
  // Predicated region
  $region6: #{seq2seq_forward.1} parent=0 // pred_check
    _
  $region7: #{seq2seq_forward.1} parent=0 // pred_check_branch
    %24 = sbr.rel (0) target = $region9
  $region8: #{seq2seq_forward.1} parent=0 // pred_region
    _
  $region9: #{seq2seq_forward.1} parent=0 // pred_fallthru
    _
  // Predicated region
  $region10: #{seq2seq_forward.1} parent=0 // pred_check
    _
  $region11: #{seq2seq_forward.1} parent=0 // pred_check_branch
    %26 = sbr.rel (0) target = $region13
  $region12: #{seq2seq_forward.1} parent=0 // pred_region
    _
  $region13: #{seq2seq_forward.1} parent=0 // pred_fallthru
    _
  // Predicated region
  $region14: #{seq2seq_forward.1} parent=0 // pred_check
    _
  $region15: #{seq2seq_forward.1} parent=0 // pred_check_branch
    %28 = sbr.rel (0) target = $region17
  $region16: #{seq2seq_forward.1} parent=0 // pred_region
    _
  $region17: #{seq2seq_forward.1} parent=0 // pred_fallthru
    _
  // Predicated region
  $region18: #{seq2seq_forward.1} parent=0 // pred_check
    _
  $region19: #{seq2seq_forward.1} parent=0 // pred_check_branch
    %30 = sbr.rel (0) target = $region21
  $region20: #{seq2seq_forward.1} parent=0 // pred_region
    _
  $region21: #{seq2seq_forward.1} parent=0 // pred_fallthru
    _
  // Predicated region
  $region22: #{seq2seq_forward.1} parent=0 // pred_check
    _
  $region23: #{seq2seq_forward.1} parent=0 // pred_check_branch
    %32 = sbr.rel (0) target = $region25
  $region24: #{seq2seq_forward.1} parent=0 // pred_region
    _
  $region25: #{seq2seq_forward.1} parent=0 // pred_fallthru
    _
  // Predicated region
  $region26: #{seq2seq_forward.1} parent=0 // pred_check
    _
  $region27: #{seq2seq_forward.1} parent=0 // pred_check_branch
    %34 = sbr.rel (0) target = $region29
  $region28: #{seq2seq_forward.1} parent=0 // pred_region
    _
  $region29: #{seq2seq_forward.1} parent=0 // pred_fallthru
    _
  // Predicated region
  $region30: #{seq2seq_forward.1} parent=0 // pred_check
    _
  $region31: #{seq2seq_forward.1} parent=0 // pred_check_branch
    %36 = sbr.rel (0) target = $region33
  $region32: #{seq2seq_forward.1} parent=0 // pred_region
    _
  $region33: #{seq2seq_forward.1} parent=0 // pred_fallthru
    _
  // Predicated region
  $region34: #{seq2seq_forward.1} parent=0 // pred_check
    _
  $region35: #{seq2seq_forward.1} parent=0 // pred_check_branch
    %38 = sbr.rel (0) target = $region37
  $region36: #{seq2seq_forward.1} parent=0 // pred_region
    _
  $region37: #{seq2seq_forward.1} parent=0 // pred_fallthru
    _
  %v40 = vld [vmem:[%s4] sm:$0x1]
  %v42 = vlaneseq
  %v43 = vshrl.u32 %v42, 7
  %v44 = vsub.s32 0, %v43
  %v45 = vrot.slane %v40, %v44
  %v47 = vld [vmem:[%s6] sm:$0x1]
  %v49 = vlaneseq
  %v50 = vshrl.u32 %v49, 7
  %v51 = vsub.s32 0, %v50
  %v52 = vrot.slane %v47, %v51
  %v54 = vld [vmem:[%s8] sm:$0x1]
  %v56 = vlaneseq
  %v57 = vshrl.u32 %v56, 7
  %v58 = vsub.s32 0, %v57
  %v59 = vrot.slane %v54, %v58
  %v61 = vlaneseq
  %v62 = vand.u32 %v61, 127
  %vm63 = vcmask 519168
  %64 = vst.msk [vmem:[#allocation2] sm:$0xf] %vm63, 0
  %vm65 = vcmask 261120
  %66 = vst.msk [vmem:[#allocation3] sm:$0xff] %vm65, 0.0
  %v67 = vld [vmem:[%s1] sm:$0xf]
  %vm68 = vcmask 257024
  %69 = vst.msk [vmem:[#allocation2] sm:$0xf] %vm68, %v67
  %v70 = vld [vmem:[#allocation2] sm:$0xf]
  %v71 = vld [vmem:[%s3] sm:$0xf]
  %v72 = vld [vmem:[%s3 + $0x4] sm:$0xf]
  %v73 = vld [vmem:[%s3 + $0x8] sm:$0xf]
  %v74 = vld [vmem:[%s3 + $0xc] sm:$0xf]
  %v75 = vld [vmem:[%s3 + $0x10] sm:$0xf]
  %v76 = vld [vmem:[%s3 + $0x14] sm:$0xf]
  %v77 = vld [vmem:[%s3 + $0x18] sm:$0xf]
  %v78 = vld [vmem:[%s3 + $0x1c] sm:$0xf]
  %v87 = vunpack.c.l.b16 %v71
  %v88 = vunpack.c.l.b16 %v72
  %v89 = vunpack.c.l.b16 %v73
  %v90 = vunpack.c.l.b16 %v74
  %v91 = vunpack.c.l.b16 %v75
  %v92 = vunpack.c.l.b16 %v76
  %v93 = vunpack.c.l.b16 %v77
  %v94 = vunpack.c.l.b16 %v78
  %v95 = vpack.c.b16 %v88, %v87
  %v96 = vpack.c.b16 %v90, %v89
  %v97 = vpack.c.b16 %v92, %v91
  %v98 = vpack.c.b16 %v94, %v93
  %vm103 = vcmask 523264
  %v105 = vsel %vm103, %v70, 0
  %107 = vmatprep.subr.bf16.mxu0 0
  %108 = vmatpush1.bf16.msra.mxu0 %v95
  %109 = vmatprep.subr.bf16.mxu0 0
  %110 = vmatpush1.bf16.msra.mxu0 %v96
  %111 = vmatprep.subr.bf16.mxu0 0
  %112 = vmatpush1.bf16.msra.mxu0 %v97
  %113 = vmatprep.subr.bf16.mxu0 0
  %114 = vmatpush1.bf16.msra.mxu0 %v98
  %115 = vmatprep.subr.bf16.mxu0 0
  %116 = vmatpush1.bf16.msra.mxu0 0
  %117 = vmatprep.subr.bf16.mxu0 0
  %118 = vmatpush1.bf16.msra.mxu0 0
  %119 = vmatprep.subr.bf16.mxu0 0
  %120 = vmatpush1.bf16.msra.mxu0 0
  %121 = vmatprep.subr.bf16.mxu0 0
  %122 = vmatpush1.bf16.msra.mxu0 0
  %123 = vmatprep.subr.bf16.mxu0 0
  %124 = vmatpush1.bf16.msra.mxu0 0
  %125 = vmatprep.subr.bf16.mxu0 0
  %126 = vmatpush1.bf16.msra.mxu0 0
  %127 = vmatprep.subr.bf16.mxu0 0
  %128 = vmatpush1.bf16.msra.mxu0 0
  %129 = vmatprep.subr.bf16.mxu0 0
  %130 = vmatpush1.bf16.msra.mxu0 0
  %131 = vmatprep.subr.bf16.mxu0 0
  %132 = vmatpush1.bf16.msra.mxu0 0
  %133 = vmatprep.subr.bf16.mxu0 0
  %134 = vmatpush1.bf16.msra.mxu0 0
  %135 = vmatprep.subr.bf16.mxu0 0
  %136 = vmatpush1.bf16.msra.mxu0 0
  %137 = vmatprep.subr.bf16.mxu0 0
  %138 = vmatpush1.bf16.msra.mxu0 0
  %139 = vmatprep.mubr.bf16.mxu0 0
  %140 = vmatmul.mubr.bf16.gmra.mrb[0].mxu0 %v105
  %v141 = vpop.f32.mrb[0].mxu0
  %v142 = vadd.f32 %v45, %v141
  %v143 = vpop.f32.mrb[0].mxu0
  %v144 = vpop.f32.mrb[0].mxu0
  %v145 = vpop.f32.mrb[0].mxu0
  %146 = vdwg.mxu0
  %v147 = vxor.u32 %v142, 2147483648
  %v148 = vmul.f32 %v147, 1.442695
  %v149 = vpow.pop %v148
  %v150 = vadd.f32 %v149, 1.0
  %v151 = vrcp.pop %v150
  %v152 = vmul.f32 1.0, %v151
  %v153 = vtanh.pop %v142
  %v154 = vld [vmem:[#allocation3] sm:$0xff]
  %156 = vrot.lane.b32.xlu0 %v154, 32
  %v157 = vpop.permute.xlu0 %156
  %v159 = vmul.f32 %v152, %v157
  %161 = vrot.lane.b32.xlu0 %v153, 32
  %v162 = vpop.permute.xlu0 %161
  %v164 = vmul.f32 %v152, %v162
  %166 = vrot.lane.b32.xlu0 %v164, 32
  %v167 = vpop.permute.xlu0 %166
  %v169 = vadd.f32 %v159, %v167
  %v170 = vtanh.pop %v169
  %172 = vrot.lane.b32.xlu0 %v170, 32
  %v173 = vpop.permute.xlu0 %172
  %v175 = vmul.f32 %v152, %v173
  %177 = vrot.lane.b32.xlu0 %v169, 96
  %v178 = vpop.permute.xlu0 %177
  %180 = vst.msk [vmem:[#allocation3] sm:$0xff] %vm65, %v178
  %v181 = vpack.c.bf16 %v175, %v175
  %v183 = vunpack.c.l.b16 %v181
  %v184 = vpack.c.b16 %v183, %v183
  %185 = vrot.lane.b32.xlu0 %v184, 96
  %v186 = vpop.permute.xlu0 %185
  %vm188 = vcmask 519424
  %189 = vst.msk [vmem:[#allocation2] sm:$0xf] %vm188, %v186
  %s190 = scalar_lea.vmem %s1, 4
  %v191 = vld [vmem:[%s190] sm:$0xf]
  %192 = vst.msk [vmem:[#allocation2] sm:$0xf] %vm68, %v191
  %v193 = vld [vmem:[#allocation2] sm:$0xf]
  %v194 = vld [vmem:[%s3] sm:$0xf]
  %v195 = vld [vmem:[%s3 + $0x4] sm:$0xf]
  %v196 = vld [vmem:[%s3 + $0x8] sm:$0xf]
  %v197 = vld [vmem:[%s3 + $0xc] sm:$0xf]
  %v198 = vld [vmem:[%s3 + $0x10] sm:$0xf]
  %v199 = vld [vmem:[%s3 + $0x14] sm:$0xf]
  %v200 = vld [vmem:[%s3 + $0x18] sm:$0xf]
  %v201 = vld [vmem:[%s3 + $0x1c] sm:$0xf]
  %v210 = vunpack.c.l.b16 %v194
  %v211 = vunpack.c.l.b16 %v195
  %v212 = vunpack.c.l.b16 %v196
  %v213 = vunpack.c.l.b16 %v197
  %v214 = vunpack.c.l.b16 %v198
  %v215 = vunpack.c.l.b16 %v199
  %v216 = vunpack.c.l.b16 %v200
  %v217 = vunpack.c.l.b16 %v201
  %v218 = vpack.c.b16 %v211, %v210
  %v219 = vpack.c.b16 %v213, %v212
  %v220 = vpack.c.b16 %v215, %v214
  %v221 = vpack.c.b16 %v217, %v216
  %v227 = vsel %vm103, %v193, 0
  %229 = vmatprep.subr.bf16.mxu0 0
  %230 = vmatpush1.bf16.msra.mxu0 %v218
  %231 = vmatprep.subr.bf16.mxu0 0
  %232 = vmatpush1.bf16.msra.mxu0 %v219
  %233 = vmatprep.subr.bf16.mxu0 0
  %234 = vmatpush1.bf16.msra.mxu0 %v220
  %235 = vmatprep.subr.bf16.mxu0 0
  %236 = vmatpush1.bf16.msra.mxu0 %v221
  %237 = vmatprep.subr.bf16.mxu0 0
  %238 = vmatpush1.bf16.msra.mxu0 0
  %239 = vmatprep.subr.bf16.mxu0 0
  %240 = vmatpush1.bf16.msra.mxu0 0
  %241 = vmatprep.subr.bf16.mxu0 0
  %242 = vmatpush1.bf16.msra.mxu0 0
  %243 = vmatprep.subr.bf16.mxu0 0
  %244 = vmatpush1.bf16.msra.mxu0 0
  %245 = vmatprep.subr.bf16.mxu0 0
  %246 = vmatpush1.bf16.msra.mxu0 0
  %247 = vmatprep.subr.bf16.mxu0 0
  %248 = vmatpush1.bf16.msra.mxu0 0
  %249 = vmatprep.subr.bf16.mxu0 0
  %250 = vmatpush1.bf16.msra.mxu0 0
  %251 = vmatprep.subr.bf16.mxu0 0
  %252 = vmatpush1.bf16.msra.mxu0 0
  %253 = vmatprep.subr.bf16.mxu0 0
  %254 = vmatpush1.bf16.msra.mxu0 0
  %255 = vmatprep.subr.bf16.mxu0 0
  %256 = vmatpush1.bf16.msra.mxu0 0
  %257 = vmatprep.subr.bf16.mxu0 0
  %258 = vmatpush1.bf16.msra.mxu0 0
  %259 = vmatprep.subr.bf16.mxu0 0
  %260 = vmatpush1.bf16.msra.mxu0 0
  %261 = vmatprep.mubr.bf16.mxu0 0
  %262 = vmatmul.mubr.bf16.gmra.mrb[0].mxu0 %v227
  %v263 = vpop.f32.mrb[0].mxu0
  %v264 = vadd.f32 %v45, %v263
  %v265 = vpop.f32.mrb[0].mxu0
  %v266 = vpop.f32.mrb[0].mxu0
  %v267 = vpop.f32.mrb[0].mxu0
  %268 = vdwg.mxu0
  %v269 = vxor.u32 %v264, 2147483648
  %v270 = vmul.f32 %v269, 1.442695
  %v271 = vpow.pop %v270
  %v272 = vadd.f32 %v271, 1.0
  %v273 = vrcp.pop %v272
  %v274 = vmul.f32 1.0, %v273
  %v275 = vtanh.pop %v264
  %v276 = vld [vmem:[#allocation3] sm:$0xff]
  %278 = vrot.lane.b32.xlu0 %v276, 32
  %v279 = vpop.permute.xlu0 %278
  %v281 = vmul.f32 %v274, %v279
  %283 = vrot.lane.b32.xlu0 %v275, 32
  %v284 = vpop.permute.xlu0 %283
  %v286 = vmul.f32 %v274, %v284
  %288 = vrot.lane.b32.xlu0 %v286, 32
  %v289 = vpop.permute.xlu0 %288
  %v291 = vadd.f32 %v281, %v289
  %v292 = vtanh.pop %v291
  %294 = vrot.lane.b32.xlu0 %v292, 32
  %v295 = vpop.permute.xlu0 %294
  %v297 = vmul.f32 %v274, %v295
  %299 = vrot.lane.b32.xlu0 %v291, 96
  %v300 = vpop.permute.xlu0 %299
  %302 = vst.msk [vmem:[#allocation3] sm:$0xff] %vm65, %v300
  %v303 = vpack.c.bf16 %v297, %v297
  %v305 = vunpack.c.l.b16 %v303
  %v306 = vpack.c.b16 %v305, %v305
  %307 = vrot.lane.b32.xlu0 %v306, 96
  %v308 = vpop.permute.xlu0 %307
  %310 = vst.msk [vmem:[#allocation2] sm:$0xf] %vm188, %v308
  %s311 = scalar_lea.vmem %s1, 8
  %v312 = vld [vmem:[%s311] sm:$0xf]
  %313 = vst.msk [vmem:[#allocation2] sm:$0xf] %vm68, %v312
  %v314 = vld [vmem:[#allocation2] sm:$0xf]
  %v315 = vld [vmem:[%s3] sm:$0xf]
  %v316 = vld [vmem:[%s3 + $0x4] sm:$0xf]
  %v317 = vld [vmem:[%s3 + $0x8] sm:$0xf]
  %v318 = vld [vmem:[%s3 + $0xc] sm:$0xf]
  %v319 = vld [vmem:[%s3 + $0x10] sm:$0xf]
  %v320 = vld [vmem:[%s3 + $0x14] sm:$0xf]
  %v321 = vld [vmem:[%s3 + $0x18] sm:$0xf]
  %v322 = vld [vmem:[%s3 + $0x1c] sm:$0xf]
  %v331 = vunpack.c.l.b16 %v315
  %v332 = vunpack.c.l.b16 %v316
  %v333 = vunpack.c.l.b16 %v317
  %v334 = vunpack.c.l.b16 %v318
  %v335 = vunpack.c.l.b16 %v319
  %v336 = vunpack.c.l.b16 %v320
  %v337 = vunpack.c.l.b16 %v321
  %v338 = vunpack.c.l.b16 %v322
  %v339 = vpack.c.b16 %v332, %v331
  %v340 = vpack.c.b16 %v334, %v333
  %v341 = vpack.c.b16 %v336, %v335
  %v342 = vpack.c.b16 %v338, %v337
  %v348 = vsel %vm103, %v314, 0
  %350 = vmatprep.subr.bf16.mxu0 0
  %351 = vmatpush1.bf16.msra.mxu0 %v339
  %352 = vmatprep.subr.bf16.mxu0 0
  %353 = vmatpush1.bf16.msra.mxu0 %v340
  %354 = vmatprep.subr.bf16.mxu0 0
  %355 = vmatpush1.bf16.msra.mxu0 %v341
  %356 = vmatprep.subr.bf16.mxu0 0
  %357 = vmatpush1.bf16.msra.mxu0 %v342
  %358 = vmatprep.subr.bf16.mxu0 0
  %359 = vmatpush1.bf16.msra.mxu0 0
  %360 = vmatprep.subr.bf16.mxu0 0
  %361 = vmatpush1.bf16.msra.mxu0 0
  %362 = vmatprep.subr.bf16.mxu0 0
  %363 = vmatpush1.bf16.msra.mxu0 0
  %364 = vmatprep.subr.bf16.mxu0 0
  %365 = vmatpush1.bf16.msra.mxu0 0
  %366 = vmatprep.subr.bf16.mxu0 0
  %367 = vmatpush1.bf16.msra.mxu0 0
  %368 = vmatprep.subr.bf16.mxu0 0
  %369 = vmatpush1.bf16.msra.mxu0 0
  %370 = vmatprep.subr.bf16.mxu0 0
  %371 = vmatpush1.bf16.msra.mxu0 0
  %372 = vmatprep.subr.bf16.mxu0 0
  %373 = vmatpush1.bf16.msra.mxu0 0
  %374 = vmatprep.subr.bf16.mxu0 0
  %375 = vmatpush1.bf16.msra.mxu0 0
  %376 = vmatprep.subr.bf16.mxu0 0
  %377 = vmatpush1.bf16.msra.mxu0 0
  %378 = vmatprep.subr.bf16.mxu0 0
  %379 = vmatpush1.bf16.msra.mxu0 0
  %380 = vmatprep.subr.bf16.mxu0 0
  %381 = vmatpush1.bf16.msra.mxu0 0
  %382 = vmatprep.mubr.bf16.mxu0 0
  %383 = vmatmul.mubr.bf16.gmra.mrb[0].mxu0 %v348
  %v384 = vpop.f32.mrb[0].mxu0
  %v385 = vadd.f32 %v45, %v384
  %v386 = vpop.f32.mrb[0].mxu0
  %v387 = vpop.f32.mrb[0].mxu0
  %v388 = vpop.f32.mrb[0].mxu0
  %389 = vdwg.mxu0
  %v390 = vxor.u32 %v385, 2147483648
  %v391 = vmul.f32 %v390, 1.442695
  %v392 = vpow.pop %v391
  %v393 = vadd.f32 %v392, 1.0
  %v394 = vrcp.pop %v393
  %v395 = vmul.f32 1.0, %v394
  %v396 = vtanh.pop %v385
  %v397 = vld [vmem:[#allocation3] sm:$0xff]
  %399 = vrot.lane.b32.xlu0 %v397, 32
  %v400 = vpop.permute.xlu0 %399
  %v402 = vmul.f32 %v395, %v400
  %404 = vrot.lane.b32.xlu0 %v396, 32
  %v405 = vpop.permute.xlu0 %404
  %v407 = vmul.f32 %v395, %v405
  %409 = vrot.lane.b32.xlu0 %v407, 32
  %v410 = vpop.permute.xlu0 %409
  %v412 = vadd.f32 %v402, %v410
  %v413 = vtanh.pop %v412
  %415 = vrot.lane.b32.xlu0 %v413, 32
  %v416 = vpop.permute.xlu0 %415
  %v418 = vmul.f32 %v395, %v416
  %420 = vrot.lane.b32.xlu0 %v412, 96
  %v421 = vpop.permute.xlu0 %420
  %423 = vst.msk [vmem:[#allocation3] sm:$0xff] %vm65, %v421
  %v424 = vpack.c.bf16 %v418, %v418
  %v426 = vunpack.c.l.b16 %v424
  %v427 = vpack.c.b16 %v426, %v426
  %428 = vrot.lane.b32.xlu0 %v427, 96
  %v429 = vpop.permute.xlu0 %428
  %431 = vst.msk [vmem:[#allocation2] sm:$0xf] %vm188, %v429
  %s432 = scalar_lea.vmem %s1, 12
  %v433 = vld [vmem:[%s432] sm:$0xf]
  %434 = vst.msk [vmem:[#allocation2] sm:$0xf] %vm68, %v433
  %v435 = vld [vmem:[#allocation2] sm:$0xf]
  %v436 = vld [vmem:[%s3] sm:$0xf]
  %v437 = vld [vmem:[%s3 + $0x4] sm:$0xf]
  %v438 = vld [vmem:[%s3 + $0x8] sm:$0xf]
  %v439 = vld [vmem:[%s3 + $0xc] sm:$0xf]
  %v440 = vld [vmem:[%s3 + $0x10] sm:$0xf]
  %v441 = vld [vmem:[%s3 + $0x14] sm:$0xf]
  %v442 = vld [vmem:[%s3 + $0x18] sm:$0xf]
  %v443 = vld [vmem:[%s3 + $0x1c] sm:$0xf]
  %v452 = vunpack.c.l.b16 %v436
  %v453 = vunpack.c.l.b16 %v437
  %v454 = vunpack.c.l.b16 %v438
  %v455 = vunpack.c.l.b16 %v439
  %v456 = vunpack.c.l.b16 %v440
  %v457 = vunpack.c.l.b16 %v441
  %v458 = vunpack.c.l.b16 %v442
  %v459 = vunpack.c.l.b16 %v443
  %v460 = vpack.c.b16 %v453, %v452
  %v461 = vpack.c.b16 %v455, %v454
  %v462 = vpack.c.b16 %v457, %v456
  %v463 = vpack.c.b16 %v459, %v458
  %v469 = vsel %vm103, %v435, 0
  %471 = vmatprep.subr.bf16.mxu0 0
  %472 = vmatpush1.bf16.msra.mxu0 %v460
  %473 = vmatprep.subr.bf16.mxu0 0
  %474 = vmatpush1.bf16.msra.mxu0 %v461
  %475 = vmatprep.subr.bf16.mxu0 0
  %476 = vmatpush1.bf16.msra.mxu0 %v462
  %477 = vmatprep.subr.bf16.mxu0 0
  %478 = vmatpush1.bf16.msra.mxu0 %v463
  %479 = vmatprep.subr.bf16.mxu0 0
  %480 = vmatpush1.bf16.msra.mxu0 0
  %481 = vmatprep.subr.bf16.mxu0 0
  %482 = vmatpush1.bf16.msra.mxu0 0
  %483 = vmatprep.subr.bf16.mxu0 0
  %484 = vmatpush1.bf16.msra.mxu0 0
  %485 = vmatprep.subr.bf16.mxu0 0
  %486 = vmatpush1.bf16.msra.mxu0 0
  %487 = vmatprep.subr.bf16.mxu0 0
  %488 = vmatpush1.bf16.msra.mxu0 0
  %489 = vmatprep.subr.bf16.mxu0 0
  %490 = vmatpush1.bf16.msra.mxu0 0
  %491 = vmatprep.subr.bf16.mxu0 0
  %492 = vmatpush1.bf16.msra.mxu0 0
  %493 = vmatprep.subr.bf16.mxu0 0
  %494 = vmatpush1.bf16.msra.mxu0 0
  %495 = vmatprep.subr.bf16.mxu0 0
  %496 = vmatpush1.bf16.msra.mxu0 0
  %497 = vmatprep.subr.bf16.mxu0 0
  %498 = vmatpush1.bf16.msra.mxu0 0
  %499 = vmatprep.subr.bf16.mxu0 0
  %500 = vmatpush1.bf16.msra.mxu0 0
  %501 = vmatprep.subr.bf16.mxu0 0
  %502 = vmatpush1.bf16.msra.mxu0 0
  %503 = vmatprep.mubr.bf16.mxu0 0
  %504 = vmatmul.mubr.bf16.gmra.mrb[0].mxu0 %v469
  %v505 = vpop.f32.mrb[0].mxu0
  %v506 = vadd.f32 %v45, %v505
  %v507 = vpop.f32.mrb[0].mxu0
  %v508 = vpop.f32.mrb[0].mxu0
  %v509 = vpop.f32.mrb[0].mxu0
  %510 = vdwg.mxu0
  %v511 = vxor.u32 %v506, 2147483648
  %v512 = vmul.f32 %v511, 1.442695
  %v513 = vpow.pop %v512
  %v514 = vadd.f32 %v513, 1.0
  %v515 = vrcp.pop %v514
  %v516 = vmul.f32 1.0, %v515
  %v517 = vtanh.pop %v506
  %v518 = vld [vmem:[#allocation3] sm:$0xff]
  %520 = vrot.lane.b32.xlu0 %v518, 32
  %v521 = vpop.permute.xlu0 %520
  %v523 = vmul.f32 %v516, %v521
  %525 = vrot.lane.b32.xlu0 %v517, 32
  %v526 = vpop.permute.xlu0 %525
  %v528 = vmul.f32 %v516, %v526
  %530 = vrot.lane.b32.xlu0 %v528, 32
  %v531 = vpop.permute.xlu0 %530
  %v533 = vadd.f32 %v523, %v531
  %v534 = vtanh.pop %v533
  %536 = vrot.lane.b32.xlu0 %v534, 32
  %v537 = vpop.permute.xlu0 %536
  %v539 = vmul.f32 %v516, %v537
  %541 = vrot.lane.b32.xlu0 %v533, 96
  %v542 = vpop.permute.xlu0 %541
  %544 = vst.msk [vmem:[#allocation3] sm:$0xff] %vm65, %v542
  %v545 = vpack.c.bf16 %v539, %v539
  %v547 = vunpack.c.l.b16 %v545
  %v548 = vpack.c.b16 %v547, %v547
  %549 = vrot.lane.b32.xlu0 %v548, 96
  %v550 = vpop.permute.xlu0 %549
  %552 = vst.msk [vmem:[#allocation2] sm:$0xf] %vm188, %v550
  %s553 = scalar_lea.vmem %s1, 16
  %v554 = vld [vmem:[%s553] sm:$0xf]
  %555 = vst.msk [vmem:[#allocation2] sm:$0xf] %vm68, %v554
  %v556 = vld [vmem:[#allocation2] sm:$0xf]
  %v557 = vld [vmem:[%s3] sm:$0xf]
  %v558 = vld [vmem:[%s3 + $0x4] sm:$0xf]
  %v559 = vld [vmem:[%s3 + $0x8] sm:$0xf]
  %v560 = vld [vmem:[%s3 + $0xc] sm:$0xf]
  %v561 = vld [vmem:[%s3 + $0x10] sm:$0xf]
  %v562 = vld [vmem:[%s3 + $0x14] sm:$0xf]
  %v563 = vld [vmem:[%s3 + $0x18] sm:$0xf]
  %v564 = vld [vmem:[%s3 + $0x1c] sm:$0xf]
  %v573 = vunpack.c.l.b16 %v557
  %v574 = vunpack.c.l.b16 %v558
  %v575 = vunpack.c.l.b16 %v559
  %v576 = vunpack.c.l.b16 %v560
  %v577 = vunpack.c.l.b16 %v561
  %v578 = vunpack.c.l.b16 %v562
  %v579 = vunpack.c.l.b16 %v563
  %v580 = vunpack.c.l.b16 %v564
  %v581 = vpack.c.b16 %v574, %v573
  %v582 = vpack.c.b16 %v576, %v575
  %v583 = vpack.c.b16 %v578, %v577
  %v584 = vpack.c.b16 %v580, %v579
  %v590 = vsel %vm103, %v556, 0
  %592 = vmatprep.subr.bf16.mxu0 0
  %593 = vmatpush1.bf16.msra.mxu0 %v581
  %594 = vmatprep.subr.bf16.mxu0 0
  %595 = vmatpush1.bf16.msra.mxu0 %v582
  %596 = vmatprep.subr.bf16.mxu0 0
  %597 = vmatpush1.bf16.msra.mxu0 %v583
  %598 = vmatprep.subr.bf16.mxu0 0
  %599 = vmatpush1.bf16.msra.mxu0 %v584
  %600 = vmatprep.subr.bf16.mxu0 0
  %601 = vmatpush1.bf16.msra.mxu0 0
  %602 = vmatprep.subr.bf16.mxu0 0
  %603 = vmatpush1.bf16.msra.mxu0 0
  %604 = vmatprep.subr.bf16.mxu0 0
  %605 = vmatpush1.bf16.msra.mxu0 0
  %606 = vmatprep.subr.bf16.mxu0 0
  %607 = vmatpush1.bf16.msra.mxu0 0
  %608 = vmatprep.subr.bf16.mxu0 0
  %609 = vmatpush1.bf16.msra.mxu0 0
  %610 = vmatprep.subr.bf16.mxu0 0
  %611 = vmatpush1.bf16.msra.mxu0 0
  %612 = vmatprep.subr.bf16.mxu0 0
  %613 = vmatpush1.bf16.msra.mxu0 0
  %614 = vmatprep.subr.bf16.mxu0 0
  %615 = vmatpush1.bf16.msra.mxu0 0
  %616 = vmatprep.subr.bf16.mxu0 0
  %617 = vmatpush1.bf16.msra.mxu0 0
  %618 = vmatprep.subr.bf16.mxu0 0
  %619 = vmatpush1.bf16.msra.mxu0 0
  %620 = vmatprep.subr.bf16.mxu0 0
  %621 = vmatpush1.bf16.msra.mxu0 0
  %622 = vmatprep.subr.bf16.mxu0 0
  %623 = vmatpush1.bf16.msra.mxu0 0
  %624 = vmatprep.mubr.bf16.mxu0 0
  %625 = vmatmul.mubr.bf16.gmra.mrb[0].mxu0 %v590
  %v626 = vpop.f32.mrb[0].mxu0
  %v627 = vadd.f32 %v45, %v626
  %v628 = vpop.f32.mrb[0].mxu0
  %v629 = vpop.f32.mrb[0].mxu0
  %v630 = vpop.f32.mrb[0].mxu0
  %631 = vdwg.mxu0
  %v632 = vxor.u32 %v627, 2147483648
  %v633 = vmul.f32 %v632, 1.442695
  %v634 = vpow.pop %v633
  %v635 = vadd.f32 %v634, 1.0
  %v636 = vrcp.pop %v635
  %v637 = vmul.f32 1.0, %v636
  %v638 = vtanh.pop %v627
  %v639 = vld [vmem:[#allocation3] sm:$0xff]
  %641 = vrot.lane.b32.xlu0 %v639, 32
  %v642 = vpop.permute.xlu0 %641
  %v644 = vmul.f32 %v637, %v642
  %646 = vrot.lane.b32.xlu0 %v638, 32
  %v647 = vpop.permute.xlu0 %646
  %v649 = vmul.f32 %v637, %v647
  %651 = vrot.lane.b32.xlu0 %v649, 32
  %v652 = vpop.permute.xlu0 %651
  %v654 = vadd.f32 %v644, %v652
  %v655 = vtanh.pop %v654
  %657 = vrot.lane.b32.xlu0 %v655, 32
  %v658 = vpop.permute.xlu0 %657
  %v660 = vmul.f32 %v637, %v658
  %662 = vrot.lane.b32.xlu0 %v654, 96
  %v663 = vpop.permute.xlu0 %662
  %665 = vst.msk [vmem:[#allocation3] sm:$0xff] %vm65, %v663
  %v666 = vpack.c.bf16 %v660, %v660
  %v668 = vunpack.c.l.b16 %v666
  %v669 = vpack.c.b16 %v668, %v668
  %670 = vrot.lane.b32.xlu0 %v669, 96
  %v671 = vpop.permute.xlu0 %670
  %673 = vst.msk [vmem:[#allocation2] sm:$0xf] %vm188, %v671
  %s674 = scalar_lea.vmem %s1, 20
  %v675 = vld [vmem:[%s674] sm:$0xf]
  %676 = vst.msk [vmem:[#allocation2] sm:$0xf] %vm68, %v675
  %v677 = vld [vmem:[#allocation2] sm:$0xf]
  %v678 = vld [vmem:[%s3] sm:$0xf]
  %v679 = vld [vmem:[%s3 + $0x4] sm:$0xf]
  %v680 = vld [vmem:[%s3 + $0x8] sm:$0xf]
  %v681 = vld [vmem:[%s3 + $0xc] sm:$0xf]
  %v682 = vld [vmem:[%s3 + $0x10] sm:$0xf]
  %v683 = vld [vmem:[%s3 + $0x14] sm:$0xf]
  %v684 = vld [vmem:[%s3 + $0x18] sm:$0xf]
  %v685 = vld [vmem:[%s3 + $0x1c] sm:$0xf]
  %v694 = vunpack.c.l.b16 %v678
  %v695 = vunpack.c.l.b16 %v679
  %v696 = vunpack.c.l.b16 %v680
  %v697 = vunpack.c.l.b16 %v681
  %v698 = vunpack.c.l.b16 %v682
  %v699 = vunpack.c.l.b16 %v683
  %v700 = vunpack.c.l.b16 %v684
  %v701 = vunpack.c.l.b16 %v685
  %v702 = vpack.c.b16 %v695, %v694
  %v703 = vpack.c.b16 %v697, %v696
  %v704 = vpack.c.b16 %v699, %v698
  %v705 = vpack.c.b16 %v701, %v700
  %v711 = vsel %vm103, %v677, 0
  %713 = vmatprep.subr.bf16.mxu0 0
  %714 = vmatpush1.bf16.msra.mxu0 %v702
  %715 = vmatprep.subr.bf16.mxu0 0
  %716 = vmatpush1.bf16.msra.mxu0 %v703
  %717 = vmatprep.subr.bf16.mxu0 0
  %718 = vmatpush1.bf16.msra.mxu0 %v704
  %719 = vmatprep.subr.bf16.mxu0 0
  %720 = vmatpush1.bf16.msra.mxu0 %v705
  %721 = vmatprep.subr.bf16.mxu0 0
  %722 = vmatpush1.bf16.msra.mxu0 0
  %723 = vmatprep.subr.bf16.mxu0 0
  %724 = vmatpush1.bf16.msra.mxu0 0
  %725 = vmatprep.subr.bf16.mxu0 0
  %726 = vmatpush1.bf16.msra.mxu0 0
  %727 = vmatprep.subr.bf16.mxu0 0
  %728 = vmatpush1.bf16.msra.mxu0 0
  %729 = vmatprep.subr.bf16.mxu0 0
  %730 = vmatpush1.bf16.msra.mxu0 0
  %731 = vmatprep.subr.bf16.mxu0 0
  %732 = vmatpush1.bf16.msra.mxu0 0
  %733 = vmatprep.subr.bf16.mxu0 0
  %734 = vmatpush1.bf16.msra.mxu0 0
  %735 = vmatprep.subr.bf16.mxu0 0
  %736 = vmatpush1.bf16.msra.mxu0 0
  %737 = vmatprep.subr.bf16.mxu0 0
  %738 = vmatpush1.bf16.msra.mxu0 0
  %739 = vmatprep.subr.bf16.mxu0 0
  %740 = vmatpush1.bf16.msra.mxu0 0
  %741 = vmatprep.subr.bf16.mxu0 0
  %742 = vmatpush1.bf16.msra.mxu0 0
  %743 = vmatprep.subr.bf16.mxu0 0
  %744 = vmatpush1.bf16.msra.mxu0 0
  %745 = vmatprep.mubr.bf16.mxu0 0
  %746 = vmatmul.mubr.bf16.gmra.mrb[0].mxu0 %v711
  %v747 = vpop.f32.mrb[0].mxu0
  %v748 = vadd.f32 %v45, %v747
  %v749 = vpop.f32.mrb[0].mxu0
  %v750 = vpop.f32.mrb[0].mxu0
  %v751 = vpop.f32.mrb[0].mxu0
  %752 = vdwg.mxu0
  %v753 = vxor.u32 %v748, 2147483648
  %v754 = vmul.f32 %v753, 1.442695
  %v755 = vpow.pop %v754
  %v756 = vadd.f32 %v755, 1.0
  %v757 = vrcp.pop %v756
  %v758 = vmul.f32 1.0, %v757
  %v759 = vtanh.pop %v748
  %v760 = vld [vmem:[#allocation3] sm:$0xff]
  %762 = vrot.lane.b32.xlu0 %v760, 32
  %v763 = vpop.permute.xlu0 %762
  %v765 = vmul.f32 %v758, %v763
  %767 = vrot.lane.b32.xlu0 %v759, 32
  %v768 = vpop.permute.xlu0 %767
  %v770 = vmul.f32 %v758, %v768
  %772 = vrot.lane.b32.xlu0 %v770, 32
  %v773 = vpop.permute.xlu0 %772
  %v775 = vadd.f32 %v765, %v773
  %v776 = vtanh.pop %v775
  %778 = vrot.lane.b32.xlu0 %v776, 32
  %v779 = vpop.permute.xlu0 %778
  %v781 = vmul.f32 %v758, %v779
  %783 = vrot.lane.b32.xlu0 %v775, 96
  %v784 = vpop.permute.xlu0 %783
  %786 = vst.msk [vmem:[#allocation3] sm:$0xff] %vm65, %v784
  %v787 = vpack.c.bf16 %v781, %v781
  %v789 = vunpack.c.l.b16 %v787
  %v790 = vpack.c.b16 %v789, %v789
  %791 = vrot.lane.b32.xlu0 %v790, 96
  %v792 = vpop.permute.xlu0 %791
  %794 = vst.msk [vmem:[#allocation2] sm:$0xf] %vm188, %v792
  %v795 = vld [vmem:[%s2] sm:$0xf]
  %796 = vst.msk [vmem:[#allocation2] sm:$0xf] %vm68, %v795
  %v797 = vld [vmem:[#allocation2] sm:$0xf]
  %v798 = vld [vmem:[%s5] sm:$0xf]
  %v799 = vld [vmem:[%s5 + $0x4] sm:$0xf]
  %v800 = vld [vmem:[%s5 + $0x8] sm:$0xf]
  %v801 = vld [vmem:[%s5 + $0xc] sm:$0xf]
  %v802 = vld [vmem:[%s5 + $0x10] sm:$0xf]
  %v803 = vld [vmem:[%s5 + $0x14] sm:$0xf]
  %v804 = vld [vmem:[%s5 + $0x18] sm:$0xf]
  %v805 = vld [vmem:[%s5 + $0x1c] sm:$0xf]
  %v814 = vunpack.c.l.b16 %v798
  %v815 = vunpack.c.l.b16 %v799
  %v816 = vunpack.c.l.b16 %v800
  %v817 = vunpack.c.l.b16 %v801
  %v818 = vunpack.c.l.b16 %v802
  %v819 = vunpack.c.l.b16 %v803
  %v820 = vunpack.c.l.b16 %v804
  %v821 = vunpack.c.l.b16 %v805
  %v822 = vpack.c.b16 %v815, %v814
  %v823 = vpack.c.b16 %v817, %v816
  %v824 = vpack.c.b16 %v819, %v818
  %v825 = vpack.c.b16 %v821, %v820
  %v831 = vsel %vm103, %v797, 0
  %833 = vmatprep.subr.bf16.mxu0 0
  %834 = vmatpush1.bf16.msra.mxu0 %v822
  %835 = vmatprep.subr.bf16.mxu0 0
  %836 = vmatpush1.bf16.msra.mxu0 %v823
  %837 = vmatprep.subr.bf16.mxu0 0
  %838 = vmatpush1.bf16.msra.mxu0 %v824
  %839 = vmatprep.subr.bf16.mxu0 0
  %840 = vmatpush1.bf16.msra.mxu0 %v825
  %841 = vmatprep.subr.bf16.mxu0 0
  %842 = vmatpush1.bf16.msra.mxu0 0
  %843 = vmatprep.subr.bf16.mxu0 0
  %844 = vmatpush1.bf16.msra.mxu0 0
  %845 = vmatprep.subr.bf16.mxu0 0
  %846 = vmatpush1.bf16.msra.mxu0 0
  %847 = vmatprep.subr.bf16.mxu0 0
  %848 = vmatpush1.bf16.msra.mxu0 0
  %849 = vmatprep.subr.bf16.mxu0 0
  %850 = vmatpush1.bf16.msra.mxu0 0
  %851 = vmatprep.subr.bf16.mxu0 0
  %852 = vmatpush1.bf16.msra.mxu0 0
  %853 = vmatprep.subr.bf16.mxu0 0
  %854 = vmatpush1.bf16.msra.mxu0 0
  %855 = vmatprep.subr.bf16.mxu0 0
  %856 = vmatpush1.bf16.msra.mxu0 0
  %857 = vmatprep.subr.bf16.mxu0 0
  %858 = vmatpush1.bf16.msra.mxu0 0
  %859 = vmatprep.subr.bf16.mxu0 0
  %860 = vmatpush1.bf16.msra.mxu0 0
  %861 = vmatprep.subr.bf16.mxu0 0
  %862 = vmatpush1.bf16.msra.mxu0 0
  %863 = vmatprep.subr.bf16.mxu0 0
  %864 = vmatpush1.bf16.msra.mxu0 0
  %865 = vmatprep.mubr.bf16.mxu0 0
  %866 = vmatmul.mubr.bf16.gmra.mrb[0].mxu0 %v831
  %v867 = vpop.f32.mrb[0].mxu0
  %v868 = vadd.f32 %v52, %v867
  %v869 = vpop.f32.mrb[0].mxu0
  %v870 = vpop.f32.mrb[0].mxu0
  %v871 = vpop.f32.mrb[0].mxu0
  %872 = vdwg.mxu0
  %v873 = vxor.u32 %v868, 2147483648
  %v874 = vmul.f32 %v873, 1.442695
  %v875 = vpow.pop %v874
  %v876 = vadd.f32 %v875, 1.0
  %v877 = vrcp.pop %v876
  %v878 = vmul.f32 1.0, %v877
  %v879 = vtanh.pop %v868
  %v880 = vld [vmem:[#allocation3] sm:$0xff]
  %882 = vrot.lane.b32.xlu0 %v880, 32
  %v883 = vpop.permute.xlu0 %882
  %v885 = vmul.f32 %v878, %v883
  %887 = vrot.lane.b32.xlu0 %v879, 32
  %v888 = vpop.permute.xlu0 %887
  %v890 = vmul.f32 %v878, %v888
  %892 = vrot.lane.b32.xlu0 %v890, 32
  %v893 = vpop.permute.xlu0 %892
  %v895 = vadd.f32 %v885, %v893
  %v896 = vtanh.pop %v895
  %898 = vrot.lane.b32.xlu0 %v896, 32
  %v899 = vpop.permute.xlu0 %898
  %v901 = vmul.f32 %v878, %v899
  %903 = vrot.lane.b32.xlu0 %v895, 96
  %v904 = vpop.permute.xlu0 %903
  %906 = vst.msk [vmem:[#allocation3] sm:$0xff] %vm65, %v904
  %v907 = vpack.c.bf16 %v901, %v901
  %v909 = vunpack.c.l.b16 %v907
  %v910 = vpack.c.b16 %v909, %v909
  %911 = vrot.lane.b32.xlu0 %v910, 96
  %v912 = vpop.permute.xlu0 %911
  %914 = vst.msk [vmem:[#allocation2] sm:$0xf] %vm188, %v912
  %v915 = vld [vmem:[%s7] sm:$0xf]
  %v916 = vld [vmem:[%s7 + $0x4] sm:$0xf]
  %v917 = vld [vmem:[%s7 + $0x8] sm:$0xf]
  %v918 = vld [vmem:[%s7 + $0xc] sm:$0xf]
  %919 = vrot.lane.b32.xlu0 %v907, 64
  %v920 = vpop.permute.xlu0 %919
  %v925 = vunpack.c.l.b16 %v915
  %v926 = vunpack.c.l.b16 %v916
  %v927 = vunpack.c.l.b16 %v917
  %v928 = vunpack.c.l.b16 %v918
  %v929 = vpack.c.b16 %v926, %v925
  %v930 = vpack.c.b16 %v928, %v927
  %v934 = vsel %vm65, %v920, 0
  %936 = vmatprep.subr.bf16.mxu0 0
  %937 = vmatpush1.bf16.msra.mxu0 %v929
  %938 = vmatprep.subr.bf16.mxu0 0
  %939 = vmatpush1.bf16.msra.mxu0 %v930
  %940 = vmatprep.subr.bf16.mxu0 0
  %941 = vmatpush1.bf16.msra.mxu0 0
  %942 = vmatprep.subr.bf16.mxu0 0
  %943 = vmatpush1.bf16.msra.mxu0 0
  %944 = vmatprep.subr.bf16.mxu0 0
  %945 = vmatpush1.bf16.msra.mxu0 0
  %946 = vmatprep.subr.bf16.mxu0 0
  %947 = vmatpush1.bf16.msra.mxu0 0
  %948 = vmatprep.subr.bf16.mxu0 0
  %949 = vmatpush1.bf16.msra.mxu0 0
  %950 = vmatprep.subr.bf16.mxu0 0
  %951 = vmatpush1.bf16.msra.mxu0 0
  %952 = vmatprep.subr.bf16.mxu0 0
  %953 = vmatpush1.bf16.msra.mxu0 0
  %954 = vmatprep.subr.bf16.mxu0 0
  %955 = vmatpush1.bf16.msra.mxu0 0
  %956 = vmatprep.subr.bf16.mxu0 0
  %957 = vmatpush1.bf16.msra.mxu0 0
  %958 = vmatprep.subr.bf16.mxu0 0
  %959 = vmatpush1.bf16.msra.mxu0 0
  %960 = vmatprep.subr.bf16.mxu0 0
  %961 = vmatpush1.bf16.msra.mxu0 0
  %962 = vmatprep.subr.bf16.mxu0 0
  %963 = vmatpush1.bf16.msra.mxu0 0
  %964 = vmatprep.subr.bf16.mxu0 0
  %965 = vmatpush1.bf16.msra.mxu0 0
  %966 = vmatprep.subr.bf16.mxu0 0
  %967 = vmatpush1.bf16.msra.mxu0 0
  %968 = vmatprep.mubr.bf16.mxu0 0
  %969 = vmatmul.mubr.bf16.gmra.mrb[0].mxu0 %v934
  %v970 = vpop.f32.mrb[0].mxu0
  %v971 = vadd.f32 %v59, %v970
  %v972 = vpop.f32.mrb[0].mxu0
  %v973 = vpop.f32.mrb[0].mxu0
  %v974 = vpop.f32.mrb[0].mxu0
  %975 = vdwg.mxu0
  %976 = vst [vmem:[%s10] sm:$0xff] %v971
  %s977 = sld [smem:[#allocation5 + $0x1]]
  %p978 = scmp.eq.s32.totalorder %s977, 0
  // Predicated region
  $region38: #{seq2seq_forward.1} parent=0 // pred_check
    %p979 = pneg %p978
  $region39: #{seq2seq_forward.1} parent=0 // pred_check_branch
    %981 = sbr.rel (%p979) target = $region41
  $region40: #{seq2seq_forward.1} parent=0 // pred_region
    %982 = vmax.xlane.f32.xlu0 %v971
    %v983 = vpop.xlane.xlu0 %982
    %vm984 = vcmp.eq.f32.partialorder %v971, %v983
    %v985 = vsel %vm984, %v62, 128
    %v986 = vand.u32 %v985, 65535
    %v987 = vshra.s32 %v985, 16
    %v988 = vcvt.s32.f32 %v986
    %v989 = vcvt.s32.f32 %v987
    %990 = vmin.xlane.f32.xlu0 %v989
    %v991 = vpop.xlane.xlu0 %990
    %vm992 = vcmp.eq.f32.partialorder %v989, %v991
    %v993 = vsel %vm992, %v988, inf
    %994 = vmin.xlane.f32.xlu0 %v993
    %v995 = vpop.xlane.xlu0 %994
    %v996 = vcvt.f32.s32 %v995
    %v997 = vcvt.f32.s32 %v991
    %v998 = vshll.u32 %v997, 16
    %v999 = vadd.s32 %v998, %v996
    %vm1000 = vcmp.eq.s32.totalorder %v62, %v999
    %v1001 = vsel %vm1000, 1, 0
    %v1002 = vcvt.s32.f32 %v1001
    %v1003 = vpack.c.bf16 %v1002, %v1002
    %v1004 = vld [vmem:[%s9] sm:$0xf]
    %v1005 = vld [vmem:[%s9 + $0x4] sm:$0xf]
    %v1008 = vunpack.c.l.b16 %v1004
    %v1009 = vunpack.c.l.b16 %v1005
    %v1010 = vpack.c.b16 %v1009, %v1008
    %vm1012 = vcmask 130048
    %v1014 = vsel %vm1012, %v1003, 0
    %1016 = vmatprep.subr.bf16.mxu0 0
    %1017 = vmatpush1.bf16.msra.mxu0 %v1010
    %1018 = vmatprep.subr.bf16.mxu0 0
    %1019 = vmatpush1.bf16.msra.mxu0 0
    %1020 = vmatprep.subr.bf16.mxu0 0
    %1021 = vmatpush1.bf16.msra.mxu0 0
    %1022 = vmatprep.subr.bf16.mxu0 0
    %1023 = vmatpush1.bf16.msra.mxu0 0
    %1024 = vmatprep.subr.bf16.mxu0 0
    %1025 = vmatpush1.bf16.msra.mxu0 0
    %1026 = vmatprep.subr.bf16.mxu0 0
    %1027 = vmatpush1.bf16.msra.mxu0 0
    %1028 = vmatprep.subr.bf16.mxu0 0
    %1029 = vmatpush1.bf16.msra.mxu0 0
    %1030 = vmatprep.subr.bf16.mxu0 0
    %1031 = vmatpush1.bf16.msra.mxu0 0
    %1032 = vmatprep.subr.bf16.mxu0 0
    %1033 = vmatpush1.bf16.msra.mxu0 0
    %1034 = vmatprep.subr.bf16.mxu0 0
    %1035 = vmatpush1.bf16.msra.mxu0 0
    %1036 = vmatprep.subr.bf16.mxu0 0
    %1037 = vmatpush1.bf16.msra.mxu0 0
    %1038 = vmatprep.subr.bf16.mxu0 0
    %1039 = vmatpush1.bf16.msra.mxu0 0
    %1040 = vmatprep.subr.bf16.mxu0 0
    %1041 = vmatpush1.bf16.msra.mxu0 0
    %1042 = vmatprep.subr.bf16.mxu0 0
    %1043 = vmatpush1.bf16.msra.mxu0 0
    %1044 = vmatprep.subr.bf16.mxu0 0
    %1045 = vmatpush1.bf16.msra.mxu0 0
    %1046 = vmatprep.subr.bf16.mxu0 0
    %1047 = vmatpush1.bf16.msra.mxu0 0
    %1048 = vmatprep.mubr.bf16.mxu0 0
    %1049 = vmatmul.mubr.bf16.gmra.mrb[0].mxu0 %v1014
    %v1050 = vpop.f32.mrb[0].mxu0
    %v1051 = vadd.f32 0.0, %v1050
    %v1052 = vpop.f32.mrb[0].mxu0
    %v1053 = vpop.f32.mrb[0].mxu0
    %v1054 = vpop.f32.mrb[0].mxu0
    %1055 = vdwg.mxu0
    %v1056 = vpack.c.bf16 %v1051, %v1051
    %1057 = vst.msk [vmem:[#allocation2] sm:$0xf] %vm68, %v1056
  $region41: #{seq2seq_forward.1} parent=0 // pred_fallthru
    _
  %p1058 = scmp.ne.s32.totalorder %s977, 0
  // Predicated region
  $region42: #{seq2seq_forward.1} parent=0 // pred_check
    %p1059 = pneg %p1058
  $region43: #{seq2seq_forward.1} parent=0 // pred_check_branch
    %1061 = sbr.rel (%p1059) target = $region45
  $region44: #{seq2seq_forward.1} parent=0 // pred_region
    %s1062 = scalar_lea.vmem %s2, 4
    %v1063 = vld [vmem:[%s1062] sm:$0xf]
    %1064 = vst.msk [vmem:[#allocation2] sm:$0xf] %vm68, %v1063
  $region45: #{seq2seq_forward.1} parent=0 // pred_fallthru
    _
  %v1065 = vld [vmem:[#allocation2] sm:$0xf]
  %v1066 = vld [vmem:[%s5] sm:$0xf]
  %v1067 = vld [vmem:[%s5 + $0x4] sm:$0xf]
  %v1068 = vld [vmem:[%s5 + $0x8] sm:$0xf]
  %v1069 = vld [vmem:[%s5 + $0xc] sm:$0xf]
  %v1070 = vld [vmem:[%s5 + $0x10] sm:$0xf]
  %v1071 = vld [vmem:[%s5 + $0x14] sm:$0xf]
  %v1072 = vld [vmem:[%s5 + $0x18] sm:$0xf]
  %v1073 = vld [vmem:[%s5 + $0x1c] sm:$0xf]
  %v1082 = vunpack.c.l.b16 %v1066
  %v1083 = vunpack.c.l.b16 %v1067
  %v1084 = vunpack.c.l.b16 %v1068
  %v1085 = vunpack.c.l.b16 %v1069
  %v1086 = vunpack.c.l.b16 %v1070
  %v1087 = vunpack.c.l.b16 %v1071
  %v1088 = vunpack.c.l.b16 %v1072
  %v1089 = vunpack.c.l.b16 %v1073
  %v1090 = vpack.c.b16 %v1083, %v1082
  %v1091 = vpack.c.b16 %v1085, %v1084
  %v1092 = vpack.c.b16 %v1087, %v1086
  %v1093 = vpack.c.b16 %v1089, %v1088
  %v1099 = vsel %vm103, %v1065, 0
  %1101 = vmatprep.subr.bf16.mxu0 0
  %1102 = vmatpush1.bf16.msra.mxu0 %v1090
  %1103 = vmatprep.subr.bf16.mxu0 0
  %1104 = vmatpush1.bf16.msra.mxu0 %v1091
  %1105 = vmatprep.subr.bf16.mxu0 0
  %1106 = vmatpush1.bf16.msra.mxu0 %v1092
  %1107 = vmatprep.subr.bf16.mxu0 0
  %1108 = vmatpush1.bf16.msra.mxu0 %v1093
  %1109 = vmatprep.subr.bf16.mxu0 0
  %1110 = vmatpush1.bf16.msra.mxu0 0
  %1111 = vmatprep.subr.bf16.mxu0 0
  %1112 = vmatpush1.bf16.msra.mxu0 0
  %1113 = vmatprep.subr.bf16.mxu0 0
  %1114 = vmatpush1.bf16.msra.mxu0 0
  %1115 = vmatprep.subr.bf16.mxu0 0
  %1116 = vmatpush1.bf16.msra.mxu0 0
  %1117 = vmatprep.subr.bf16.mxu0 0
  %1118 = vmatpush1.bf16.msra.mxu0 0
  %1119 = vmatprep.subr.bf16.mxu0 0
  %1120 = vmatpush1.bf16.msra.mxu0 0
  %1121 = vmatprep.subr.bf16.mxu0 0
  %1122 = vmatpush1.bf16.msra.mxu0 0
  %1123 = vmatprep.subr.bf16.mxu0 0
  %1124 = vmatpush1.bf16.msra.mxu0 0
  %1125 = vmatprep.subr.bf16.mxu0 0
  %1126 = vmatpush1.bf16.msra.mxu0 0
  %1127 = vmatprep.subr.bf16.mxu0 0
  %1128 = vmatpush1.bf16.msra.mxu0 0
  %1129 = vmatprep.subr.bf16.mxu0 0
  %1130 = vmatpush1.bf16.msra.mxu0 0
  %1131 = vmatprep.subr.bf16.mxu0 0
  %1132 = vmatpush1.bf16.msra.mxu0 0
  %1133 = vmatprep.mubr.bf16.mxu0 0
  %1134 = vmatmul.mubr.bf16.gmra.mrb[0].mxu0 %v1099
  %v1135 = vpop.f32.mrb[0].mxu0
  %v1136 = vadd.f32 %v52, %v1135
  %v1137 = vpop.f32.mrb[0].mxu0
  %v1138 = vpop.f32.mrb[0].mxu0
  %v1139 = vpop.f32.mrb[0].mxu0
  %1140 = vdwg.mxu0
  %v1141 = vxor.u32 %v1136, 2147483648
  %v1142 = vmul.f32 %v1141, 1.442695
  %v1143 = vpow.pop %v1142
  %v1144 = vadd.f32 %v1143, 1.0
  %v1145 = vrcp.pop %v1144
  %v1146 = vmul.f32 1.0, %v1145
  %v1147 = vtanh.pop %v1136
  %v1148 = vld [vmem:[#allocation3] sm:$0xff]
  %1150 = vrot.lane.b32.xlu0 %v1148, 32
  %v1151 = vpop.permute.xlu0 %1150
  %v1153 = vmul.f32 %v1146, %v1151
  %1155 = vrot.lane.b32.xlu0 %v1147, 32
  %v1156 = vpop.permute.xlu0 %1155
  %v1158 = vmul.f32 %v1146, %v1156
  %1160 = vrot.lane.b32.xlu0 %v1158, 32
  %v1161 = vpop.permute.xlu0 %1160
  %v1163 = vadd.f32 %v1153, %v1161
  %v1164 = vtanh.pop %v1163
  %1166 = vrot.lane.b32.xlu0 %v1164, 32
  %v1167 = vpop.permute.xlu0 %1166
  %v1169 = vmul.f32 %v1146, %v1167
  %1171 = vrot.lane.b32.xlu0 %v1163, 96
  %v1172 = vpop.permute.xlu0 %1171
  %1174 = vst.msk [vmem:[#allocation3] sm:$0xff] %vm65, %v1172
  %v1175 = vpack.c.bf16 %v1169, %v1169
  %v1177 = vunpack.c.l.b16 %v1175
  %v1178 = vpack.c.b16 %v1177, %v1177
  %1179 = vrot.lane.b32.xlu0 %v1178, 96
  %v1180 = vpop.permute.xlu0 %1179
  %1182 = vst.msk [vmem:[#allocation2] sm:$0xf] %vm188, %v1180
  %v1183 = vld [vmem:[%s7] sm:$0xf]
  %v1184 = vld [vmem:[%s7 + $0x4] sm:$0xf]
  %v1185 = vld [vmem:[%s7 + $0x8] sm:$0xf]
  %v1186 = vld [vmem:[%s7 + $0xc] sm:$0xf]
  %1187 = vrot.lane.b32.xlu0 %v1175, 64
  %v1188 = vpop.permute.xlu0 %1187
  %v1193 = vunpack.c.l.b16 %v1183
  %v1194 = vunpack.c.l.b16 %v1184
  %v1195 = vunpack.c.l.b16 %v1185
  %v1196 = vunpack.c.l.b16 %v1186
  %v1197 = vpack.c.b16 %v1194, %v1193
  %v1198 = vpack.c.b16 %v1196, %v1195
  %v1202 = vsel %vm65, %v1188, 0
  %1204 = vmatprep.subr.bf16.mxu0 0
  %1205 = vmatpush1.bf16.msra.mxu0 %v1197
  %1206 = vmatprep.subr.bf16.mxu0 0
  %1207 = vmatpush1.bf16.msra.mxu0 %v1198
  %1208 = vmatprep.subr.bf16.mxu0 0
  %1209 = vmatpush1.bf16.msra.mxu0 0
  %1210 = vmatprep.subr.bf16.mxu0 0
  %1211 = vmatpush1.bf16.msra.mxu0 0
  %1212 = vmatprep.subr.bf16.mxu0 0
  %1213 = vmatpush1.bf16.msra.mxu0 0
  %1214 = vmatprep.subr.bf16.mxu0 0
  %1215 = vmatpush1.bf16.msra.mxu0 0
  %1216 = vmatprep.subr.bf16.mxu0 0
  %1217 = vmatpush1.bf16.msra.mxu0 0
  %1218 = vmatprep.subr.bf16.mxu0 0
  %1219 = vmatpush1.bf16.msra.mxu0 0
  %1220 = vmatprep.subr.bf16.mxu0 0
  %1221 = vmatpush1.bf16.msra.mxu0 0
  %1222 = vmatprep.subr.bf16.mxu0 0
  %1223 = vmatpush1.bf16.msra.mxu0 0
  %1224 = vmatprep.subr.bf16.mxu0 0
  %1225 = vmatpush1.bf16.msra.mxu0 0
  %1226 = vmatprep.subr.bf16.mxu0 0
  %1227 = vmatpush1.bf16.msra.mxu0 0
  %1228 = vmatprep.subr.bf16.mxu0 0
  %1229 = vmatpush1.bf16.msra.mxu0 0
  %1230 = vmatprep.subr.bf16.mxu0 0
  %1231 = vmatpush1.bf16.msra.mxu0 0
  %1232 = vmatprep.subr.bf16.mxu0 0
  %1233 = vmatpush1.bf16.msra.mxu0 0
  %1234 = vmatprep.subr.bf16.mxu0 0
  %1235 = vmatpush1.bf16.msra.mxu0 0
  %1236 = vmatprep.mubr.bf16.mxu0 0
  %1237 = vmatmul.mubr.bf16.gmra.mrb[0].mxu0 %v1202
  %v1238 = vpop.f32.mrb[0].mxu0
  %v1239 = vadd.f32 %v59, %v1238
  %v1240 = vpop.f32.mrb[0].mxu0
  %v1241 = vpop.f32.mrb[0].mxu0
  %v1242 = vpop.f32.mrb[0].mxu0
  %1243 = vdwg.mxu0
  %s1244 = scalar_lea.vmem %s10, 8
  %1245 = vst [vmem:[%s1244] sm:$0xff] %v1239
  %s1246 = sld [smem:[#allocation5 + $0x2]]
  %p1247 = scmp.eq.s32.totalorder %s1246, 0
  // Predicated region
  $region46: #{seq2seq_forward.1} parent=0 // pred_check
    %p1248 = pneg %p1247
  $region47: #{seq2seq_forward.1} parent=0 // pred_check_branch
    %1250 = sbr.rel (%p1248) target = $region49
  $region48: #{seq2seq_forward.1} parent=0 // pred_region
    %1251 = vmax.xlane.f32.xlu0 %v1239
    %v1252 = vpop.xlane.xlu0 %1251
    %vm1253 = vcmp.eq.f32.partialorder %v1239, %v1252
    %v1254 = vsel %vm1253, %v62, 128
    %v1255 = vand.u32 %v1254, 65535
    %v1256 = vshra.s32 %v1254, 16
    %v1257 = vcvt.s32.f32 %v1255
    %v1258 = vcvt.s32.f32 %v1256
    %1259 = vmin.xlane.f32.xlu0 %v1258
    %v1260 = vpop.xlane.xlu0 %1259
    %vm1261 = vcmp.eq.f32.partialorder %v1258, %v1260
    %v1262 = vsel %vm1261, %v1257, inf
    %1263 = vmin.xlane.f32.xlu0 %v1262
    %v1264 = vpop.xlane.xlu0 %1263
    %v1265 = vcvt.f32.s32 %v1264
    %v1266 = vcvt.f32.s32 %v1260
    %v1267 = vshll.u32 %v1266, 16
    %v1268 = vadd.s32 %v1267, %v1265
    %vm1269 = vcmp.eq.s32.totalorder %v62, %v1268
    %v1270 = vsel %vm1269, 1, 0
    %v1271 = vcvt.s32.f32 %v1270
    %v1272 = vpack.c.bf16 %v1271, %v1271
    %v1273 = vld [vmem:[%s9] sm:$0xf]
    %v1274 = vld [vmem:[%s9 + $0x4] sm:$0xf]
    %v1277 = vunpack.c.l.b16 %v1273
    %v1278 = vunpack.c.l.b16 %v1274
    %v1279 = vpack.c.b16 %v1278, %v1277
    %vm1281 = vcmask 130048
    %v1283 = vsel %vm1281, %v1272, 0
    %1285 = vmatprep.subr.bf16.mxu0 0
    %1286 = vmatpush1.bf16.msra.mxu0 %v1279
    %1287 = vmatprep.subr.bf16.mxu0 0
    %1288 = vmatpush1.bf16.msra.mxu0 0
    %1289 = vmatprep.subr.bf16.mxu0 0
    %1290 = vmatpush1.bf16.msra.mxu0 0
    %1291 = vmatprep.subr.bf16.mxu0 0
    %1292 = vmatpush1.bf16.msra.mxu0 0
    %1293 = vmatprep.subr.bf16.mxu0 0
    %1294 = vmatpush1.bf16.msra.mxu0 0
    %1295 = vmatprep.subr.bf16.mxu0 0
    %1296 = vmatpush1.bf16.msra.mxu0 0
    %1297 = vmatprep.subr.bf16.mxu0 0
    %1298 = vmatpush1.bf16.msra.mxu0 0
    %1299 = vmatprep.subr.bf16.mxu0 0
    %1300 = vmatpush1.bf16.msra.mxu0 0
    %1301 = vmatprep.subr.bf16.mxu0 0
    %1302 = vmatpush1.bf16.msra.mxu0 0
    %1303 = vmatprep.subr.bf16.mxu0 0
    %1304 = vmatpush1.bf16.msra.mxu0 0
    %1305 = vmatprep.subr.bf16.mxu0 0
    %1306 = vmatpush1.bf16.msra.mxu0 0
    %1307 = vmatprep.subr.bf16.mxu0 0
    %1308 = vmatpush1.bf16.msra.mxu0 0
    %1309 = vmatprep.subr.bf16.mxu0 0
    %1310 = vmatpush1.bf16.msra.mxu0 0
    %1311 = vmatprep.subr.bf16.mxu0 0
    %1312 = vmatpush1.bf16.msra.mxu0 0
    %1313 = vmatprep.subr.bf16.mxu0 0
    %1314 = vmatpush1.bf16.msra.mxu0 0
    %1315 = vmatprep.subr.bf16.mxu0 0
    %1316 = vmatpush1.bf16.msra.mxu0 0
    %1317 = vmatprep.mubr.bf16.mxu0 0
    %1318 = vmatmul.mubr.bf16.gmra.mrb[0].mxu0 %v1283
    %v1319 = vpop.f32.mrb[0].mxu0
    %v1320 = vadd.f32 0.0, %v1319
    %v1321 = vpop.f32.mrb[0].mxu0
    %v1322 = vpop.f32.mrb[0].mxu0
    %v1323 = vpop.f32.mrb[0].mxu0
    %1324 = vdwg.mxu0
    %v1325 = vpack.c.bf16 %v1320, %v1320
    %1326 = vst.msk [vmem:[#allocation2] sm:$0xf] %vm68, %v1325
  $region49: #{seq2seq_forward.1} parent=0 // pred_fallthru
    _
  %p1327 = scmp.ne.s32.totalorder %s1246, 0
  // Predicated region
  $region50: #{seq2seq_forward.1} parent=0 // pred_check
    %p1328 = pneg %p1327
  $region51: #{seq2seq_forward.1} parent=0 // pred_check_branch
    %1330 = sbr.rel (%p1328) target = $region53
  $region52: #{seq2seq_forward.1} parent=0 // pred_region
    %s1331 = scalar_lea.vmem %s2, 8
    %v1332 = vld [vmem:[%s1331] sm:$0xf]
    %1333 = vst.msk [vmem:[#allocation2] sm:$0xf] %vm68, %v1332
  $region53: #{seq2seq_forward.1} parent=0 // pred_fallthru
    _
  %v1334 = vld [vmem:[#allocation2] sm:$0xf]
  %v1335 = vld [vmem:[%s5] sm:$0xf]
  %v1336 = vld [vmem:[%s5 + $0x4] sm:$0xf]
  %v1337 = vld [vmem:[%s5 + $0x8] sm:$0xf]
  %v1338 = vld [vmem:[%s5 + $0xc] sm:$0xf]
  %v1339 = vld [vmem:[%s5 + $0x10] sm:$0xf]
  %v1340 = vld [vmem:[%s5 + $0x14] sm:$0xf]
  %v1341 = vld [vmem:[%s5 + $0x18] sm:$0xf]
  %v1342 = vld [vmem:[%s5 + $0x1c] sm:$0xf]
  %v1351 = vunpack.c.l.b16 %v1335
  %v1352 = vunpack.c.l.b16 %v1336
  %v1353 = vunpack.c.l.b16 %v1337
  %v1354 = vunpack.c.l.b16 %v1338
  %v1355 = vunpack.c.l.b16 %v1339
  %v1356 = vunpack.c.l.b16 %v1340
  %v1357 = vunpack.c.l.b16 %v1341
  %v1358 = vunpack.c.l.b16 %v1342
  %v1359 = vpack.c.b16 %v1352, %v1351
  %v1360 = vpack.c.b16 %v1354, %v1353
  %v1361 = vpack.c.b16 %v1356, %v1355
  %v1362 = vpack.c.b16 %v1358, %v1357
  %v1368 = vsel %vm103, %v1334, 0
  %1370 = vmatprep.subr.bf16.mxu0 0
  %1371 = vmatpush1.bf16.msra.mxu0 %v1359
  %1372 = vmatprep.subr.bf16.mxu0 0
  %1373 = vmatpush1.bf16.msra.mxu0 %v1360
  %1374 = vmatprep.subr.bf16.mxu0 0
  %1375 = vmatpush1.bf16.msra.mxu0 %v1361
  %1376 = vmatprep.subr.bf16.mxu0 0
  %1377 = vmatpush1.bf16.msra.mxu0 %v1362
  %1378 = vmatprep.subr.bf16.mxu0 0
  %1379 = vmatpush1.bf16.msra.mxu0 0
  %1380 = vmatprep.subr.bf16.mxu0 0
  %1381 = vmatpush1.bf16.msra.mxu0 0
  %1382 = vmatprep.subr.bf16.mxu0 0
  %1383 = vmatpush1.bf16.msra.mxu0 0
  %1384 = vmatprep.subr.bf16.mxu0 0
  %1385 = vmatpush1.bf16.msra.mxu0 0
  %1386 = vmatprep.subr.bf16.mxu0 0
  %1387 = vmatpush1.bf16.msra.mxu0 0
  %1388 = vmatprep.subr.bf16.mxu0 0
  %1389 = vmatpush1.bf16.msra.mxu0 0
  %1390 = vmatprep.subr.bf16.mxu0 0
  %1391 = vmatpush1.bf16.msra.mxu0 0
  %1392 = vmatprep.subr.bf16.mxu0 0
  %1393 = vmatpush1.bf16.msra.mxu0 0
  %1394 = vmatprep.subr.bf16.mxu0 0
  %1395 = vmatpush1.bf16.msra.mxu0 0
  %1396 = vmatprep.subr.bf16.mxu0 0
  %1397 = vmatpush1.bf16.msra.mxu0 0
  %1398 = vmatprep.subr.bf16.mxu0 0
  %1399 = vmatpush1.bf16.msra.mxu0 0
  %1400 = vmatprep.subr.bf16.mxu0 0
  %1401 = vmatpush1.bf16.msra.mxu0 0
  %1402 = vmatprep.mubr.bf16.mxu0 0
  %1403 = vmatmul.mubr.bf16.gmra.mrb[0].mxu0 %v1368
  %v1404 = vpop.f32.mrb[0].mxu0
  %v1405 = vadd.f32 %v52, %v1404
  %v1406 = vpop.f32.mrb[0].mxu0
  %v1407 = vpop.f32.mrb[0].mxu0
  %v1408 = vpop.f32.mrb[0].mxu0
  %1409 = vdwg.mxu0
  %v1410 = vxor.u32 %v1405, 2147483648
  %v1411 = vmul.f32 %v1410, 1.442695
  %v1412 = vpow.pop %v1411
  %v1413 = vadd.f32 %v1412, 1.0
  %v1414 = vrcp.pop %v1413
  %v1415 = vmul.f32 1.0, %v1414
  %v1416 = vtanh.pop %v1405
  %v1417 = vld [vmem:[#allocation3] sm:$0xff]
  %1419 = vrot.lane.b32.xlu0 %v1417, 32
  %v1420 = vpop.permute.xlu0 %1419
  %v1422 = vmul.f32 %v1415, %v1420
  %1424 = vrot.lane.b32.xlu0 %v1416, 32
  %v1425 = vpop.permute.xlu0 %1424
  %v1427 = vmul.f32 %v1415, %v1425
  %1429 = vrot.lane.b32.xlu0 %v1427, 32
  %v1430 = vpop.permute.xlu0 %1429
  %v1432 = vadd.f32 %v1422, %v1430
  %v1433 = vtanh.pop %v1432
  %1435 = vrot.lane.b32.xlu0 %v1433, 32
  %v1436 = vpop.permute.xlu0 %1435
  %v1438 = vmul.f32 %v1415, %v1436
  %1440 = vrot.lane.b32.xlu0 %v1432, 96
  %v1441 = vpop.permute.xlu0 %1440
  %1443 = vst.msk [vmem:[#allocation3] sm:$0xff] %vm65, %v1441
  %v1444 = vpack.c.bf16 %v1438, %v1438
  %v1446 = vunpack.c.l.b16 %v1444
  %v1447 = vpack.c.b16 %v1446, %v1446
  %1448 = vrot.lane.b32.xlu0 %v1447, 96
  %v1449 = vpop.permute.xlu0 %1448
  %1451 = vst.msk [vmem:[#allocation2] sm:$0xf] %vm188, %v1449
  %v1452 = vld [vmem:[%s7] sm:$0xf]
  %v1453 = vld [vmem:[%s7 + $0x4] sm:$0xf]
  %v1454 = vld [vmem:[%s7 + $0x8] sm:$0xf]
  %v1455 = vld [vmem:[%s7 + $0xc] sm:$0xf]
  %1456 = vrot.lane.b32.xlu0 %v1444, 64
  %v1457 = vpop.permute.xlu0 %1456
  %v1462 = vunpack.c.l.b16 %v1452
  %v1463 = vunpack.c.l.b16 %v1453
  %v1464 = vunpack.c.l.b16 %v1454
  %v1465 = vunpack.c.l.b16 %v1455
  %v1466 = vpack.c.b16 %v1463, %v1462
  %v1467 = vpack.c.b16 %v1465, %v1464
  %v1471 = vsel %vm65, %v1457, 0
  %1473 = vmatprep.subr.bf16.mxu0 0
  %1474 = vmatpush1.bf16.msra.mxu0 %v1466
  %1475 = vmatprep.subr.bf16.mxu0 0
  %1476 = vmatpush1.bf16.msra.mxu0 %v1467
  %1477 = vmatprep.subr.bf16.mxu0 0
  %1478 = vmatpush1.bf16.msra.mxu0 0
  %1479 = vmatprep.subr.bf16.mxu0 0
  %1480 = vmatpush1.bf16.msra.mxu0 0
  %1481 = vmatprep.subr.bf16.mxu0 0
  %1482 = vmatpush1.bf16.msra.mxu0 0
  %1483 = vmatprep.subr.bf16.mxu0 0
  %1484 = vmatpush1.bf16.msra.mxu0 0
  %1485 = vmatprep.subr.bf16.mxu0 0
  %1486 = vmatpush1.bf16.msra.mxu0 0
  %1487 = vmatprep.subr.bf16.mxu0 0
  %1488 = vmatpush1.bf16.msra.mxu0 0
  %1489 = vmatprep.subr.bf16.mxu0 0
  %1490 = vmatpush1.bf16.msra.mxu0 0
  %1491 = vmatprep.subr.bf16.mxu0 0
  %1492 = vmatpush1.bf16.msra.mxu0 0
  %1493 = vmatprep.subr.bf16.mxu0 0
  %1494 = vmatpush1.bf16.msra.mxu0 0
  %1495 = vmatprep.subr.bf16.mxu0 0
  %1496 = vmatpush1.bf16.msra.mxu0 0
  %1497 = vmatprep.subr.bf16.mxu0 0
  %1498 = vmatpush1.bf16.msra.mxu0 0
  %1499 = vmatprep.subr.bf16.mxu0 0
  %1500 = vmatpush1.bf16.msra.mxu0 0
  %1501 = vmatprep.subr.bf16.mxu0 0
  %1502 = vmatpush1.bf16.msra.mxu0 0
  %1503 = vmatprep.subr.bf16.mxu0 0
  %1504 = vmatpush1.bf16.msra.mxu0 0
  %1505 = vmatprep.mubr.bf16.mxu0 0
  %1506 = vmatmul.mubr.bf16.gmra.mrb[0].mxu0 %v1471
  %v1507 = vpop.f32.mrb[0].mxu0
  %v1508 = vadd.f32 %v59, %v1507
  %v1509 = vpop.f32.mrb[0].mxu0
  %v1510 = vpop.f32.mrb[0].mxu0
  %v1511 = vpop.f32.mrb[0].mxu0
  %1512 = vdwg.mxu0
  %s1513 = scalar_lea.vmem %s10, 16
  %1514 = vst [vmem:[%s1513] sm:$0xff] %v1508
  %s1515 = sld [smem:[#allocation5 + $0x3]]
  %p1516 = scmp.eq.s32.totalorder %s1515, 0
  // Predicated region
  $region54: #{seq2seq_forward.1} parent=0 // pred_check
    %p1517 = pneg %p1516
  $region55: #{seq2seq_forward.1} parent=0 // pred_check_branch
    %1519 = sbr.rel (%p1517) target = $region57
  $region56: #{seq2seq_forward.1} parent=0 // pred_region
    %1520 = vmax.xlane.f32.xlu0 %v1508
    %v1521 = vpop.xlane.xlu0 %1520
    %vm1522 = vcmp.eq.f32.partialorder %v1508, %v1521
    %v1523 = vsel %vm1522, %v62, 128
    %v1524 = vand.u32 %v1523, 65535
    %v1525 = vshra.s32 %v1523, 16
    %v1526 = vcvt.s32.f32 %v1524
    %v1527 = vcvt.s32.f32 %v1525
    %1528 = vmin.xlane.f32.xlu0 %v1527
    %v1529 = vpop.xlane.xlu0 %1528
    %vm1530 = vcmp.eq.f32.partialorder %v1527, %v1529
    %v1531 = vsel %vm1530, %v1526, inf
    %1532 = vmin.xlane.f32.xlu0 %v1531
    %v1533 = vpop.xlane.xlu0 %1532
    %v1534 = vcvt.f32.s32 %v1533
    %v1535 = vcvt.f32.s32 %v1529
    %v1536 = vshll.u32 %v1535, 16
    %v1537 = vadd.s32 %v1536, %v1534
    %vm1538 = vcmp.eq.s32.totalorder %v62, %v1537
    %v1539 = vsel %vm1538, 1, 0
    %v1540 = vcvt.s32.f32 %v1539
    %v1541 = vpack.c.bf16 %v1540, %v1540
    %v1542 = vld [vmem:[%s9] sm:$0xf]
    %v1543 = vld [vmem:[%s9 + $0x4] sm:$0xf]
    %v1546 = vunpack.c.l.b16 %v1542
    %v1547 = vunpack.c.l.b16 %v1543
    %v1548 = vpack.c.b16 %v1547, %v1546
    %vm1550 = vcmask 130048
    %v1552 = vsel %vm1550, %v1541, 0
    %1554 = vmatprep.subr.bf16.mxu0 0
    %1555 = vmatpush1.bf16.msra.mxu0 %v1548
    %1556 = vmatprep.subr.bf16.mxu0 0
    %1557 = vmatpush1.bf16.msra.mxu0 0
    %1558 = vmatprep.subr.bf16.mxu0 0
    %1559 = vmatpush1.bf16.msra.mxu0 0
    %1560 = vmatprep.subr.bf16.mxu0 0
    %1561 = vmatpush1.bf16.msra.mxu0 0
    %1562 = vmatprep.subr.bf16.mxu0 0
    %1563 = vmatpush1.bf16.msra.mxu0 0
    %1564 = vmatprep.subr.bf16.mxu0 0
    %1565 = vmatpush1.bf16.msra.mxu0 0
    %1566 = vmatprep.subr.bf16.mxu0 0
    %1567 = vmatpush1.bf16.msra.mxu0 0
    %1568 = vmatprep.subr.bf16.mxu0 0
    %1569 = vmatpush1.bf16.msra.mxu0 0
    %1570 = vmatprep.subr.bf16.mxu0 0
    %1571 = vmatpush1.bf16.msra.mxu0 0
    %1572 = vmatprep.subr.bf16.mxu0 0
    %1573 = vmatpush1.bf16.msra.mxu0 0
    %1574 = vmatprep.subr.bf16.mxu0 0
    %1575 = vmatpush1.bf16.msra.mxu0 0
    %1576 = vmatprep.subr.bf16.mxu0 0
    %1577 = vmatpush1.bf16.msra.mxu0 0
    %1578 = vmatprep.subr.bf16.mxu0 0
    %1579 = vmatpush1.bf16.msra.mxu0 0
    %1580 = vmatprep.subr.bf16.mxu0 0
    %1581 = vmatpush1.bf16.msra.mxu0 0
    %1582 = vmatprep.subr.bf16.mxu0 0
    %1583 = vmatpush1.bf16.msra.mxu0 0
    %1584 = vmatprep.subr.bf16.mxu0 0
    %1585 = vmatpush1.bf16.msra.mxu0 0
    %1586 = vmatprep.mubr.bf16.mxu0 0
    %1587 = vmatmul.mubr.bf16.gmra.mrb[0].mxu0 %v1552
    %v1588 = vpop.f32.mrb[0].mxu0
    %v1589 = vadd.f32 0.0, %v1588
    %v1590 = vpop.f32.mrb[0].mxu0
    %v1591 = vpop.f32.mrb[0].mxu0
    %v1592 = vpop.f32.mrb[0].mxu0
    %1593 = vdwg.mxu0
    %v1594 = vpack.c.bf16 %v1589, %v1589
    %1595 = vst.msk [vmem:[#allocation2] sm:$0xf] %vm68, %v1594
  $region57: #{seq2seq_forward.1} parent=0 // pred_fallthru
    _
  %p1596 = scmp.ne.s32.totalorder %s1515, 0
  // Predicated region
  $region58: #{seq2seq_forward.1} parent=0 // pred_check
    %p1597 = pneg %p1596
  $region59: #{seq2seq_forward.1} parent=0 // pred_check_branch
    %1599 = sbr.rel (%p1597) target = $region61
  $region60: #{seq2seq_forward.1} parent=0 // pred_region
    %s1600 = scalar_lea.vmem %s2, 12
    %v1601 = vld [vmem:[%s1600] sm:$0xf]
    %1602 = vst.msk [vmem:[#allocation2] sm:$0xf] %vm68, %v1601
  $region61: #{seq2seq_forward.1} parent=0 // pred_fallthru
    _
  %v1603 = vld [vmem:[#allocation2] sm:$0xf]
  %v1604 = vld [vmem:[%s5] sm:$0xf]
  %v1605 = vld [vmem:[%s5 + $0x4] sm:$0xf]
  %v1606 = vld [vmem:[%s5 + $0x8] sm:$0xf]
  %v1607 = vld [vmem:[%s5 + $0xc] sm:$0xf]
  %v1608 = vld [vmem:[%s5 + $0x10] sm:$0xf]
  %v1609 = vld [vmem:[%s5 + $0x14] sm:$0xf]
  %v1610 = vld [vmem:[%s5 + $0x18] sm:$0xf]
  %v1611 = vld [vmem:[%s5 + $0x1c] sm:$0xf]
  %v1620 = vunpack.c.l.b16 %v1604
  %v1621 = vunpack.c.l.b16 %v1605
  %v1622 = vunpack.c.l.b16 %v1606
  %v1623 = vunpack.c.l.b16 %v1607
  %v1624 = vunpack.c.l.b16 %v1608
  %v1625 = vunpack.c.l.b16 %v1609
  %v1626 = vunpack.c.l.b16 %v1610
  %v1627 = vunpack.c.l.b16 %v1611
  %v1628 = vpack.c.b16 %v1621, %v1620
  %v1629 = vpack.c.b16 %v1623, %v1622
  %v1630 = vpack.c.b16 %v1625, %v1624
  %v1631 = vpack.c.b16 %v1627, %v1626
  %v1637 = vsel %vm103, %v1603, 0
  %1639 = vmatprep.subr.bf16.mxu0 0
  %1640 = vmatpush1.bf16.msra.mxu0 %v1628
  %1641 = vmatprep.subr.bf16.mxu0 0
  %1642 = vmatpush1.bf16.msra.mxu0 %v1629
  %1643 = vmatprep.subr.bf16.mxu0 0
  %1644 = vmatpush1.bf16.msra.mxu0 %v1630
  %1645 = vmatprep.subr.bf16.mxu0 0
  %1646 = vmatpush1.bf16.msra.mxu0 %v1631
  %1647 = vmatprep.subr.bf16.mxu0 0
  %1648 = vmatpush1.bf16.msra.mxu0 0
  %1649 = vmatprep.subr.bf16.mxu0 0
  %1650 = vmatpush1.bf16.msra.mxu0 0
  %1651 = vmatprep.subr.bf16.mxu0 0
  %1652 = vmatpush1.bf16.msra.mxu0 0
  %1653 = vmatprep.subr.bf16.mxu0 0
  %1654 = vmatpush1.bf16.msra.mxu0 0
  %1655 = vmatprep.subr.bf16.mxu0 0
  %1656 = vmatpush1.bf16.msra.mxu0 0
  %1657 = vmatprep.subr.bf16.mxu0 0
  %1658 = vmatpush1.bf16.msra.mxu0 0
  %1659 = vmatprep.subr.bf16.mxu0 0
  %1660 = vmatpush1.bf16.msra.mxu0 0
  %1661 = vmatprep.subr.bf16.mxu0 0
  %1662 = vmatpush1.bf16.msra.mxu0 0
  %1663 = vmatprep.subr.bf16.mxu0 0
  %1664 = vmatpush1.bf16.msra.mxu0 0
  %1665 = vmatprep.subr.bf16.mxu0 0
  %1666 = vmatpush1.bf16.msra.mxu0 0
  %1667 = vmatprep.subr.bf16.mxu0 0
  %1668 = vmatpush1.bf16.msra.mxu0 0
  %1669 = vmatprep.subr.bf16.mxu0 0
  %1670 = vmatpush1.bf16.msra.mxu0 0
  %1671 = vmatprep.mubr.bf16.mxu0 0
  %1672 = vmatmul.mubr.bf16.gmra.mrb[0].mxu0 %v1637
  %v1673 = vpop.f32.mrb[0].mxu0
  %v1674 = vadd.f32 %v52, %v1673
  %v1675 = vpop.f32.mrb[0].mxu0
  %v1676 = vpop.f32.mrb[0].mxu0
  %v1677 = vpop.f32.mrb[0].mxu0
  %1678 = vdwg.mxu0
  %v1679 = vxor.u32 %v1674, 2147483648
  %v1680 = vmul.f32 %v1679, 1.442695
  %v1681 = vpow.pop %v1680
  %v1682 = vadd.f32 %v1681, 1.0
  %v1683 = vrcp.pop %v1682
  %v1684 = vmul.f32 1.0, %v1683
  %v1685 = vtanh.pop %v1674
  %v1686 = vld [vmem:[#allocation3] sm:$0xff]
  %1688 = vrot.lane.b32.xlu0 %v1686, 32
  %v1689 = vpop.permute.xlu0 %1688
  %v1691 = vmul.f32 %v1684, %v1689
  %1693 = vrot.lane.b32.xlu0 %v1685, 32
  %v1694 = vpop.permute.xlu0 %1693
  %v1696 = vmul.f32 %v1684, %v1694
  %1698 = vrot.lane.b32.xlu0 %v1696, 32
  %v1699 = vpop.permute.xlu0 %1698
  %v1701 = vadd.f32 %v1691, %v1699
  %v1702 = vtanh.pop %v1701
  %1704 = vrot.lane.b32.xlu0 %v1702, 32
  %v1705 = vpop.permute.xlu0 %1704
  %v1707 = vmul.f32 %v1684, %v1705
  %1709 = vrot.lane.b32.xlu0 %v1701, 96
  %v1710 = vpop.permute.xlu0 %1709
  %1712 = vst.msk [vmem:[#allocation3] sm:$0xff] %vm65, %v1710
  %v1713 = vpack.c.bf16 %v1707, %v1707
  %v1715 = vunpack.c.l.b16 %v1713
  %v1716 = vpack.c.b16 %v1715, %v1715
  %1717 = vrot.lane.b32.xlu0 %v1716, 96
  %v1718 = vpop.permute.xlu0 %1717
  %1720 = vst.msk [vmem:[#allocation2] sm:$0xf] %vm188, %v1718
  %v1721 = vld [vmem:[%s7] sm:$0xf]
  %v1722 = vld [vmem:[%s7 + $0x4] sm:$0xf]
  %v1723 = vld [vmem:[%s7 + $0x8] sm:$0xf]
  %v1724 = vld [vmem:[%s7 + $0xc] sm:$0xf]
  %1725 = vrot.lane.b32.xlu0 %v1713, 64
  %v1726 = vpop.permute.xlu0 %1725
  %v1731 = vunpack.c.l.b16 %v1721
  %v1732 = vunpack.c.l.b16 %v1722
  %v1733 = vunpack.c.l.b16 %v1723
  %v1734 = vunpack.c.l.b16 %v1724
  %v1735 = vpack.c.b16 %v1732, %v1731
  %v1736 = vpack.c.b16 %v1734, %v1733
  %v1740 = vsel %vm65, %v1726, 0
  %1742 = vmatprep.subr.bf16.mxu0 0
  %1743 = vmatpush1.bf16.msra.mxu0 %v1735
  %1744 = vmatprep.subr.bf16.mxu0 0
  %1745 = vmatpush1.bf16.msra.mxu0 %v1736
  %1746 = vmatprep.subr.bf16.mxu0 0
  %1747 = vmatpush1.bf16.msra.mxu0 0
  %1748 = vmatprep.subr.bf16.mxu0 0
  %1749 = vmatpush1.bf16.msra.mxu0 0
  %1750 = vmatprep.subr.bf16.mxu0 0
  %1751 = vmatpush1.bf16.msra.mxu0 0
  %1752 = vmatprep.subr.bf16.mxu0 0
  %1753 = vmatpush1.bf16.msra.mxu0 0
  %1754 = vmatprep.subr.bf16.mxu0 0
  %1755 = vmatpush1.bf16.msra.mxu0 0
  %1756 = vmatprep.subr.bf16.mxu0 0
  %1757 = vmatpush1.bf16.msra.mxu0 0
  %1758 = vmatprep.subr.bf16.mxu0 0
  %1759 = vmatpush1.bf16.msra.mxu0 0
  %1760 = vmatprep.subr.bf16.mxu0 0
  %1761 = vmatpush1.bf16.msra.mxu0 0
  %1762 = vmatprep.subr.bf16.mxu0 0
  %1763 = vmatpush1.bf16.msra.mxu0 0
  %1764 = vmatprep.subr.bf16.mxu0 0
  %1765 = vmatpush1.bf16.msra.mxu0 0
  %1766 = vmatprep.subr.bf16.mxu0 0
  %1767 = vmatpush1.bf16.msra.mxu0 0
  %1768 = vmatprep.subr.bf16.mxu0 0
  %1769 = vmatpush1.bf16.msra.mxu0 0
  %1770 = vmatprep.subr.bf16.mxu0 0
  %1771 = vmatpush1.bf16.msra.mxu0 0
  %1772 = vmatprep.subr.bf16.mxu0 0
  %1773 = vmatpush1.bf16.msra.mxu0 0
  %1774 = vmatprep.mubr.bf16.mxu0 0
  %1775 = vmatmul.mubr.bf16.gmra.mrb[0].mxu0 %v1740
  %v1776 = vpop.f32.mrb[0].mxu0
  %v1777 = vadd.f32 %v59, %v1776
  %v1778 = vpop.f32.mrb[0].mxu0
  %v1779 = vpop.f32.mrb[0].mxu0
  %v1780 = vpop.f32.mrb[0].mxu0
  %1781 = vdwg.mxu0
  %s1782 = scalar_lea.vmem %s10, 24
  %1783 = vst [vmem:[%s1782] sm:$0xff] %v1777
  %s1784 = sld [smem:[#allocation5 + $0x4]]
  %p1785 = scmp.eq.s32.totalorder %s1784, 0
  // Predicated region
  $region62: #{seq2seq_forward.1} parent=0 // pred_check
    %p1786 = pneg %p1785
  $region63: #{seq2seq_forward.1} parent=0 // pred_check_branch
    %1788 = sbr.rel (%p1786) target = $region65
  $region64: #{seq2seq_forward.1} parent=0 // pred_region
    %1789 = vmax.xlane.f32.xlu0 %v1777
    %v1790 = vpop.xlane.xlu0 %1789
    %vm1791 = vcmp.eq.f32.partialorder %v1777, %v1790
    %v1792 = vsel %vm1791, %v62, 128
    %v1793 = vand.u32 %v1792, 65535
    %v1794 = vshra.s32 %v1792, 16
    %v1795 = vcvt.s32.f32 %v1793
    %v1796 = vcvt.s32.f32 %v1794
    %1797 = vmin.xlane.f32.xlu0 %v1796
    %v1798 = vpop.xlane.xlu0 %1797
    %vm1799 = vcmp.eq.f32.partialorder %v1796, %v1798
    %v1800 = vsel %vm1799, %v1795, inf
    %1801 = vmin.xlane.f32.xlu0 %v1800
    %v1802 = vpop.xlane.xlu0 %1801
    %v1803 = vcvt.f32.s32 %v1802
    %v1804 = vcvt.f32.s32 %v1798
    %v1805 = vshll.u32 %v1804, 16
    %v1806 = vadd.s32 %v1805, %v1803
    %vm1807 = vcmp.eq.s32.totalorder %v62, %v1806
    %v1808 = vsel %vm1807, 1, 0
    %v1809 = vcvt.s32.f32 %v1808
    %v1810 = vpack.c.bf16 %v1809, %v1809
    %v1811 = vld [vmem:[%s9] sm:$0xf]
    %v1812 = vld [vmem:[%s9 + $0x4] sm:$0xf]
    %v1815 = vunpack.c.l.b16 %v1811
    %v1816 = vunpack.c.l.b16 %v1812
    %v1817 = vpack.c.b16 %v1816, %v1815
    %vm1819 = vcmask 130048
    %v1821 = vsel %vm1819, %v1810, 0
    %1823 = vmatprep.subr.bf16.mxu0 0
    %1824 = vmatpush1.bf16.msra.mxu0 %v1817
    %1825 = vmatprep.subr.bf16.mxu0 0
    %1826 = vmatpush1.bf16.msra.mxu0 0
    %1827 = vmatprep.subr.bf16.mxu0 0
    %1828 = vmatpush1.bf16.msra.mxu0 0
    %1829 = vmatprep.subr.bf16.mxu0 0
    %1830 = vmatpush1.bf16.msra.mxu0 0
    %1831 = vmatprep.subr.bf16.mxu0 0
    %1832 = vmatpush1.bf16.msra.mxu0 0
    %1833 = vmatprep.subr.bf16.mxu0 0
    %1834 = vmatpush1.bf16.msra.mxu0 0
    %1835 = vmatprep.subr.bf16.mxu0 0
    %1836 = vmatpush1.bf16.msra.mxu0 0
    %1837 = vmatprep.subr.bf16.mxu0 0
    %1838 = vmatpush1.bf16.msra.mxu0 0
    %1839 = vmatprep.subr.bf16.mxu0 0
    %1840 = vmatpush1.bf16.msra.mxu0 0
    %1841 = vmatprep.subr.bf16.mxu0 0
    %1842 = vmatpush1.bf16.msra.mxu0 0
    %1843 = vmatprep.subr.bf16.mxu0 0
    %1844 = vmatpush1.bf16.msra.mxu0 0
    %1845 = vmatprep.subr.bf16.mxu0 0
    %1846 = vmatpush1.bf16.msra.mxu0 0
    %1847 = vmatprep.subr.bf16.mxu0 0
    %1848 = vmatpush1.bf16.msra.mxu0 0
    %1849 = vmatprep.subr.bf16.mxu0 0
    %1850 = vmatpush1.bf16.msra.mxu0 0
    %1851 = vmatprep.subr.bf16.mxu0 0
    %1852 = vmatpush1.bf16.msra.mxu0 0
    %1853 = vmatprep.subr.bf16.mxu0 0
    %1854 = vmatpush1.bf16.msra.mxu0 0
    %1855 = vmatprep.mubr.bf16.mxu0 0
    %1856 = vmatmul.mubr.bf16.gmra.mrb[0].mxu0 %v1821
    %v1857 = vpop.f32.mrb[0].mxu0
    %v1858 = vadd.f32 0.0, %v1857
    %v1859 = vpop.f32.mrb[0].mxu0
    %v1860 = vpop.f32.mrb[0].mxu0
    %v1861 = vpop.f32.mrb[0].mxu0
    %1862 = vdwg.mxu0
    %v1863 = vpack.c.bf16 %v1858, %v1858
    %1864 = vst.msk [vmem:[#allocation2] sm:$0xf] %vm68, %v1863
  $region65: #{seq2seq_forward.1} parent=0 // pred_fallthru
    _
  %p1865 = scmp.ne.s32.totalorder %s1784, 0
  // Predicated region
  $region66: #{seq2seq_forward.1} parent=0 // pred_check
    %p1866 = pneg %p1865
  $region67: #{seq2seq_forward.1} parent=0 // pred_check_branch
    %1868 = sbr.rel (%p1866) target = $region69
  $region68: #{seq2seq_forward.1} parent=0 // pred_region
    %s1869 = scalar_lea.vmem %s2, 16
    %v1870 = vld [vmem:[%s1869] sm:$0xf]
    %1871 = vst.msk [vmem:[#allocation2] sm:$0xf] %vm68, %v1870
  $region69: #{seq2seq_forward.1} parent=0 // pred_fallthru
    _
  %v1872 = vld [vmem:[#allocation2] sm:$0xf]
  %v1873 = vld [vmem:[%s5] sm:$0xf]
  %v1874 = vld [vmem:[%s5 + $0x4] sm:$0xf]
  %v1875 = vld [vmem:[%s5 + $0x8] sm:$0xf]
  %v1876 = vld [vmem:[%s5 + $0xc] sm:$0xf]
  %v1877 = vld [vmem:[%s5 + $0x10] sm:$0xf]
  %v1878 = vld [vmem:[%s5 + $0x14] sm:$0xf]
  %v1879 = vld [vmem:[%s5 + $0x18] sm:$0xf]
  %v1880 = vld [vmem:[%s5 + $0x1c] sm:$0xf]
  %v1889 = vunpack.c.l.b16 %v1873
  %v1890 = vunpack.c.l.b16 %v1874
  %v1891 = vunpack.c.l.b16 %v1875
  %v1892 = vunpack.c.l.b16 %v1876
  %v1893 = vunpack.c.l.b16 %v1877
  %v1894 = vunpack.c.l.b16 %v1878
  %v1895 = vunpack.c.l.b16 %v1879
  %v1896 = vunpack.c.l.b16 %v1880
  %v1897 = vpack.c.b16 %v1890, %v1889
  %v1898 = vpack.c.b16 %v1892, %v1891
  %v1899 = vpack.c.b16 %v1894, %v1893
  %v1900 = vpack.c.b16 %v1896, %v1895
  %v1906 = vsel %vm103, %v1872, 0
  %1908 = vmatprep.subr.bf16.mxu0 0
  %1909 = vmatpush1.bf16.msra.mxu0 %v1897
  %1910 = vmatprep.subr.bf16.mxu0 0
  %1911 = vmatpush1.bf16.msra.mxu0 %v1898
  %1912 = vmatprep.subr.bf16.mxu0 0
  %1913 = vmatpush1.bf16.msra.mxu0 %v1899
  %1914 = vmatprep.subr.bf16.mxu0 0
  %1915 = vmatpush1.bf16.msra.mxu0 %v1900
  %1916 = vmatprep.subr.bf16.mxu0 0
  %1917 = vmatpush1.bf16.msra.mxu0 0
  %1918 = vmatprep.subr.bf16.mxu0 0
  %1919 = vmatpush1.bf16.msra.mxu0 0
  %1920 = vmatprep.subr.bf16.mxu0 0
  %1921 = vmatpush1.bf16.msra.mxu0 0
  %1922 = vmatprep.subr.bf16.mxu0 0
  %1923 = vmatpush1.bf16.msra.mxu0 0
  %1924 = vmatprep.subr.bf16.mxu0 0
  %1925 = vmatpush1.bf16.msra.mxu0 0
  %1926 = vmatprep.subr.bf16.mxu0 0
  %1927 = vmatpush1.bf16.msra.mxu0 0
  %1928 = vmatprep.subr.bf16.mxu0 0
  %1929 = vmatpush1.bf16.msra.mxu0 0
  %1930 = vmatprep.subr.bf16.mxu0 0
  %1931 = vmatpush1.bf16.msra.mxu0 0
  %1932 = vmatprep.subr.bf16.mxu0 0
  %1933 = vmatpush1.bf16.msra.mxu0 0
  %1934 = vmatprep.subr.bf16.mxu0 0
  %1935 = vmatpush1.bf16.msra.mxu0 0
  %1936 = vmatprep.subr.bf16.mxu0 0
  %1937 = vmatpush1.bf16.msra.mxu0 0
  %1938 = vmatprep.subr.bf16.mxu0 0
  %1939 = vmatpush1.bf16.msra.mxu0 0
  %1940 = vmatprep.mubr.bf16.mxu0 0
  %1941 = vmatmul.mubr.bf16.gmra.mrb[0].mxu0 %v1906
  %v1942 = vpop.f32.mrb[0].mxu0
  %v1943 = vadd.f32 %v52, %v1942
  %v1944 = vpop.f32.mrb[0].mxu0
  %v1945 = vpop.f32.mrb[0].mxu0
  %v1946 = vpop.f32.mrb[0].mxu0
  %1947 = vdwg.mxu0
  %v1948 = vxor.u32 %v1943, 2147483648
  %v1949 = vmul.f32 %v1948, 1.442695
  %v1950 = vpow.pop %v1949
  %v1951 = vadd.f32 %v1950, 1.0
  %v1952 = vrcp.pop %v1951
  %v1953 = vmul.f32 1.0, %v1952
  %v1954 = vtanh.pop %v1943
  %v1955 = vld [vmem:[#allocation3] sm:$0xff]
  %1957 = vrot.lane.b32.xlu0 %v1955, 32
  %v1958 = vpop.permute.xlu0 %1957
  %v1960 = vmul.f32 %v1953, %v1958
  %1962 = vrot.lane.b32.xlu0 %v1954, 32
  %v1963 = vpop.permute.xlu0 %1962
  %v1965 = vmul.f32 %v1953, %v1963
  %1967 = vrot.lane.b32.xlu0 %v1965, 32
  %v1968 = vpop.permute.xlu0 %1967
  %v1970 = vadd.f32 %v1960, %v1968
  %v1971 = vtanh.pop %v1970
  %1973 = vrot.lane.b32.xlu0 %v1971, 32
  %v1974 = vpop.permute.xlu0 %1973
  %v1976 = vmul.f32 %v1953, %v1974
  %1978 = vrot.lane.b32.xlu0 %v1970, 96
  %v1979 = vpop.permute.xlu0 %1978
  %1981 = vst.msk [vmem:[#allocation3] sm:$0xff] %vm65, %v1979
  %v1982 = vpack.c.bf16 %v1976, %v1976
  %v1984 = vunpack.c.l.b16 %v1982
  %v1985 = vpack.c.b16 %v1984, %v1984
  %1986 = vrot.lane.b32.xlu0 %v1985, 96
  %v1987 = vpop.permute.xlu0 %1986
  %1989 = vst.msk [vmem:[#allocation2] sm:$0xf] %vm188, %v1987
  %v1990 = vld [vmem:[%s7] sm:$0xf]
  %v1991 = vld [vmem:[%s7 + $0x4] sm:$0xf]
  %v1992 = vld [vmem:[%s7 + $0x8] sm:$0xf]
  %v1993 = vld [vmem:[%s7 + $0xc] sm:$0xf]
  %1994 = vrot.lane.b32.xlu0 %v1982, 64
  %v1995 = vpop.permute.xlu0 %1994
  %v2000 = vunpack.c.l.b16 %v1990
  %v2001 = vunpack.c.l.b16 %v1991
  %v2002 = vunpack.c.l.b16 %v1992
  %v2003 = vunpack.c.l.b16 %v1993
  %v2004 = vpack.c.b16 %v2001, %v2000
  %v2005 = vpack.c.b16 %v2003, %v2002
  %v2009 = vsel %vm65, %v1995, 0
  %2011 = vmatprep.subr.bf16.mxu0 0
  %2012 = vmatpush1.bf16.msra.mxu0 %v2004
  %2013 = vmatprep.subr.bf16.mxu0 0
  %2014 = vmatpush1.bf16.msra.mxu0 %v2005
  %2015 = vmatprep.subr.bf16.mxu0 0
  %2016 = vmatpush1.bf16.msra.mxu0 0
  %2017 = vmatprep.subr.bf16.mxu0 0
  %2018 = vmatpush1.bf16.msra.mxu0 0
  %2019 = vmatprep.subr.bf16.mxu0 0
  %2020 = vmatpush1.bf16.msra.mxu0 0
  %2021 = vmatprep.subr.bf16.mxu0 0
  %2022 = vmatpush1.bf16.msra.mxu0 0
  %2023 = vmatprep.subr.bf16.mxu0 0
  %2024 = vmatpush1.bf16.msra.mxu0 0
  %2025 = vmatprep.subr.bf16.mxu0 0
  %2026 = vmatpush1.bf16.msra.mxu0 0
  %2027 = vmatprep.subr.bf16.mxu0 0
  %2028 = vmatpush1.bf16.msra.mxu0 0
  %2029 = vmatprep.subr.bf16.mxu0 0
  %2030 = vmatpush1.bf16.msra.mxu0 0
  %2031 = vmatprep.subr.bf16.mxu0 0
  %2032 = vmatpush1.bf16.msra.mxu0 0
  %2033 = vmatprep.subr.bf16.mxu0 0
  %2034 = vmatpush1.bf16.msra.mxu0 0
  %2035 = vmatprep.subr.bf16.mxu0 0
  %2036 = vmatpush1.bf16.msra.mxu0 0
  %2037 = vmatprep.subr.bf16.mxu0 0
  %2038 = vmatpush1.bf16.msra.mxu0 0
  %2039 = vmatprep.subr.bf16.mxu0 0
  %2040 = vmatpush1.bf16.msra.mxu0 0
  %2041 = vmatprep.subr.bf16.mxu0 0
  %2042 = vmatpush1.bf16.msra.mxu0 0
  %2043 = vmatprep.mubr.bf16.mxu0 0
  %2044 = vmatmul.mubr.bf16.gmra.mrb[0].mxu0 %v2009
  %v2045 = vpop.f32.mrb[0].mxu0
  %v2046 = vadd.f32 %v59, %v2045
  %v2047 = vpop.f32.mrb[0].mxu0
  %v2048 = vpop.f32.mrb[0].mxu0
  %v2049 = vpop.f32.mrb[0].mxu0
  %2050 = vdwg.mxu0
  %s2051 = scalar_lea.vmem %s10, 32
  %2052 = vst [vmem:[%s2051] sm:$0xff] %v2046
  %s2053 = sld [smem:[#allocation5 + $0x5]]
  %p2054 = scmp.eq.s32.totalorder %s2053, 0
  // Predicated region
  $region70: #{seq2seq_forward.1} parent=0 // pred_check
    %p2055 = pneg %p2054
  $region71: #{seq2seq_forward.1} parent=0 // pred_check_branch
    %2057 = sbr.rel (%p2055) target = $region73
  $region72: #{seq2seq_forward.1} parent=0 // pred_region
    %2058 = vmax.xlane.f32.xlu0 %v2046
    %v2059 = vpop.xlane.xlu0 %2058
    %vm2060 = vcmp.eq.f32.partialorder %v2046, %v2059
    %v2061 = vsel %vm2060, %v62, 128
    %v2062 = vand.u32 %v2061, 65535
    %v2063 = vshra.s32 %v2061, 16
    %v2064 = vcvt.s32.f32 %v2062
    %v2065 = vcvt.s32.f32 %v2063
    %2066 = vmin.xlane.f32.xlu0 %v2065
    %v2067 = vpop.xlane.xlu0 %2066
    %vm2068 = vcmp.eq.f32.partialorder %v2065, %v2067
    %v2069 = vsel %vm2068, %v2064, inf
    %2070 = vmin.xlane.f32.xlu0 %v2069
    %v2071 = vpop.xlane.xlu0 %2070
    %v2072 = vcvt.f32.s32 %v2071
    %v2073 = vcvt.f32.s32 %v2067
    %v2074 = vshll.u32 %v2073, 16
    %v2075 = vadd.s32 %v2074, %v2072
    %vm2076 = vcmp.eq.s32.totalorder %v62, %v2075
    %v2077 = vsel %vm2076, 1, 0
    %v2078 = vcvt.s32.f32 %v2077
    %v2079 = vpack.c.bf16 %v2078, %v2078
    %v2080 = vld [vmem:[%s9] sm:$0xf]
    %v2081 = vld [vmem:[%s9 + $0x4] sm:$0xf]
    %v2084 = vunpack.c.l.b16 %v2080
    %v2085 = vunpack.c.l.b16 %v2081
    %v2086 = vpack.c.b16 %v2085, %v2084
    %vm2088 = vcmask 130048
    %v2090 = vsel %vm2088, %v2079, 0
    %2092 = vmatprep.subr.bf16.mxu0 0
    %2093 = vmatpush1.bf16.msra.mxu0 %v2086
    %2094 = vmatprep.subr.bf16.mxu0 0
    %2095 = vmatpush1.bf16.msra.mxu0 0
    %2096 = vmatprep.subr.bf16.mxu0 0
    %2097 = vmatpush1.bf16.msra.mxu0 0
    %2098 = vmatprep.subr.bf16.mxu0 0
    %2099 = vmatpush1.bf16.msra.mxu0 0
    %2100 = vmatprep.subr.bf16.mxu0 0
    %2101 = vmatpush1.bf16.msra.mxu0 0
    %2102 = vmatprep.subr.bf16.mxu0 0
    %2103 = vmatpush1.bf16.msra.mxu0 0
    %2104 = vmatprep.subr.bf16.mxu0 0
    %2105 = vmatpush1.bf16.msra.mxu0 0
    %2106 = vmatprep.subr.bf16.mxu0 0
    %2107 = vmatpush1.bf16.msra.mxu0 0
    %2108 = vmatprep.subr.bf16.mxu0 0
    %2109 = vmatpush1.bf16.msra.mxu0 0
    %2110 = vmatprep.subr.bf16.mxu0 0
    %2111 = vmatpush1.bf16.msra.mxu0 0
    %2112 = vmatprep.subr.bf16.mxu0 0
    %2113 = vmatpush1.bf16.msra.mxu0 0
    %2114 = vmatprep.subr.bf16.mxu0 0
    %2115 = vmatpush1.bf16.msra.mxu0 0
    %2116 = vmatprep.subr.bf16.mxu0 0
    %2117 = vmatpush1.bf16.msra.mxu0 0
    %2118 = vmatprep.subr.bf16.mxu0 0
    %2119 = vmatpush1.bf16.msra.mxu0 0
    %2120 = vmatprep.subr.bf16.mxu0 0
    %2121 = vmatpush1.bf16.msra.mxu0 0
    %2122 = vmatprep.subr.bf16.mxu0 0
    %2123 = vmatpush1.bf16.msra.mxu0 0
    %2124 = vmatprep.mubr.bf16.mxu0 0
    %2125 = vmatmul.mubr.bf16.gmra.mrb[0].mxu0 %v2090
    %v2126 = vpop.f32.mrb[0].mxu0
    %v2127 = vadd.f32 0.0, %v2126
    %v2128 = vpop.f32.mrb[0].mxu0
    %v2129 = vpop.f32.mrb[0].mxu0
    %v2130 = vpop.f32.mrb[0].mxu0
    %2131 = vdwg.mxu0
    %v2132 = vpack.c.bf16 %v2127, %v2127
    %2133 = vst.msk [vmem:[#allocation2] sm:$0xf] %vm68, %v2132
  $region73: #{seq2seq_forward.1} parent=0 // pred_fallthru
    _
  %p2134 = scmp.ne.s32.totalorder %s2053, 0
  // Predicated region
  $region74: #{seq2seq_forward.1} parent=0 // pred_check
    %p2135 = pneg %p2134
  $region75: #{seq2seq_forward.1} parent=0 // pred_check_branch
    %2137 = sbr.rel (%p2135) target = $region77
  $region76: #{seq2seq_forward.1} parent=0 // pred_region
    %s2138 = scalar_lea.vmem %s2, 20
    %v2139 = vld [vmem:[%s2138] sm:$0xf]
    %2140 = vst.msk [vmem:[#allocation2] sm:$0xf] %vm68, %v2139
  $region77: #{seq2seq_forward.1} parent=0 // pred_fallthru
    _
  %v2141 = vld [vmem:[#allocation2] sm:$0xf]
  %v2142 = vld [vmem:[%s5] sm:$0xf]
  %v2143 = vld [vmem:[%s5 + $0x4] sm:$0xf]
  %v2144 = vld [vmem:[%s5 + $0x8] sm:$0xf]
  %v2145 = vld [vmem:[%s5 + $0xc] sm:$0xf]
  %v2146 = vld [vmem:[%s5 + $0x10] sm:$0xf]
  %v2147 = vld [vmem:[%s5 + $0x14] sm:$0xf]
  %v2148 = vld [vmem:[%s5 + $0x18] sm:$0xf]
  %v2149 = vld [vmem:[%s5 + $0x1c] sm:$0xf]
  %v2158 = vunpack.c.l.b16 %v2142
  %v2159 = vunpack.c.l.b16 %v2143
  %v2160 = vunpack.c.l.b16 %v2144
  %v2161 = vunpack.c.l.b16 %v2145
  %v2162 = vunpack.c.l.b16 %v2146
  %v2163 = vunpack.c.l.b16 %v2147
  %v2164 = vunpack.c.l.b16 %v2148
  %v2165 = vunpack.c.l.b16 %v2149
  %v2166 = vpack.c.b16 %v2159, %v2158
  %v2167 = vpack.c.b16 %v2161, %v2160
  %v2168 = vpack.c.b16 %v2163, %v2162
  %v2169 = vpack.c.b16 %v2165, %v2164
  %v2175 = vsel %vm103, %v2141, 0
  %2177 = vmatprep.subr.bf16.mxu0 0
  %2178 = vmatpush1.bf16.msra.mxu0 %v2166
  %2179 = vmatprep.subr.bf16.mxu0 0
  %2180 = vmatpush1.bf16.msra.mxu0 %v2167
  %2181 = vmatprep.subr.bf16.mxu0 0
  %2182 = vmatpush1.bf16.msra.mxu0 %v2168
  %2183 = vmatprep.subr.bf16.mxu0 0
  %2184 = vmatpush1.bf16.msra.mxu0 %v2169
  %2185 = vmatprep.subr.bf16.mxu0 0
  %2186 = vmatpush1.bf16.msra.mxu0 0
  %2187 = vmatprep.subr.bf16.mxu0 0
  %2188 = vmatpush1.bf16.msra.mxu0 0
  %2189 = vmatprep.subr.bf16.mxu0 0
  %2190 = vmatpush1.bf16.msra.mxu0 0
  %2191 = vmatprep.subr.bf16.mxu0 0
  %2192 = vmatpush1.bf16.msra.mxu0 0
  %2193 = vmatprep.subr.bf16.mxu0 0
  %2194 = vmatpush1.bf16.msra.mxu0 0
  %2195 = vmatprep.subr.bf16.mxu0 0
  %2196 = vmatpush1.bf16.msra.mxu0 0
  %2197 = vmatprep.subr.bf16.mxu0 0
  %2198 = vmatpush1.bf16.msra.mxu0 0
  %2199 = vmatprep.subr.bf16.mxu0 0
  %2200 = vmatpush1.bf16.msra.mxu0 0
  %2201 = vmatprep.subr.bf16.mxu0 0
  %2202 = vmatpush1.bf16.msra.mxu0 0
  %2203 = vmatprep.subr.bf16.mxu0 0
  %2204 = vmatpush1.bf16.msra.mxu0 0
  %2205 = vmatprep.subr.bf16.mxu0 0
  %2206 = vmatpush1.bf16.msra.mxu0 0
  %2207 = vmatprep.subr.bf16.mxu0 0
  %2208 = vmatpush1.bf16.msra.mxu0 0
  %2209 = vmatprep.mubr.bf16.mxu0 0
  %2210 = vmatmul.mubr.bf16.gmra.mrb[0].mxu0 %v2175
  %v2211 = vpop.f32.mrb[0].mxu0
  %v2212 = vadd.f32 %v52, %v2211
  %v2213 = vpop.f32.mrb[0].mxu0
  %v2214 = vpop.f32.mrb[0].mxu0
  %v2215 = vpop.f32.mrb[0].mxu0
  %2216 = vdwg.mxu0
  %v2217 = vxor.u32 %v2212, 2147483648
  %v2218 = vmul.f32 %v2217, 1.442695
  %v2219 = vpow.pop %v2218
  %v2220 = vadd.f32 %v2219, 1.0
  %v2221 = vrcp.pop %v2220
  %v2222 = vmul.f32 1.0, %v2221
  %v2223 = vtanh.pop %v2212
  %v2224 = vld [vmem:[#allocation3] sm:$0xff]
  %2226 = vrot.lane.b32.xlu0 %v2224, 32
  %v2227 = vpop.permute.xlu0 %2226
  %v2229 = vmul.f32 %v2222, %v2227
  %2231 = vrot.lane.b32.xlu0 %v2223, 32
  %v2232 = vpop.permute.xlu0 %2231
  %v2234 = vmul.f32 %v2222, %v2232
  %2236 = vrot.lane.b32.xlu0 %v2234, 32
  %v2237 = vpop.permute.xlu0 %2236
  %v2239 = vadd.f32 %v2229, %v2237
  %v2240 = vtanh.pop %v2239
  %2242 = vrot.lane.b32.xlu0 %v2240, 32
  %v2243 = vpop.permute.xlu0 %2242
  %v2245 = vmul.f32 %v2222, %v2243
  %2247 = vrot.lane.b32.xlu0 %v2239, 96
  %v2248 = vpop.permute.xlu0 %2247
  %2250 = vst.msk [vmem:[#allocation3] sm:$0xff] %vm65, %v2248
  %v2251 = vpack.c.bf16 %v2245, %v2245
  %v2253 = vunpack.c.l.b16 %v2251
  %v2254 = vpack.c.b16 %v2253, %v2253
  %2255 = vrot.lane.b32.xlu0 %v2254, 96
  %v2256 = vpop.permute.xlu0 %2255
  %2258 = vst.msk [vmem:[#allocation2] sm:$0xf] %vm188, %v2256
  %v2259 = vld [vmem:[%s7] sm:$0xf]
  %v2260 = vld [vmem:[%s7 + $0x4] sm:$0xf]
  %v2261 = vld [vmem:[%s7 + $0x8] sm:$0xf]
  %v2262 = vld [vmem:[%s7 + $0xc] sm:$0xf]
  %2263 = vrot.lane.b32.xlu0 %v2251, 64
  %v2264 = vpop.permute.xlu0 %2263
  %v2269 = vunpack.c.l.b16 %v2259
  %v2270 = vunpack.c.l.b16 %v2260
  %v2271 = vunpack.c.l.b16 %v2261
  %v2272 = vunpack.c.l.b16 %v2262
  %v2273 = vpack.c.b16 %v2270, %v2269
  %v2274 = vpack.c.b16 %v2272, %v2271
  %v2278 = vsel %vm65, %v2264, 0
  %2280 = vmatprep.subr.bf16.mxu0 0
  %2281 = vmatpush1.bf16.msra.mxu0 %v2273
  %2282 = vmatprep.subr.bf16.mxu0 0
  %2283 = vmatpush1.bf16.msra.mxu0 %v2274
  %2284 = vmatprep.subr.bf16.mxu0 0
  %2285 = vmatpush1.bf16.msra.mxu0 0
  %2286 = vmatprep.subr.bf16.mxu0 0
  %2287 = vmatpush1.bf16.msra.mxu0 0
  %2288 = vmatprep.subr.bf16.mxu0 0
  %2289 = vmatpush1.bf16.msra.mxu0 0
  %2290 = vmatprep.subr.bf16.mxu0 0
  %2291 = vmatpush1.bf16.msra.mxu0 0
  %2292 = vmatprep.subr.bf16.mxu0 0
  %2293 = vmatpush1.bf16.msra.mxu0 0
  %2294 = vmatprep.subr.bf16.mxu0 0
  %2295 = vmatpush1.bf16.msra.mxu0 0
  %2296 = vmatprep.subr.bf16.mxu0 0
  %2297 = vmatpush1.bf16.msra.mxu0 0
  %2298 = vmatprep.subr.bf16.mxu0 0
  %2299 = vmatpush1.bf16.msra.mxu0 0
  %2300 = vmatprep.subr.bf16.mxu0 0
  %2301 = vmatpush1.bf16.msra.mxu0 0
  %2302 = vmatprep.subr.bf16.mxu0 0
  %2303 = vmatpush1.bf16.msra.mxu0 0
  %2304 = vmatprep.subr.bf16.mxu0 0
  %2305 = vmatpush1.bf16.msra.mxu0 0
  %2306 = vmatprep.subr.bf16.mxu0 0
  %2307 = vmatpush1.bf16.msra.mxu0 0
  %2308 = vmatprep.subr.bf16.mxu0 0
  %2309 = vmatpush1.bf16.msra.mxu0 0
  %2310 = vmatprep.subr.bf16.mxu0 0
  %2311 = vmatpush1.bf16.msra.mxu0 0
  %2312 = vmatprep.mubr.bf16.mxu0 0
  %2313 = vmatmul.mubr.bf16.gmra.mrb[0].mxu0 %v2278
  %v2314 = vpop.f32.mrb[0].mxu0
  %v2315 = vadd.f32 %v59, %v2314
  %v2316 = vpop.f32.mrb[0].mxu0
  %v2317 = vpop.f32.mrb[0].mxu0
  %v2318 = vpop.f32.mrb[0].mxu0
  %2319 = vdwg.mxu0
  %s2320 = scalar_lea.vmem %s10, 40
  %2321 = vst [vmem:[%s2320] sm:$0xff] %v2315
  %s2322 = sld [smem:[#allocation5 + $0x6]]
  %p2323 = scmp.eq.s32.totalorder %s2322, 0
  // Predicated region
  $region78: #{seq2seq_forward.1} parent=0 // pred_check
    %p2324 = pneg %p2323
  $region79: #{seq2seq_forward.1} parent=0 // pred_check_branch
    %2326 = sbr.rel (%p2324) target = $region81
  $region80: #{seq2seq_forward.1} parent=0 // pred_region
    %2327 = vmax.xlane.f32.xlu0 %v2315
    %v2328 = vpop.xlane.xlu0 %2327
    %vm2329 = vcmp.eq.f32.partialorder %v2315, %v2328
    %v2330 = vsel %vm2329, %v62, 128
    %v2331 = vand.u32 %v2330, 65535
    %v2332 = vshra.s32 %v2330, 16
    %v2333 = vcvt.s32.f32 %v2331
    %v2334 = vcvt.s32.f32 %v2332
    %2335 = vmin.xlane.f32.xlu0 %v2334
    %v2336 = vpop.xlane.xlu0 %2335
    %vm2337 = vcmp.eq.f32.partialorder %v2334, %v2336
    %v2338 = vsel %vm2337, %v2333, inf
    %2339 = vmin.xlane.f32.xlu0 %v2338
    %v2340 = vpop.xlane.xlu0 %2339
    %v2341 = vcvt.f32.s32 %v2340
    %v2342 = vcvt.f32.s32 %v2336
    %v2343 = vshll.u32 %v2342, 16
    %v2344 = vadd.s32 %v2343, %v2341
    %vm2345 = vcmp.eq.s32.totalorder %v62, %v2344
    %v2346 = vsel %vm2345, 1, 0
    %v2347 = vcvt.s32.f32 %v2346
    %v2348 = vpack.c.bf16 %v2347, %v2347
    %v2349 = vld [vmem:[%s9] sm:$0xf]
    %v2350 = vld [vmem:[%s9 + $0x4] sm:$0xf]
    %v2353 = vunpack.c.l.b16 %v2349
    %v2354 = vunpack.c.l.b16 %v2350
    %v2355 = vpack.c.b16 %v2354, %v2353
    %vm2357 = vcmask 130048
    %v2359 = vsel %vm2357, %v2348, 0
    %2361 = vmatprep.subr.bf16.mxu0 0
    %2362 = vmatpush1.bf16.msra.mxu0 %v2355
    %2363 = vmatprep.subr.bf16.mxu0 0
    %2364 = vmatpush1.bf16.msra.mxu0 0
    %2365 = vmatprep.subr.bf16.mxu0 0
    %2366 = vmatpush1.bf16.msra.mxu0 0
    %2367 = vmatprep.subr.bf16.mxu0 0
    %2368 = vmatpush1.bf16.msra.mxu0 0
    %2369 = vmatprep.subr.bf16.mxu0 0
    %2370 = vmatpush1.bf16.msra.mxu0 0
    %2371 = vmatprep.subr.bf16.mxu0 0
    %2372 = vmatpush1.bf16.msra.mxu0 0
    %2373 = vmatprep.subr.bf16.mxu0 0
    %2374 = vmatpush1.bf16.msra.mxu0 0
    %2375 = vmatprep.subr.bf16.mxu0 0
    %2376 = vmatpush1.bf16.msra.mxu0 0
    %2377 = vmatprep.subr.bf16.mxu0 0
    %2378 = vmatpush1.bf16.msra.mxu0 0
    %2379 = vmatprep.subr.bf16.mxu0 0
    %2380 = vmatpush1.bf16.msra.mxu0 0
    %2381 = vmatprep.subr.bf16.mxu0 0
    %2382 = vmatpush1.bf16.msra.mxu0 0
    %2383 = vmatprep.subr.bf16.mxu0 0
    %2384 = vmatpush1.bf16.msra.mxu0 0
    %2385 = vmatprep.subr.bf16.mxu0 0
    %2386 = vmatpush1.bf16.msra.mxu0 0
    %2387 = vmatprep.subr.bf16.mxu0 0
    %2388 = vmatpush1.bf16.msra.mxu0 0
    %2389 = vmatprep.subr.bf16.mxu0 0
    %2390 = vmatpush1.bf16.msra.mxu0 0
    %2391 = vmatprep.subr.bf16.mxu0 0
    %2392 = vmatpush1.bf16.msra.mxu0 0
    %2393 = vmatprep.mubr.bf16.mxu0 0
    %2394 = vmatmul.mubr.bf16.gmra.mrb[0].mxu0 %v2359
    %v2395 = vpop.f32.mrb[0].mxu0
    %v2396 = vadd.f32 0.0, %v2395
    %v2397 = vpop.f32.mrb[0].mxu0
    %v2398 = vpop.f32.mrb[0].mxu0
    %v2399 = vpop.f32.mrb[0].mxu0
    %2400 = vdwg.mxu0
    %v2401 = vpack.c.bf16 %v2396, %v2396
    %2402 = vst.msk [vmem:[#allocation2] sm:$0xf] %vm68, %v2401
  $region81: #{seq2seq_forward.1} parent=0 // pred_fallthru
    _
  %p2403 = scmp.ne.s32.totalorder %s2322, 0
  // Predicated region
  $region82: #{seq2seq_forward.1} parent=0 // pred_check
    %p2404 = pneg %p2403
  $region83: #{seq2seq_forward.1} parent=0 // pred_check_branch
    %2406 = sbr.rel (%p2404) target = $region85
  $region84: #{seq2seq_forward.1} parent=0 // pred_region
    %s2407 = scalar_lea.vmem %s2, 24
    %v2408 = vld [vmem:[%s2407] sm:$0xf]
    %2409 = vst.msk [vmem:[#allocation2] sm:$0xf] %vm68, %v2408
  $region85: #{seq2seq_forward.1} parent=0 // pred_fallthru
    _
  %v2410 = vld [vmem:[#allocation2] sm:$0xf]
  %v2411 = vld [vmem:[%s5] sm:$0xf]
  %v2412 = vld [vmem:[%s5 + $0x4] sm:$0xf]
  %v2413 = vld [vmem:[%s5 + $0x8] sm:$0xf]
  %v2414 = vld [vmem:[%s5 + $0xc] sm:$0xf]
  %v2415 = vld [vmem:[%s5 + $0x10] sm:$0xf]
  %v2416 = vld [vmem:[%s5 + $0x14] sm:$0xf]
  %v2417 = vld [vmem:[%s5 + $0x18] sm:$0xf]
  %v2418 = vld [vmem:[%s5 + $0x1c] sm:$0xf]
  %v2427 = vunpack.c.l.b16 %v2411
  %v2428 = vunpack.c.l.b16 %v2412
  %v2429 = vunpack.c.l.b16 %v2413
  %v2430 = vunpack.c.l.b16 %v2414
  %v2431 = vunpack.c.l.b16 %v2415
  %v2432 = vunpack.c.l.b16 %v2416
  %v2433 = vunpack.c.l.b16 %v2417
  %v2434 = vunpack.c.l.b16 %v2418
  %v2435 = vpack.c.b16 %v2428, %v2427
  %v2436 = vpack.c.b16 %v2430, %v2429
  %v2437 = vpack.c.b16 %v2432, %v2431
  %v2438 = vpack.c.b16 %v2434, %v2433
  %v2444 = vsel %vm103, %v2410, 0
  %2446 = vmatprep.subr.bf16.mxu0 0
  %2447 = vmatpush1.bf16.msra.mxu0 %v2435
  %2448 = vmatprep.subr.bf16.mxu0 0
  %2449 = vmatpush1.bf16.msra.mxu0 %v2436
  %2450 = vmatprep.subr.bf16.mxu0 0
  %2451 = vmatpush1.bf16.msra.mxu0 %v2437
  %2452 = vmatprep.subr.bf16.mxu0 0
  %2453 = vmatpush1.bf16.msra.mxu0 %v2438
  %2454 = vmatprep.subr.bf16.mxu0 0
  %2455 = vmatpush1.bf16.msra.mxu0 0
  %2456 = vmatprep.subr.bf16.mxu0 0
  %2457 = vmatpush1.bf16.msra.mxu0 0
  %2458 = vmatprep.subr.bf16.mxu0 0
  %2459 = vmatpush1.bf16.msra.mxu0 0
  %2460 = vmatprep.subr.bf16.mxu0 0
  %2461 = vmatpush1.bf16.msra.mxu0 0
  %2462 = vmatprep.subr.bf16.mxu0 0
  %2463 = vmatpush1.bf16.msra.mxu0 0
  %2464 = vmatprep.subr.bf16.mxu0 0
  %2465 = vmatpush1.bf16.msra.mxu0 0
  %2466 = vmatprep.subr.bf16.mxu0 0
  %2467 = vmatpush1.bf16.msra.mxu0 0
  %2468 = vmatprep.subr.bf16.mxu0 0
  %2469 = vmatpush1.bf16.msra.mxu0 0
  %2470 = vmatprep.subr.bf16.mxu0 0
  %2471 = vmatpush1.bf16.msra.mxu0 0
  %2472 = vmatprep.subr.bf16.mxu0 0
  %2473 = vmatpush1.bf16.msra.mxu0 0
  %2474 = vmatprep.subr.bf16.mxu0 0
  %2475 = vmatpush1.bf16.msra.mxu0 0
  %2476 = vmatprep.subr.bf16.mxu0 0
  %2477 = vmatpush1.bf16.msra.mxu0 0
  %2478 = vmatprep.mubr.bf16.mxu0 0
  %2479 = vmatmul.mubr.bf16.gmra.mrb[0].mxu0 %v2444
  %v2480 = vpop.f32.mrb[0].mxu0
  %v2481 = vadd.f32 %v52, %v2480
  %v2482 = vpop.f32.mrb[0].mxu0
  %v2483 = vpop.f32.mrb[0].mxu0
  %v2484 = vpop.f32.mrb[0].mxu0
  %2485 = vdwg.mxu0
  %v2486 = vxor.u32 %v2481, 2147483648
  %v2487 = vmul.f32 %v2486, 1.442695
  %v2488 = vpow.pop %v2487
  %v2489 = vadd.f32 %v2488, 1.0
  %v2490 = vrcp.pop %v2489
  %v2491 = vmul.f32 1.0, %v2490
  %v2492 = vtanh.pop %v2481
  %v2493 = vld [vmem:[#allocation3] sm:$0xff]
  %2495 = vrot.lane.b32.xlu0 %v2493, 32
  %v2496 = vpop.permute.xlu0 %2495
  %v2498 = vmul.f32 %v2491, %v2496
  %2500 = vrot.lane.b32.xlu0 %v2492, 32
  %v2501 = vpop.permute.xlu0 %2500
  %v2503 = vmul.f32 %v2491, %v2501
  %2505 = vrot.lane.b32.xlu0 %v2503, 32
  %v2506 = vpop.permute.xlu0 %2505
  %v2508 = vadd.f32 %v2498, %v2506
  %v2509 = vtanh.pop %v2508
  %2511 = vrot.lane.b32.xlu0 %v2509, 32
  %v2512 = vpop.permute.xlu0 %2511
  %v2514 = vmul.f32 %v2491, %v2512
  %2516 = vrot.lane.b32.xlu0 %v2508, 96
  %v2517 = vpop.permute.xlu0 %2516
  %2519 = vst.msk [vmem:[#allocation3] sm:$0xff] %vm65, %v2517
  %v2520 = vpack.c.bf16 %v2514, %v2514
  %v2522 = vunpack.c.l.b16 %v2520
  %v2523 = vpack.c.b16 %v2522, %v2522
  %2524 = vrot.lane.b32.xlu0 %v2523, 96
  %v2525 = vpop.permute.xlu0 %2524
  %2527 = vst.msk [vmem:[#allocation2] sm:$0xf] %vm188, %v2525
  %v2528 = vld [vmem:[%s7] sm:$0xf]
  %v2529 = vld [vmem:[%s7 + $0x4] sm:$0xf]
  %v2530 = vld [vmem:[%s7 + $0x8] sm:$0xf]
  %v2531 = vld [vmem:[%s7 + $0xc] sm:$0xf]
  %2532 = vrot.lane.b32.xlu0 %v2520, 64
  %v2533 = vpop.permute.xlu0 %2532
  %v2538 = vunpack.c.l.b16 %v2528
  %v2539 = vunpack.c.l.b16 %v2529
  %v2540 = vunpack.c.l.b16 %v2530
  %v2541 = vunpack.c.l.b16 %v2531
  %v2542 = vpack.c.b16 %v2539, %v2538
  %v2543 = vpack.c.b16 %v2541, %v2540
  %v2547 = vsel %vm65, %v2533, 0
  %2549 = vmatprep.subr.bf16.mxu0 0
  %2550 = vmatpush1.bf16.msra.mxu0 %v2542
  %2551 = vmatprep.subr.bf16.mxu0 0
  %2552 = vmatpush1.bf16.msra.mxu0 %v2543
  %2553 = vmatprep.subr.bf16.mxu0 0
  %2554 = vmatpush1.bf16.msra.mxu0 0
  %2555 = vmatprep.subr.bf16.mxu0 0
  %2556 = vmatpush1.bf16.msra.mxu0 0
  %2557 = vmatprep.subr.bf16.mxu0 0
  %2558 = vmatpush1.bf16.msra.mxu0 0
  %2559 = vmatprep.subr.bf16.mxu0 0
  %2560 = vmatpush1.bf16.msra.mxu0 0
  %2561 = vmatprep.subr.bf16.mxu0 0
  %2562 = vmatpush1.bf16.msra.mxu0 0
  %2563 = vmatprep.subr.bf16.mxu0 0
  %2564 = vmatpush1.bf16.msra.mxu0 0
  %2565 = vmatprep.subr.bf16.mxu0 0
  %2566 = vmatpush1.bf16.msra.mxu0 0
  %2567 = vmatprep.subr.bf16.mxu0 0
  %2568 = vmatpush1.bf16.msra.mxu0 0
  %2569 = vmatprep.subr.bf16.mxu0 0
  %2570 = vmatpush1.bf16.msra.mxu0 0
  %2571 = vmatprep.subr.bf16.mxu0 0
  %2572 = vmatpush1.bf16.msra.mxu0 0
  %2573 = vmatprep.subr.bf16.mxu0 0
  %2574 = vmatpush1.bf16.msra.mxu0 0
  %2575 = vmatprep.subr.bf16.mxu0 0
  %2576 = vmatpush1.bf16.msra.mxu0 0
  %2577 = vmatprep.subr.bf16.mxu0 0
  %2578 = vmatpush1.bf16.msra.mxu0 0
  %2579 = vmatprep.subr.bf16.mxu0 0
  %2580 = vmatpush1.bf16.msra.mxu0 0
  %2581 = vmatprep.mubr.bf16.mxu0 0
  %2582 = vmatmul.mubr.bf16.gmra.mrb[0].mxu0 %v2547
  %v2583 = vpop.f32.mrb[0].mxu0
  %v2584 = vadd.f32 %v59, %v2583
  %v2585 = vpop.f32.mrb[0].mxu0
  %v2586 = vpop.f32.mrb[0].mxu0
  %v2587 = vpop.f32.mrb[0].mxu0
  %2588 = vdwg.mxu0
  %s2589 = scalar_lea.vmem %s10, 48
  %2590 = vst [vmem:[%s2589] sm:$0xff] %v2584
  %s2591 = sld [smem:[#allocation5 + $0x7]]
  %p2592 = scmp.eq.s32.totalorder %s2591, 0
  // Predicated region
  $region86: #{seq2seq_forward.1} parent=0 // pred_check
    %p2593 = pneg %p2592
  $region87: #{seq2seq_forward.1} parent=0 // pred_check_branch
    %2595 = sbr.rel (%p2593) target = $region89
  $region88: #{seq2seq_forward.1} parent=0 // pred_region
    %2596 = vmax.xlane.f32.xlu0 %v2584
    %v2597 = vpop.xlane.xlu0 %2596
    %vm2598 = vcmp.eq.f32.partialorder %v2584, %v2597
    %v2599 = vsel %vm2598, %v62, 128
    %v2600 = vand.u32 %v2599, 65535
    %v2601 = vshra.s32 %v2599, 16
    %v2602 = vcvt.s32.f32 %v2600
    %v2603 = vcvt.s32.f32 %v2601
    %2604 = vmin.xlane.f32.xlu0 %v2603
    %v2605 = vpop.xlane.xlu0 %2604
    %vm2606 = vcmp.eq.f32.partialorder %v2603, %v2605
    %v2607 = vsel %vm2606, %v2602, inf
    %2608 = vmin.xlane.f32.xlu0 %v2607
    %v2609 = vpop.xlane.xlu0 %2608
    %v2610 = vcvt.f32.s32 %v2609
    %v2611 = vcvt.f32.s32 %v2605
    %v2612 = vshll.u32 %v2611, 16
    %v2613 = vadd.s32 %v2612, %v2610
    %vm2614 = vcmp.eq.s32.totalorder %v62, %v2613
    %v2615 = vsel %vm2614, 1, 0
    %v2616 = vcvt.s32.f32 %v2615
    %v2617 = vpack.c.bf16 %v2616, %v2616
    %v2618 = vld [vmem:[%s9] sm:$0xf]
    %v2619 = vld [vmem:[%s9 + $0x4] sm:$0xf]
    %v2622 = vunpack.c.l.b16 %v2618
    %v2623 = vunpack.c.l.b16 %v2619
    %v2624 = vpack.c.b16 %v2623, %v2622
    %vm2626 = vcmask 130048
    %v2628 = vsel %vm2626, %v2617, 0
    %2630 = vmatprep.subr.bf16.mxu0 0
    %2631 = vmatpush1.bf16.msra.mxu0 %v2624
    %2632 = vmatprep.subr.bf16.mxu0 0
    %2633 = vmatpush1.bf16.msra.mxu0 0
    %2634 = vmatprep.subr.bf16.mxu0 0
    %2635 = vmatpush1.bf16.msra.mxu0 0
    %2636 = vmatprep.subr.bf16.mxu0 0
    %2637 = vmatpush1.bf16.msra.mxu0 0
    %2638 = vmatprep.subr.bf16.mxu0 0
    %2639 = vmatpush1.bf16.msra.mxu0 0
    %2640 = vmatprep.subr.bf16.mxu0 0
    %2641 = vmatpush1.bf16.msra.mxu0 0
    %2642 = vmatprep.subr.bf16.mxu0 0
    %2643 = vmatpush1.bf16.msra.mxu0 0
    %2644 = vmatprep.subr.bf16.mxu0 0
    %2645 = vmatpush1.bf16.msra.mxu0 0
    %2646 = vmatprep.subr.bf16.mxu0 0
    %2647 = vmatpush1.bf16.msra.mxu0 0
    %2648 = vmatprep.subr.bf16.mxu0 0
    %2649 = vmatpush1.bf16.msra.mxu0 0
    %2650 = vmatprep.subr.bf16.mxu0 0
    %2651 = vmatpush1.bf16.msra.mxu0 0
    %2652 = vmatprep.subr.bf16.mxu0 0
    %2653 = vmatpush1.bf16.msra.mxu0 0
    %2654 = vmatprep.subr.bf16.mxu0 0
    %2655 = vmatpush1.bf16.msra.mxu0 0
    %2656 = vmatprep.subr.bf16.mxu0 0
    %2657 = vmatpush1.bf16.msra.mxu0 0
    %2658 = vmatprep.subr.bf16.mxu0 0
    %2659 = vmatpush1.bf16.msra.mxu0 0
    %2660 = vmatprep.subr.bf16.mxu0 0
    %2661 = vmatpush1.bf16.msra.mxu0 0
    %2662 = vmatprep.mubr.bf16.mxu0 0
    %2663 = vmatmul.mubr.bf16.gmra.mrb[0].mxu0 %v2628
    %v2664 = vpop.f32.mrb[0].mxu0
    %v2665 = vadd.f32 0.0, %v2664
    %v2666 = vpop.f32.mrb[0].mxu0
    %v2667 = vpop.f32.mrb[0].mxu0
    %v2668 = vpop.f32.mrb[0].mxu0
    %2669 = vdwg.mxu0
    %v2670 = vpack.c.bf16 %v2665, %v2665
    %2671 = vst.msk [vmem:[#allocation2] sm:$0xf] %vm68, %v2670
  $region89: #{seq2seq_forward.1} parent=0 // pred_fallthru
    _
  %p2672 = scmp.ne.s32.totalorder %s2591, 0
  // Predicated region
  $region90: #{seq2seq_forward.1} parent=0 // pred_check
    %p2673 = pneg %p2672
  $region91: #{seq2seq_forward.1} parent=0 // pred_check_branch
    %2675 = sbr.rel (%p2673) target = $region93
  $region92: #{seq2seq_forward.1} parent=0 // pred_region
    %s2676 = scalar_lea.vmem %s2, 28
    %v2677 = vld [vmem:[%s2676] sm:$0xf]
    %2678 = vst.msk [vmem:[#allocation2] sm:$0xf] %vm68, %v2677
  $region93: #{seq2seq_forward.1} parent=0 // pred_fallthru
    _
  // Predicated region
  $region94: #{seq2seq_forward.1} parent=0 // pred_check
    _
  $region95: #{seq2seq_forward.1} parent=0 // pred_check_branch
    %2680 = sbr.rel (0) target = $region97
  $region96: #{seq2seq_forward.1} parent=0 // pred_region
    _
  $region97: #{seq2seq_forward.1} parent=0 // pred_fallthru
    _
  // Predicated region
  $region98: #{seq2seq_forward.1} parent=0 // pred_check
    _
  $region99: #{seq2seq_forward.1} parent=0 // pred_check_branch
    %2682 = sbr.rel (0) target = $region101
  $region100: #{seq2seq_forward.1} parent=0 // pred_region
    _
  $region101: #{seq2seq_forward.1} parent=0 // pred_fallthru
    _

</llo_original>
